<compile_context>
chip_gen: v7x
topology: tpu7x:2x2x1
jax: 0.10.0
libtpu: 0.0.40
codegen_flags: <defaults>
</compile_context>

<pallas_src>
import jax
import jax.numpy as jnp
from jax.experimental import pallas as pl
from jax.experimental.pallas import tpu as pltpu

LEAKY_SLOPE = 0.2
BN_EPS = 0.8     # PyTorch's BatchNorm1d(n, 0.8): second positional arg is eps.
LANE = 128


def _leaky_relu(h):
    return jnp.where(h > 0, h, LEAKY_SLOPE * h)


def _generator_kernel(
    x_ref,
    w1_ref, b1_ref,
    w2_ref, b2_ref, g2_ref, be2_ref,
    w3_ref, b3_ref, g3_ref, be3_ref,
    w4_ref, b4_ref, g4_ref, be4_ref,
    w5_ref, b5_ref,
    out_ref,
):
    def linear(h, w_ref, b_ref):
        # bf16 operands on the MXU, f32 accumulation; bias (1, F) broadcasts over batch.
        return (
            jnp.dot(h.astype(w_ref.dtype), w_ref[...],
                    preferred_element_type=jnp.float32)
            + b_ref[...]
        )

    def batchnorm(h, g_ref, be_ref):
        # Training-mode BatchNorm1d: full-batch stats, biased variance,
        # folded into a single fused scale/shift  y = h*a + b.
        mu = jnp.mean(h, axis=0, keepdims=True)
        var = jnp.mean((h - mu) * (h - mu), axis=0, keepdims=True)
        a = g_ref[...] * jax.lax.rsqrt(var + BN_EPS)
        b = be_ref[...] - mu * a
        return h * a + b

    # Elementwise activation math stays in f32 (bf16 buys nothing on v5e's VPU/EUP).
    h = x_ref[...].astype(jnp.float32)
    h = _leaky_relu(linear(h, w1_ref, b1_ref))
    h = _leaky_relu(batchnorm(linear(h, w2_ref, b2_ref), g2_ref, be2_ref))
    h = _leaky_relu(batchnorm(linear(h, w3_ref, b3_ref), g3_ref, be3_ref))
    h = _leaky_relu(batchnorm(linear(h, w4_ref, b4_ref), g4_ref, be4_ref))
    # Only the fc5 output slice owned by this grid step is computed / stored.
    h = jnp.tanh(linear(h, w5_ref, b5_ref))
    out_ref[...] = h.astype(out_ref.dtype)


def _choose_out_tile(padded_out_dim):
    """Largest lane-multiple tile <= 1024 that divides padded_out_dim, preferring
    at least 2 tiles so v7x's two TensorCores both get work."""
    m = padded_out_dim // LANE
    if m == 1:
        return LANE
    best = 1
    for d in range(1, m + 1):
        if m % d == 0 and d * LANE <= 1024 and m // d >= 2:
            best = d
    return best * LANE


def generator_forward(x, params, input_shape):
    """x: (B, latent_dim) f32. Returns (B, *input_shape) f32."""
    B, latent_dim = x.shape
    out_dim = 1
    for d in input_shape:
        out_dim *= d

    # Lane-align the output so stores are unmasked; slice the pad off afterwards.
    padded_out = ((out_dim + LANE - 1) // LANE) * LANE
    tn = _choose_out_tile(padded_out)
    n_tiles = padded_out // tn

    w5, b5 = params["w5"], params["b5"]
    if padded_out != out_dim:
        w5 = jnp.pad(w5, ((0, 0), (0, padded_out - out_dim)))
        b5 = jnp.pad(b5, ((0, 0), (0, padded_out - out_dim)))

    flat_args = (
        x,
        params["w1"], params["b1"],
        params["w2"], params["b2"], params["g2"], params["be2"],
        params["w3"], params["b3"], params["g3"], params["be3"],
        params["w4"], params["b4"], params["g4"], params["be4"],
        w5, b5,
    )

    def resident(a):
        # Constant block index across the grid -> stays in VMEM, DMA'd once per core.
        return pl.BlockSpec(a.shape, lambda j: (0, 0))

    in_specs = [resident(a) for a in flat_args[:-2]] + [
        pl.BlockSpec((w5.shape[0], tn), lambda j: (0, j)),   # w5 feature tile
        pl.BlockSpec((1, tn), lambda j: (0, j)),             # b5 feature tile
    ]
    out_specs = pl.BlockSpec((B, tn), lambda j: (0, j))

    dims = [latent_dim, 128, 256, 512, 1024, padded_out]
    flops = 2 * B * sum(dims[i] * dims[i + 1] for i in range(5))
    transcendentals = B * padded_out + (256 + 512 + 1024)     # tanh + BN rsqrt
    bytes_accessed = (
        sum(int(a.size) * a.dtype.itemsize for a in flat_args)
        + B * padded_out * 4
    )

    out_flat = pl.pallas_call(
        _generator_kernel,
        out_shape=jax.ShapeDtypeStruct((B, padded_out), jnp.float32),
        grid_spec=pltpu.PrefetchScalarGridSpec(
            num_scalar_prefetch=0,
            grid=(n_tiles,),
            in_specs=in_specs,
            out_specs=out_specs,
        ),
        compiler_params=pltpu.CompilerParams(
            dimension_semantics=("parallel",),
        ),
        cost_estimate=pl.CostEstimate(
            flops=flops,
            transcendentals=transcendentals,
            bytes_accessed=bytes_accessed,
        ),
    )(*flat_args)

    if padded_out != out_dim:
        out_flat = out_flat[:, :out_dim]
    return out_flat.reshape((B,) + tuple(input_shape))


def init_params(key, latent_dim, input_shape):
    """PyTorch-style uniform +-1/sqrt(fan_in) init. Weights cast to bf16 to halve
    HBM traffic; biases / BN affine params stay f32."""
    out_dim = 1
    for d in input_shape:
        out_dim *= d
    dims = [latent_dim, 128, 256, 512, 1024, out_dim]

    params = {}
    keys = jax.random.split(key, 10)
    ki = 0
    for layer in range(1, 6):
        fan_in, fan_out = dims[layer - 1], dims[layer]
        bound = 1.0 / (fan_in ** 0.5)
        w = jax.random.uniform(keys[ki], (fan_in, fan_out), jnp.float32, -bound, bound)
        ki += 1
        b = jax.random.uniform(keys[ki], (1, fan_out), jnp.float32, -bound, bound)
        ki += 1
        params[f"w{layer}"] = w.astype(jnp.bfloat16)
        params[f"b{layer}"] = b

    # BatchNorm affine params (default init gamma=1, beta=0), kept 2D for TPU layout.
    for layer, nfeat in ((2, 256), (3, 512), (4, 1024)):
        params[f"g{layer}"] = jnp.ones((1, nfeat), jnp.float32)
        params[f"be{layer}"] = jnp.zeros((1, nfeat), jnp.float32)
    return params


def generator_reference(x, params, input_shape):
    """Pure-JAX reference mirroring the kernel's math (bf16 weights, f32 accum)."""
    def linear(h, w, b):
        return jnp.dot(h.astype(w.dtype), w, preferred_element_type=jnp.float32) + b

    def bn(h, g, be):
        mu = jnp.mean(h, axis=0, keepdims=True)
        var = jnp.mean((h - mu) * (h - mu), axis=0, keepdims=True)
        a = g * jax.lax.rsqrt(var + BN_EPS)
        return h * a + (be - mu * a)

    h = x.astype(jnp.float32)
    h = _leaky_relu(linear(h, params["w1"], params["b1"]))
    h = _leaky_relu(bn(linear(h, params["w2"], params["b2"]), params["g2"], params["be2"]))
    h = _leaky_relu(bn(linear(h, params["w3"], params["b3"]), params["g3"], params["be3"]))
    h = _leaky_relu(bn(linear(h, params["w4"], params["b4"]), params["g4"], params["be4"]))
    h = jnp.tanh(linear(h, params["w5"], params["b5"]))
    return h.reshape((x.shape[0],) + tuple(input_shape))


if __name__ == "__main__":
    input_shape = (1, 16, 16)   # (C, H, W) -> prod = 256 (already lane-aligned)
    latent_dim = 32
    batch = 8                   # small demo; batch >=128 fills the MXU rows

    key = jax.random.PRNGKey(0)
    k_param, k_x = jax.random.split(key)
    params = init_params(k_param, latent_dim, input_shape)
    x = jax.random.normal(k_x, (batch, latent_dim), jnp.float32)

    fwd = jax.jit(lambda x, p: generator_forward(x, p, input_shape))
    out = fwd(x, params)
    jax.block_until_ready(out)

    assert out.shape == (batch,) + input_shape, out.shape
    assert out.dtype == jnp.float32
    assert bool(jnp.all(jnp.isfinite(out)))
    assert bool(jnp.all(jnp.abs(out) <= 1.0))  # tanh range

    ref = generator_reference(x, params, input_shape)
    assert bool(jnp.allclose(out, ref, atol=1e-2, rtol=1e-2)), (
        float(jnp.max(jnp.abs(out - ref)))
    )
    print("KERNEL_OK")
</pallas_src>

<mosaic_0001>
module attributes {stable_mosaic.version = 11 : i64} {
  func.func @_generator_kernel(%arg0: i32, %arg1: memref<8x32xf32, #tpu.memory_space<vmem>>, %arg2: memref<32x128xbf16, #tpu.memory_space<vmem>>, %arg3: memref<1x128xf32, #tpu.memory_space<vmem>>, %arg4: memref<128x256xbf16, #tpu.memory_space<vmem>>, %arg5: memref<1x256xf32, #tpu.memory_space<vmem>>, %arg6: memref<1x256xf32, #tpu.memory_space<vmem>>, %arg7: memref<1x256xf32, #tpu.memory_space<vmem>>, %arg8: memref<256x512xbf16, #tpu.memory_space<vmem>>, %arg9: memref<1x512xf32, #tpu.memory_space<vmem>>, %arg10: memref<1x512xf32, #tpu.memory_space<vmem>>, %arg11: memref<1x512xf32, #tpu.memory_space<vmem>>, %arg12: memref<512x1024xbf16, #tpu.memory_space<vmem>>, %arg13: memref<1x1024xf32, #tpu.memory_space<vmem>>, %arg14: memref<1x1024xf32, #tpu.memory_space<vmem>>, %arg15: memref<1x1024xf32, #tpu.memory_space<vmem>>, %arg16: memref<1024x128xbf16, #tpu.memory_space<vmem>>, %arg17: memref<1x128xf32, #tpu.memory_space<vmem>>, %arg18: memref<8x128xf32, #tpu.memory_space<vmem>>) attributes {dimension_semantics = [#tpu.dimension_semantics<parallel>], iteration_bounds = array<i64: 2>, scalar_prefetch = 0 : i64, scratch_operands = 0 : i64, tpu.core_type = #tpu.core_type<tc>, window_params = [{pipeline_mode = #tpu.pipeline_mode<synchronous>, transform_indices = @transform_0, window_bounds = array<i64: 8, 32>}, {pipeline_mode = #tpu.pipeline_mode<synchronous>, transform_indices = @transform_1, window_bounds = array<i64: 32, 128>}, {pipeline_mode = #tpu.pipeline_mode<synchronous>, transform_indices = @transform_2, window_bounds = array<i64: 1, 128>}, {pipeline_mode = #tpu.pipeline_mode<synchronous>, transform_indices = @transform_3, window_bounds = array<i64: 128, 256>}, {pipeline_mode = #tpu.pipeline_mode<synchronous>, transform_indices = @transform_4, window_bounds = array<i64: 1, 256>}, {pipeline_mode = #tpu.pipeline_mode<synchronous>, transform_indices = @transform_5, window_bounds = array<i64: 1, 256>}, {pipeline_mode = #tpu.pipeline_mode<synchronous>, transform_indices = @transform_6, window_bounds = array<i64: 1, 256>}, {pipeline_mode = #tpu.pipeline_mode<synchronous>, transform_indices = @transform_7, window_bounds = array<i64: 256, 512>}, {pipeline_mode = #tpu.pipeline_mode<synchronous>, transform_indices = @transform_8, window_bounds = array<i64: 1, 512>}, {pipeline_mode = #tpu.pipeline_mode<synchronous>, transform_indices = @transform_9, window_bounds = array<i64: 1, 512>}, {pipeline_mode = #tpu.pipeline_mode<synchronous>, transform_indices = @transform_10, window_bounds = array<i64: 1, 512>}, {pipeline_mode = #tpu.pipeline_mode<synchronous>, transform_indices = @transform_11, window_bounds = array<i64: 512, 1024>}, {pipeline_mode = #tpu.pipeline_mode<synchronous>, transform_indices = @transform_12, window_bounds = array<i64: 1, 1024>}, {pipeline_mode = #tpu.pipeline_mode<synchronous>, transform_indices = @transform_13, window_bounds = array<i64: 1, 1024>}, {pipeline_mode = #tpu.pipeline_mode<synchronous>, transform_indices = @transform_14, window_bounds = array<i64: 1, 1024>}, {transform_indices = @transform_15, window_bounds = array<i64: 1024, 128>}, {transform_indices = @transform_16, window_bounds = array<i64: 1, 128>}, {transform_indices = @transform_17, window_bounds = array<i64: 8, 128>}]} {
    %c0 = arith.constant 0 : index
    %c0_0 = arith.constant 0 : index
    %0 = vector.load %arg1[%c0, %c0_0] : memref<8x32xf32, #tpu.memory_space<vmem>>, vector<8x32xf32>
    %1 = arith.truncf %0 : vector<8x32xf32> to vector<8x32xbf16>
    %c0_1 = arith.constant 0 : index
    %c0_2 = arith.constant 0 : index
    %2 = vector.load %arg2[%c0_1, %c0_2] : memref<32x128xbf16, #tpu.memory_space<vmem>>, vector<32x128xbf16>
    %cst = arith.constant dense<0.000000e+00> : vector<8x128xf32>
    %3 = tpu.matmul %1, %2, %cst {dimension_numbers = #tpu.dot_dimension_numbers<[1], [0], [0], [1], [0, 0, 1, 1], [], []>} : vector<8x32xbf16>, vector<32x128xbf16>, vector<8x128xf32> -> vector<8x128xf32>
    %c0_3 = arith.constant 0 : index
    %c0_4 = arith.constant 0 : index
    %4 = vector.load %arg3[%c0_3, %c0_4] : memref<1x128xf32, #tpu.memory_space<vmem>>, vector<1x128xf32>
    %5 = vector.broadcast %4 : vector<1x128xf32> to vector<8x128xf32>
    %6 = arith.addf %3, %5 : vector<8x128xf32>
    %cst_5 = arith.constant 0.000000e+00 : f32
    %7 = vector.broadcast %cst_5 : f32 to vector<8x128xf32>
    %8 = arith.cmpf ogt, %6, %7 : vector<8x128xf32>
    %cst_6 = arith.constant 2.000000e-01 : f32
    %9 = vector.broadcast %cst_6 : f32 to vector<8x128xf32>
    %10 = arith.mulf %9, %6 : vector<8x128xf32>
    %11 = arith.select %8, %6, %10 : vector<8x128xi1>, vector<8x128xf32>
    %12 = arith.truncf %11 : vector<8x128xf32> to vector<8x128xbf16>
    %c0_7 = arith.constant 0 : index
    %c0_8 = arith.constant 0 : index
    %13 = vector.load %arg4[%c0_7, %c0_8] : memref<128x256xbf16, #tpu.memory_space<vmem>>, vector<128x256xbf16>
    %cst_9 = arith.constant dense<0.000000e+00> : vector<8x256xf32>
    %14 = tpu.matmul %12, %13, %cst_9 {dimension_numbers = #tpu.dot_dimension_numbers<[1], [0], [0], [1], [0, 0, 1, 1], [], []>} : vector<8x128xbf16>, vector<128x256xbf16>, vector<8x256xf32> -> vector<8x256xf32>
    %c0_10 = arith.constant 0 : index
    %c0_11 = arith.constant 0 : index
    %15 = vector.load %arg5[%c0_10, %c0_11] : memref<1x256xf32, #tpu.memory_space<vmem>>, vector<1x256xf32>
    %16 = vector.broadcast %15 : vector<1x256xf32> to vector<8x256xf32>
    %17 = arith.addf %14, %16 : vector<8x256xf32>
    %cst_12 = arith.constant dense<0.000000e+00> : vector<256xf32>
    %18 = vector.multi_reduction <add>, %17, %cst_12 [0] : vector<8x256xf32> to vector<256xf32>
    %19 = vector.shape_cast %18 : vector<256xf32> to vector<1x256xf32>
    %cst_13 = arith.constant 8.000000e+00 : f32
    %20 = vector.broadcast %cst_13 : f32 to vector<1x256xf32>
    %21 = arith.divf %19, %20 : vector<1x256xf32>
    %22 = vector.broadcast %21 : vector<1x256xf32> to vector<8x256xf32>
    %23 = arith.subf %17, %22 : vector<8x256xf32>
    %24 = vector.broadcast %21 : vector<1x256xf32> to vector<8x256xf32>
    %25 = arith.subf %17, %24 : vector<8x256xf32>
    %26 = arith.mulf %23, %25 : vector<8x256xf32>
    %cst_14 = arith.constant dense<0.000000e+00> : vector<256xf32>
    %27 = vector.multi_reduction <add>, %26, %cst_14 [0] : vector<8x256xf32> to vector<256xf32>
    %28 = vector.shape_cast %27 : vector<256xf32> to vector<1x256xf32>
    %cst_15 = arith.constant 8.000000e+00 : f32
    %29 = vector.broadcast %cst_15 : f32 to vector<1x256xf32>
    %30 = arith.divf %28, %29 : vector<1x256xf32>
    %c0_16 = arith.constant 0 : index
    %c0_17 = arith.constant 0 : index
    %31 = vector.load %arg6[%c0_16, %c0_17] : memref<1x256xf32, #tpu.memory_space<vmem>>, vector<1x256xf32>
    %cst_18 = arith.constant 8.000000e-01 : f32
    %32 = vector.broadcast %cst_18 : f32 to vector<1x256xf32>
    %33 = arith.addf %30, %32 : vector<1x256xf32>
    %34 = math.rsqrt %33 : vector<1x256xf32>
    %35 = arith.mulf %31, %34 : vector<1x256xf32>
    %c0_19 = arith.constant 0 : index
    %c0_20 = arith.constant 0 : index
    %36 = vector.load %arg7[%c0_19, %c0_20] : memref<1x256xf32, #tpu.memory_space<vmem>>, vector<1x256xf32>
    %37 = arith.mulf %21, %35 : vector<1x256xf32>
    %38 = arith.subf %36, %37 : vector<1x256xf32>
    %39 = vector.broadcast %35 : vector<1x256xf32> to vector<8x256xf32>
    %40 = arith.mulf %17, %39 : vector<8x256xf32>
    %41 = vector.broadcast %38 : vector<1x256xf32> to vector<8x256xf32>
    %42 = arith.addf %40, %41 : vector<8x256xf32>
    %cst_21 = arith.constant 0.000000e+00 : f32
    %43 = vector.broadcast %cst_21 : f32 to vector<8x256xf32>
    %44 = arith.cmpf ogt, %42, %43 : vector<8x256xf32>
    %cst_22 = arith.constant 2.000000e-01 : f32
    %45 = vector.broadcast %cst_22 : f32 to vector<8x256xf32>
    %46 = arith.mulf %45, %42 : vector<8x256xf32>
    %47 = arith.select %44, %42, %46 : vector<8x256xi1>, vector<8x256xf32>
    %48 = arith.truncf %47 : vector<8x256xf32> to vector<8x256xbf16>
    %c0_23 = arith.constant 0 : index
    %c0_24 = arith.constant 0 : index
    %49 = vector.load %arg8[%c0_23, %c0_24] : memref<256x512xbf16, #tpu.memory_space<vmem>>, vector<256x512xbf16>
    %cst_25 = arith.constant dense<0.000000e+00> : vector<8x512xf32>
    %50 = tpu.matmul %48, %49, %cst_25 {dimension_numbers = #tpu.dot_dimension_numbers<[1], [0], [0], [1], [0, 0, 1, 1], [], []>} : vector<8x256xbf16>, vector<256x512xbf16>, vector<8x512xf32> -> vector<8x512xf32>
    %c0_26 = arith.constant 0 : index
    %c0_27 = arith.constant 0 : index
    %51 = vector.load %arg9[%c0_26, %c0_27] : memref<1x512xf32, #tpu.memory_space<vmem>>, vector<1x512xf32>
    %52 = vector.broadcast %51 : vector<1x512xf32> to vector<8x512xf32>
    %53 = arith.addf %50, %52 : vector<8x512xf32>
    %cst_28 = arith.constant dense<0.000000e+00> : vector<512xf32>
    %54 = vector.multi_reduction <add>, %53, %cst_28 [0] : vector<8x512xf32> to vector<512xf32>
    %55 = vector.shape_cast %54 : vector<512xf32> to vector<1x512xf32>
    %cst_29 = arith.constant 8.000000e+00 : f32
    %56 = vector.broadcast %cst_29 : f32 to vector<1x512xf32>
    %57 = arith.divf %55, %56 : vector<1x512xf32>
    %58 = vector.broadcast %57 : vector<1x512xf32> to vector<8x512xf32>
    %59 = arith.subf %53, %58 : vector<8x512xf32>
    %60 = vector.broadcast %57 : vector<1x512xf32> to vector<8x512xf32>
    %61 = arith.subf %53, %60 : vector<8x512xf32>
    %62 = arith.mulf %59, %61 : vector<8x512xf32>
    %cst_30 = arith.constant dense<0.000000e+00> : vector<512xf32>
    %63 = vector.multi_reduction <add>, %62, %cst_30 [0] : vector<8x512xf32> to vector<512xf32>
    %64 = vector.shape_cast %63 : vector<512xf32> to vector<1x512xf32>
    %cst_31 = arith.constant 8.000000e+00 : f32
    %65 = vector.broadcast %cst_31 : f32 to vector<1x512xf32>
    %66 = arith.divf %64, %65 : vector<1x512xf32>
    %c0_32 = arith.constant 0 : index
    %c0_33 = arith.constant 0 : index
    %67 = vector.load %arg10[%c0_32, %c0_33] : memref<1x512xf32, #tpu.memory_space<vmem>>, vector<1x512xf32>
    %cst_34 = arith.constant 8.000000e-01 : f32
    %68 = vector.broadcast %cst_34 : f32 to vector<1x512xf32>
    %69 = arith.addf %66, %68 : vector<1x512xf32>
    %70 = math.rsqrt %69 : vector<1x512xf32>
    %71 = arith.mulf %67, %70 : vector<1x512xf32>
    %c0_35 = arith.constant 0 : index
    %c0_36 = arith.constant 0 : index
    %72 = vector.load %arg11[%c0_35, %c0_36] : memref<1x512xf32, #tpu.memory_space<vmem>>, vector<1x512xf32>
    %73 = arith.mulf %57, %71 : vector<1x512xf32>
    %74 = arith.subf %72, %73 : vector<1x512xf32>
    %75 = vector.broadcast %71 : vector<1x512xf32> to vector<8x512xf32>
    %76 = arith.mulf %53, %75 : vector<8x512xf32>
    %77 = vector.broadcast %74 : vector<1x512xf32> to vector<8x512xf32>
    %78 = arith.addf %76, %77 : vector<8x512xf32>
    %cst_37 = arith.constant 0.000000e+00 : f32
    %79 = vector.broadcast %cst_37 : f32 to vector<8x512xf32>
    %80 = arith.cmpf ogt, %78, %79 : vector<8x512xf32>
    %cst_38 = arith.constant 2.000000e-01 : f32
    %81 = vector.broadcast %cst_38 : f32 to vector<8x512xf32>
    %82 = arith.mulf %81, %78 : vector<8x512xf32>
    %83 = arith.select %80, %78, %82 : vector<8x512xi1>, vector<8x512xf32>
    %84 = arith.truncf %83 : vector<8x512xf32> to vector<8x512xbf16>
    %c0_39 = arith.constant 0 : index
    %c0_40 = arith.constant 0 : index
    %85 = vector.load %arg12[%c0_39, %c0_40] : memref<512x1024xbf16, #tpu.memory_space<vmem>>, vector<512x1024xbf16>
    %cst_41 = arith.constant dense<0.000000e+00> : vector<8x1024xf32>
    %86 = tpu.matmul %84, %85, %cst_41 {dimension_numbers = #tpu.dot_dimension_numbers<[1], [0], [0], [1], [0, 0, 1, 1], [], []>} : vector<8x512xbf16>, vector<512x1024xbf16>, vector<8x1024xf32> -> vector<8x1024xf32>
    %c0_42 = arith.constant 0 : index
    %c0_43 = arith.constant 0 : index
    %87 = vector.load %arg13[%c0_42, %c0_43] : memref<1x1024xf32, #tpu.memory_space<vmem>>, vector<1x1024xf32>
    %88 = vector.broadcast %87 : vector<1x1024xf32> to vector<8x1024xf32>
    %89 = arith.addf %86, %88 : vector<8x1024xf32>
    %cst_44 = arith.constant dense<0.000000e+00> : vector<1024xf32>
    %90 = vector.multi_reduction <add>, %89, %cst_44 [0] : vector<8x1024xf32> to vector<1024xf32>
    %91 = vector.shape_cast %90 : vector<1024xf32> to vector<1x1024xf32>
    %cst_45 = arith.constant 8.000000e+00 : f32
    %92 = vector.broadcast %cst_45 : f32 to vector<1x1024xf32>
    %93 = arith.divf %91, %92 : vector<1x1024xf32>
    %94 = vector.broadcast %93 : vector<1x1024xf32> to vector<8x1024xf32>
    %95 = arith.subf %89, %94 : vector<8x1024xf32>
    %96 = vector.broadcast %93 : vector<1x1024xf32> to vector<8x1024xf32>
    %97 = arith.subf %89, %96 : vector<8x1024xf32>
    %98 = arith.mulf %95, %97 : vector<8x1024xf32>
    %cst_46 = arith.constant dense<0.000000e+00> : vector<1024xf32>
    %99 = vector.multi_reduction <add>, %98, %cst_46 [0] : vector<8x1024xf32> to vector<1024xf32>
    %100 = vector.shape_cast %99 : vector<1024xf32> to vector<1x1024xf32>
    %cst_47 = arith.constant 8.000000e+00 : f32
    %101 = vector.broadcast %cst_47 : f32 to vector<1x1024xf32>
    %102 = arith.divf %100, %101 : vector<1x1024xf32>
    %c0_48 = arith.constant 0 : index
    %c0_49 = arith.constant 0 : index
    %103 = vector.load %arg14[%c0_48, %c0_49] : memref<1x1024xf32, #tpu.memory_space<vmem>>, vector<1x1024xf32>
    %cst_50 = arith.constant 8.000000e-01 : f32
    %104 = vector.broadcast %cst_50 : f32 to vector<1x1024xf32>
    %105 = arith.addf %102, %104 : vector<1x1024xf32>
    %106 = math.rsqrt %105 : vector<1x1024xf32>
    %107 = arith.mulf %103, %106 : vector<1x1024xf32>
    %c0_51 = arith.constant 0 : index
    %c0_52 = arith.constant 0 : index
    %108 = vector.load %arg15[%c0_51, %c0_52] : memref<1x1024xf32, #tpu.memory_space<vmem>>, vector<1x1024xf32>
    %109 = arith.mulf %93, %107 : vector<1x1024xf32>
    %110 = arith.subf %108, %109 : vector<1x1024xf32>
    %111 = vector.broadcast %107 : vector<1x1024xf32> to vector<8x1024xf32>
    %112 = arith.mulf %89, %111 : vector<8x1024xf32>
    %113 = vector.broadcast %110 : vector<1x1024xf32> to vector<8x1024xf32>
    %114 = arith.addf %112, %113 : vector<8x1024xf32>
    %cst_53 = arith.constant 0.000000e+00 : f32
    %115 = vector.broadcast %cst_53 : f32 to vector<8x1024xf32>
    %116 = arith.cmpf ogt, %114, %115 : vector<8x1024xf32>
    %cst_54 = arith.constant 2.000000e-01 : f32
    %117 = vector.broadcast %cst_54 : f32 to vector<8x1024xf32>
    %118 = arith.mulf %117, %114 : vector<8x1024xf32>
    %119 = arith.select %116, %114, %118 : vector<8x1024xi1>, vector<8x1024xf32>
    %120 = arith.truncf %119 : vector<8x1024xf32> to vector<8x1024xbf16>
    %c0_55 = arith.constant 0 : index
    %c0_56 = arith.constant 0 : index
    %121 = vector.load %arg16[%c0_55, %c0_56] : memref<1024x128xbf16, #tpu.memory_space<vmem>>, vector<1024x128xbf16>
    %cst_57 = arith.constant dense<0.000000e+00> : vector<8x128xf32>
    %122 = tpu.matmul %120, %121, %cst_57 {dimension_numbers = #tpu.dot_dimension_numbers<[1], [0], [0], [1], [0, 0, 1, 1], [], []>} : vector<8x1024xbf16>, vector<1024x128xbf16>, vector<8x128xf32> -> vector<8x128xf32>
    %c0_58 = arith.constant 0 : index
    %c0_59 = arith.constant 0 : index
    %123 = vector.load %arg17[%c0_58, %c0_59] : memref<1x128xf32, #tpu.memory_space<vmem>>, vector<1x128xf32>
    %124 = vector.broadcast %123 : vector<1x128xf32> to vector<8x128xf32>
    %125 = arith.addf %122, %124 : vector<8x128xf32>
    %126 = math.tanh %125 : vector<8x128xf32>
    %c0_60 = arith.constant 0 : index
    %c0_61 = arith.constant 0 : index
    %127 = vector.load %arg18[%c0_60, %c0_61] : memref<8x128xf32, #tpu.memory_space<vmem>>, vector<8x128xf32>
    tpu.vector_store %arg18[%c0_60, %c0_61], %126 {strides = array<i32>} : memref<8x128xf32, #tpu.memory_space<vmem>>, vector<8x128xf32>,
    return
  }
  func.func @transform_0(%arg0: i32) -> (i32, i32) {
    %c0_i32 = arith.constant 0 : i32
    %c0_i32_0 = arith.constant 0 : i32
    %c0_i32_1 = arith.constant 0 : i32
    return %c0_i32, %c0_i32_0 : i32, i32
  }
  func.func @transform_1(%arg0: i32) -> (i32, i32) {
    %c0_i32 = arith.constant 0 : i32
    %c0_i32_0 = arith.constant 0 : i32
    %c0_i32_1 = arith.constant 0 : i32
    return %c0_i32, %c0_i32_0 : i32, i32
  }
  func.func @transform_2(%arg0: i32) -> (i32, i32) {
    %c0_i32 = arith.constant 0 : i32
    %c0_i32_0 = arith.constant 0 : i32
    %c0_i32_1 = arith.constant 0 : i32
    return %c0_i32, %c0_i32_0 : i32, i32
  }
  func.func @transform_3(%arg0: i32) -> (i32, i32) {
    %c0_i32 = arith.constant 0 : i32
    %c0_i32_0 = arith.constant 0 : i32
    %c0_i32_1 = arith.constant 0 : i32
    return %c0_i32, %c0_i32_0 : i32, i32
  }
  func.func @transform_4(%arg0: i32) -> (i32, i32) {
    %c0_i32 = arith.constant 0 : i32
    %c0_i32_0 = arith.constant 0 : i32
    %c0_i32_1 = arith.constant 0 : i32
    return %c0_i32, %c0_i32_0 : i32, i32
  }
  func.func @transform_5(%arg0: i32) -> (i32, i32) {
    %c0_i32 = arith.constant 0 : i32
    %c0_i32_0 = arith.constant 0 : i32
    %c0_i32_1 = arith.constant 0 : i32
    return %c0_i32, %c0_i32_0 : i32, i32
  }
  func.func @transform_6(%arg0: i32) -> (i32, i32) {
    %c0_i32 = arith.constant 0 : i32
    %c0_i32_0 = arith.constant 0 : i32
    %c0_i32_1 = arith.constant 0 : i32
    return %c0_i32, %c0_i32_0 : i32, i32
  }
  func.func @transform_7(%arg0: i32) -> (i32, i32) {
    %c0_i32 = arith.constant 0 : i32
    %c0_i32_0 = arith.constant 0 : i32
    %c0_i32_1 = arith.constant 0 : i32
    return %c0_i32, %c0_i32_0 : i32, i32
  }
  func.func @transform_8(%arg0: i32) -> (i32, i32) {
    %c0_i32 = arith.constant 0 : i32
    %c0_i32_0 = arith.constant 0 : i32
    %c0_i32_1 = arith.constant 0 : i32
    return %c0_i32, %c0_i32_0 : i32, i32
  }
  func.func @transform_9(%arg0: i32) -> (i32, i32) {
    %c0_i32 = arith.constant 0 : i32
    %c0_i32_0 = arith.constant 0 : i32
    %c0_i32_1 = arith.constant 0 : i32
    return %c0_i32, %c0_i32_0 : i32, i32
  }
  func.func @transform_10(%arg0: i32) -> (i32, i32) {
    %c0_i32 = arith.constant 0 : i32
    %c0_i32_0 = arith.constant 0 : i32
    %c0_i32_1 = arith.constant 0 : i32
    return %c0_i32, %c0_i32_0 : i32, i32
  }
  func.func @transform_11(%arg0: i32) -> (i32, i32) {
    %c0_i32 = arith.constant 0 : i32
    %c0_i32_0 = arith.constant 0 : i32
    %c0_i32_1 = arith.constant 0 : i32
    return %c0_i32, %c0_i32_0 : i32, i32
  }
  func.func @transform_12(%arg0: i32) -> (i32, i32) {
    %c0_i32 = arith.constant 0 : i32
    %c0_i32_0 = arith.constant 0 : i32
    %c0_i32_1 = arith.constant 0 : i32
    return %c0_i32, %c0_i32_0 : i32, i32
  }
  func.func @transform_13(%arg0: i32) -> (i32, i32) {
    %c0_i32 = arith.constant 0 : i32
    %c0_i32_0 = arith.constant 0 : i32
    %c0_i32_1 = arith.constant 0 : i32
    return %c0_i32, %c0_i32_0 : i32, i32
  }
  func.func @transform_14(%arg0: i32) -> (i32, i32) {
    %c0_i32 = arith.constant 0 : i32
    %c0_i32_0 = arith.constant 0 : i32
    %c0_i32_1 = arith.constant 0 : i32
    return %c0_i32, %c0_i32_0 : i32, i32
  }
  func.func @transform_15(%arg0: i32) -> (i32, i32) {
    %c0_i32 = arith.constant 0 : i32
    %c0_i32_0 = arith.constant 0 : i32
    return %c0_i32, %arg0 : i32, i32
  }
  func.func @transform_16(%arg0: i32) -> (i32, i32) {
    %c0_i32 = arith.constant 0 : i32
    %c0_i32_0 = arith.constant 0 : i32
    return %c0_i32, %arg0 : i32, i32
  }
  func.func @transform_17(%arg0: i32) -> (i32, i32) {
    %c0_i32 = arith.constant 0 : i32
    %c0_i32_0 = arith.constant 0 : i32
    return %c0_i32, %arg0 : i32, i32
  }
}

</mosaic_0001>

<llo_original>
// kernel: _lambda_.1
$region0: #{_lambda_.1}
  #allocation0 [shape = 'u32[]', space=smem, size = 0x4, offset = 0x4, fixed_abs, tag = 'smem constant byte address 0x4 - core index']
  #allocation1 [shape = 'u32[144,128]{1,0:T(1,128)}', space=vmem, size = 0x12000, scoped, tag = 'internal scratch']
  %s0 = inlined_call_operand.hbm [shape: f32[8,32], index: 0, kind: input, shape index: {}]
  %s1 = inlined_call_operand.vmem [shape: bf16[32,128], index: 1, kind: input, shape index: {}]
  %s2 = inlined_call_operand.vmem [shape: f32[1,128], index: 2, kind: input, shape index: {}]
  %s3 = inlined_call_operand.hbm [shape: bf16[128,256], index: 3, kind: input, shape index: {}]
  %s4 = inlined_call_operand.hbm [shape: f32[1,256], index: 4, kind: input, shape index: {}]
  %s5 = inlined_call_operand.hbm [shape: f32[1,256], index: 5, kind: input, shape index: {}]
  %s6 = inlined_call_operand.hbm [shape: f32[1,256], index: 6, kind: input, shape index: {}]
  %s7 = inlined_call_operand.hbm [shape: bf16[256,512], index: 7, kind: input, shape index: {}]
  %s8 = inlined_call_operand.hbm [shape: f32[1,512], index: 8, kind: input, shape index: {}]
  %s9 = inlined_call_operand.vmem [shape: f32[1,512], index: 9, kind: input, shape index: {}]
  %s10 = inlined_call_operand.hbm [shape: f32[1,512], index: 10, kind: input, shape index: {}]
  %s11 = inlined_call_operand.hbm [shape: bf16[512,1024], index: 11, kind: input, shape index: {}]
  %s12 = inlined_call_operand.vmem [shape: f32[1,1024], index: 12, kind: input, shape index: {}]
  %s13 = inlined_call_operand.vmem [shape: f32[1,1024], index: 13, kind: input, shape index: {}]
  %s14 = inlined_call_operand.hbm [shape: f32[1,1024], index: 14, kind: input, shape index: {}]
  %s15 = inlined_call_operand.hbm [shape: bf16[1024,256], index: 15, kind: input, shape index: {}]
  %s16 = inlined_call_operand.hbm [shape: f32[1,256], index: 16, kind: input, shape index: {}]
  %s17 = inlined_call_operand.vmem [shape: f32[8,256], index: 17, kind: output, shape index: {}]
  %s18 = sld [smem:[#allocation0]]
  $region149: #{_lambda_.1} parent=0
    _
  %s20 = ssub.s32 1, %s18
  %s21 = scalar_select 0, %s20, %s18
  $region1: #{_lambda_.1} parent=0
    #allocation2 [shape = 'u8[4096]{0}', space=vmem, size = 0x1000, scoped, tag = 'input window, operand 0, single buffered']
    #allocation3 [shape = 's32[2]{0}', space=sflag, size = 0x8, scoped, tag = 'scoped memory for _lambda_.1']
    #allocation4 [shape = 'u8[65536]{0}', space=vmem, size = 0x10000, scoped, tag = 'input window, operand 3, single buffered']
    #allocation5 [shape = 's32[1]{0}', space=sflag, size = 0x4, scoped, tag = 'scoped memory for _lambda_.1']
    #allocation6 [shape = 'u8[1024]{0}', space=vmem, size = 0x400, scoped, tag = 'input window, operand 4, single buffered']
    #allocation7 [shape = 'u8[1024]{0}', space=vmem, size = 0x400, scoped, tag = 'input window, operand 5, single buffered']
    #allocation8 [shape = 's32[1]{0}', space=sflag, size = 0x4, scoped, tag = 'scoped memory for _lambda_.1']
    #allocation9 [shape = 'u8[1024]{0}', space=vmem, size = 0x400, scoped, tag = 'input window, operand 6, single buffered']
    #allocation10 [shape = 'u8[262144]{0}', space=vmem, size = 0x40000, scoped, tag = 'input window, operand 7, single buffered']
    #allocation11 [shape = 's32[1]{0}', space=sflag, size = 0x4, scoped, tag = 'scoped memory for _lambda_.1']
    #allocation12 [shape = 'u8[2048]{0}', space=vmem, size = 0x800, scoped, tag = 'input window, operand 8, single buffered']
    #allocation13 [shape = 'u8[2048]{0}', space=vmem, size = 0x800, scoped, tag = 'input window, operand 10, single buffered']
    #allocation14 [shape = 's32[1]{0}', space=sflag, size = 0x4, scoped, tag = 'scoped memory for _lambda_.1']
    #allocation15 [shape = 'u8[1048576]{0}', space=vmem, size = 0x100000, scoped, tag = 'input window, operand 11, single buffered']
    #allocation16 [shape = 'u8[4096]{0}', space=vmem, size = 0x1000, scoped, tag = 'input window, operand 14, single buffered']
    #allocation17 [shape = 's32[1]{0}', space=sflag, size = 0x4, scoped, tag = 'scoped memory for _lambda_.1']
    #allocation18 [shape = 'u8[524288]{0}', space=vmem, size = 0x80000, scoped, tag = 'input window, operand 15']
    #allocation19 [shape = 'u8[1024]{0}', space=vmem, size = 0x400, scoped, tag = 'input window, operand 16']
    %22 = vsyncpa [#allocation3], 0
    %23 = vsyncpa [#allocation5], 0
    %24 = vsyncpa [#allocation8], 0
    %25 = vsyncpa [#allocation11], 0
    %26 = vsyncpa [#allocation14], 0
    %27 = vsyncpa [#allocation17], 0
    loop: start=0, step=1, limit=4
    $region2: #{_lambda_.1} parent=1 // loop_pre_header
      _
    $region3: #{_lambda_.1} parent=1 // loop_header
      %s29 = sphi 0, %s33
      %p30 = scmp.ge.s32.totalorder %s29, 4
      %s37 = sphi 0, %s37
      %s39 = sphi 0, %s37
      %s40 = sphi 0, %s39
      %s54 = sphi 0, %s40
      %s58 = sphi 0, %s58
      %s60 = sphi 0, %s58
      %s61 = sphi 0, %s60
      %s75 = sphi 0, %s61
      %s79 = sphi 0, %s79
      %s81 = sphi 0, %s79
      %s82 = sphi 0, %s81
      %s96 = sphi 0, %s82
      %s100 = sphi 0, %s100
      %s102 = sphi 0, %s100
      %s103 = sphi 0, %s102
      %s117 = sphi 0, %s103
      %s121 = sphi 0, %s121
      %s123 = sphi 0, %s121
      %s124 = sphi 0, %s123
      %s138 = sphi 0, %s124
      %s142 = sphi 0, %s142
      %s144 = sphi 0, %s142
      %s145 = sphi 0, %s144
      %s159 = sphi 0, %s145
      %s163 = sphi 0, %s163
      %s165 = sphi 0, %s163
      %s166 = sphi 0, %s165
      %s180 = sphi 0, %s166
      %s184 = sphi 0, %s184
      %s186 = sphi 0, %s184
      %s187 = sphi 0, %s186
      %s201 = sphi 0, %s187
      %s205 = sphi 0, %s205
      %s207 = sphi 0, %s205
      %s208 = sphi 0, %s207
      %s222 = sphi 0, %s208
      %s226 = sphi 0, %s226
      %s228 = sphi 0, %s226
      %s229 = sphi 0, %s228
      %s243 = sphi 0, %s229
      %s247 = sphi 0, %s247
      %s249 = sphi 0, %s247
      %s250 = sphi 0, %s249
      %s264 = sphi 0, %s250
      %s268 = sphi 0, %s268
      %s270 = sphi 0, %s268
      %s271 = sphi 0, %s270
      %s285 = sphi 0, %s271
      %s289 = sphi 0, %s289
      %s291 = sphi 0, %s289
      %s292 = sphi 0, %s291
      %s306 = sphi 0, %s292
      %s310 = sphi 0, %s310
      %s312 = sphi 0, %s310
      %s313 = sphi 0, %s312
      %s327 = sphi 0, %s313
      %s331 = sphi 0, %s331
      %s333 = sphi 0, %s331
      %s334 = sphi 0, %s333
      %s348 = sphi 0, %s334
      %s354 = sphi 0, %s356
      %s357 = sphi 0, %s354
      %s358 = sphi 0, %s357
      %s374 = sphi 0, %s358
      %s380 = sphi 0, %s382
      %s383 = sphi 0, %s380
      %s384 = sphi 0, %s383
      %s400 = sphi 0, %s384
      %s406 = sphi 0, %s408
      %s409 = sphi 0, %s406
      %s410 = sphi 0, %s409
      %s426 = sphi 0, %s410
    $region4: #{_lambda_.1} parent=1 // loop_header_branch
      %32 = sbr.rel (%p30) target = $region8
    $region5: #{_lambda_.1} parent=1 // loop_body
      %s34 = ssub.s32 %s29, 1
      %s35 = ssub.s32 %s29, 2
      %s36 = sadd.s32 %s29, 1
      %s38 = sadd.s32 %s37, 1
      %p41 = scmp.eq.s32.totalorder %s29, 1
      %p42 = scmp.ne.s32.totalorder %s37, %s39
      %p43 = scmp.eq.s32.totalorder %s29, 0
      %p44 = por %p42, %p43
      %p45 = scmp.ne.s32.totalorder %s37, %s39
      %p46 = scmp.eq.s32.totalorder %s34, 1
      %p47 = por %p45, %p46
      %p48 = scmp.ne.s32.totalorder %s39, %s40
      %p49 = scmp.eq.s32.totalorder %s34, 0
      %p50 = por %p48, %p49
      %p51 = scmp.ne.s32.totalorder %s39, %s40
      %p52 = scmp.eq.s32.totalorder %s35, 1
      %p53 = por %p51, %p52
      %p55 = scmp.ne.s32.totalorder %s40, %s54
      %p56 = scmp.eq.s32.totalorder %s35, 0
      %p57 = por %p55, %p56
      %s59 = sadd.s32 %s58, 1
      %p62 = scmp.eq.s32.totalorder %s29, 1
      %p63 = scmp.ne.s32.totalorder %s58, %s60
      %p64 = scmp.eq.s32.totalorder %s29, 0
      %p65 = por %p63, %p64
      %p66 = scmp.ne.s32.totalorder %s58, %s60
      %p67 = scmp.eq.s32.totalorder %s34, 1
      %p68 = por %p66, %p67
      %p69 = scmp.ne.s32.totalorder %s60, %s61
      %p70 = scmp.eq.s32.totalorder %s34, 0
      %p71 = por %p69, %p70
      %p72 = scmp.ne.s32.totalorder %s60, %s61
      %p73 = scmp.eq.s32.totalorder %s35, 1
      %p74 = por %p72, %p73
      %p76 = scmp.ne.s32.totalorder %s61, %s75
      %p77 = scmp.eq.s32.totalorder %s35, 0
      %p78 = por %p76, %p77
      %s80 = sadd.s32 %s79, 1
      %p83 = scmp.eq.s32.totalorder %s29, 1
      %p84 = scmp.ne.s32.totalorder %s79, %s81
      %p85 = scmp.eq.s32.totalorder %s29, 0
      %p86 = por %p84, %p85
      %p87 = scmp.ne.s32.totalorder %s79, %s81
      %p88 = scmp.eq.s32.totalorder %s34, 1
      %p89 = por %p87, %p88
      %p90 = scmp.ne.s32.totalorder %s81, %s82
      %p91 = scmp.eq.s32.totalorder %s34, 0
      %p92 = por %p90, %p91
      %p93 = scmp.ne.s32.totalorder %s81, %s82
      %p94 = scmp.eq.s32.totalorder %s35, 1
      %p95 = por %p93, %p94
      %p97 = scmp.ne.s32.totalorder %s82, %s96
      %p98 = scmp.eq.s32.totalorder %s35, 0
      %p99 = por %p97, %p98
      %s101 = sadd.s32 %s100, 1
      %p104 = scmp.eq.s32.totalorder %s29, 1
      %p105 = scmp.ne.s32.totalorder %s100, %s102
      %p106 = scmp.eq.s32.totalorder %s29, 0
      %p107 = por %p105, %p106
      %p108 = scmp.ne.s32.totalorder %s100, %s102
      %p109 = scmp.eq.s32.totalorder %s34, 1
      %p110 = por %p108, %p109
      %p111 = scmp.ne.s32.totalorder %s102, %s103
      %p112 = scmp.eq.s32.totalorder %s34, 0
      %p113 = por %p111, %p112
      %p114 = scmp.ne.s32.totalorder %s102, %s103
      %p115 = scmp.eq.s32.totalorder %s35, 1
      %p116 = por %p114, %p115
      %p118 = scmp.ne.s32.totalorder %s103, %s117
      %p119 = scmp.eq.s32.totalorder %s35, 0
      %p120 = por %p118, %p119
      %s122 = sadd.s32 %s121, 1
      %p125 = scmp.eq.s32.totalorder %s29, 1
      %p126 = scmp.ne.s32.totalorder %s121, %s123
      %p127 = scmp.eq.s32.totalorder %s29, 0
      %p128 = por %p126, %p127
      %p129 = scmp.ne.s32.totalorder %s121, %s123
      %p130 = scmp.eq.s32.totalorder %s34, 1
      %p131 = por %p129, %p130
      %p132 = scmp.ne.s32.totalorder %s123, %s124
      %p133 = scmp.eq.s32.totalorder %s34, 0
      %p134 = por %p132, %p133
      %p135 = scmp.ne.s32.totalorder %s123, %s124
      %p136 = scmp.eq.s32.totalorder %s35, 1
      %p137 = por %p135, %p136
      %p139 = scmp.ne.s32.totalorder %s124, %s138
      %p140 = scmp.eq.s32.totalorder %s35, 0
      %p141 = por %p139, %p140
      %s143 = sadd.s32 %s142, 1
      %p146 = scmp.eq.s32.totalorder %s29, 1
      %p147 = scmp.ne.s32.totalorder %s142, %s144
      %p148 = scmp.eq.s32.totalorder %s29, 0
      %p149 = por %p147, %p148
      %p150 = scmp.ne.s32.totalorder %s142, %s144
      %p151 = scmp.eq.s32.totalorder %s34, 1
      %p152 = por %p150, %p151
      %p153 = scmp.ne.s32.totalorder %s144, %s145
      %p154 = scmp.eq.s32.totalorder %s34, 0
      %p155 = por %p153, %p154
      %p156 = scmp.ne.s32.totalorder %s144, %s145
      %p157 = scmp.eq.s32.totalorder %s35, 1
      %p158 = por %p156, %p157
      %p160 = scmp.ne.s32.totalorder %s145, %s159
      %p161 = scmp.eq.s32.totalorder %s35, 0
      %p162 = por %p160, %p161
      %s164 = sadd.s32 %s163, 1
      %p167 = scmp.eq.s32.totalorder %s29, 1
      %p168 = scmp.ne.s32.totalorder %s163, %s165
      %p169 = scmp.eq.s32.totalorder %s29, 0
      %p170 = por %p168, %p169
      %p171 = scmp.ne.s32.totalorder %s163, %s165
      %p172 = scmp.eq.s32.totalorder %s34, 1
      %p173 = por %p171, %p172
      %p174 = scmp.ne.s32.totalorder %s165, %s166
      %p175 = scmp.eq.s32.totalorder %s34, 0
      %p176 = por %p174, %p175
      %p177 = scmp.ne.s32.totalorder %s165, %s166
      %p178 = scmp.eq.s32.totalorder %s35, 1
      %p179 = por %p177, %p178
      %p181 = scmp.ne.s32.totalorder %s166, %s180
      %p182 = scmp.eq.s32.totalorder %s35, 0
      %p183 = por %p181, %p182
      %s185 = sadd.s32 %s184, 1
      %p188 = scmp.eq.s32.totalorder %s29, 1
      %p189 = scmp.ne.s32.totalorder %s184, %s186
      %p190 = scmp.eq.s32.totalorder %s29, 0
      %p191 = por %p189, %p190
      %p192 = scmp.ne.s32.totalorder %s184, %s186
      %p193 = scmp.eq.s32.totalorder %s34, 1
      %p194 = por %p192, %p193
      %p195 = scmp.ne.s32.totalorder %s186, %s187
      %p196 = scmp.eq.s32.totalorder %s34, 0
      %p197 = por %p195, %p196
      %p198 = scmp.ne.s32.totalorder %s186, %s187
      %p199 = scmp.eq.s32.totalorder %s35, 1
      %p200 = por %p198, %p199
      %p202 = scmp.ne.s32.totalorder %s187, %s201
      %p203 = scmp.eq.s32.totalorder %s35, 0
      %p204 = por %p202, %p203
      %s206 = sadd.s32 %s205, 1
      %p209 = scmp.eq.s32.totalorder %s29, 1
      %p210 = scmp.ne.s32.totalorder %s205, %s207
      %p211 = scmp.eq.s32.totalorder %s29, 0
      %p212 = por %p210, %p211
      %p213 = scmp.ne.s32.totalorder %s205, %s207
      %p214 = scmp.eq.s32.totalorder %s34, 1
      %p215 = por %p213, %p214
      %p216 = scmp.ne.s32.totalorder %s207, %s208
      %p217 = scmp.eq.s32.totalorder %s34, 0
      %p218 = por %p216, %p217
      %p219 = scmp.ne.s32.totalorder %s207, %s208
      %p220 = scmp.eq.s32.totalorder %s35, 1
      %p221 = por %p219, %p220
      %p223 = scmp.ne.s32.totalorder %s208, %s222
      %p224 = scmp.eq.s32.totalorder %s35, 0
      %p225 = por %p223, %p224
      %s227 = sadd.s32 %s226, 1
      %p230 = scmp.eq.s32.totalorder %s29, 1
      %p231 = scmp.ne.s32.totalorder %s226, %s228
      %p232 = scmp.eq.s32.totalorder %s29, 0
      %p233 = por %p231, %p232
      %p234 = scmp.ne.s32.totalorder %s226, %s228
      %p235 = scmp.eq.s32.totalorder %s34, 1
      %p236 = por %p234, %p235
      %p237 = scmp.ne.s32.totalorder %s228, %s229
      %p238 = scmp.eq.s32.totalorder %s34, 0
      %p239 = por %p237, %p238
      %p240 = scmp.ne.s32.totalorder %s228, %s229
      %p241 = scmp.eq.s32.totalorder %s35, 1
      %p242 = por %p240, %p241
      %p244 = scmp.ne.s32.totalorder %s229, %s243
      %p245 = scmp.eq.s32.totalorder %s35, 0
      %p246 = por %p244, %p245
      %s248 = sadd.s32 %s247, 1
      %p251 = scmp.eq.s32.totalorder %s29, 1
      %p252 = scmp.ne.s32.totalorder %s247, %s249
      %p253 = scmp.eq.s32.totalorder %s29, 0
      %p254 = por %p252, %p253
      %p255 = scmp.ne.s32.totalorder %s247, %s249
      %p256 = scmp.eq.s32.totalorder %s34, 1
      %p257 = por %p255, %p256
      %p258 = scmp.ne.s32.totalorder %s249, %s250
      %p259 = scmp.eq.s32.totalorder %s34, 0
      %p260 = por %p258, %p259
      %p261 = scmp.ne.s32.totalorder %s249, %s250
      %p262 = scmp.eq.s32.totalorder %s35, 1
      %p263 = por %p261, %p262
      %p265 = scmp.ne.s32.totalorder %s250, %s264
      %p266 = scmp.eq.s32.totalorder %s35, 0
      %p267 = por %p265, %p266
      %s269 = sadd.s32 %s268, 1
      %p272 = scmp.eq.s32.totalorder %s29, 1
      %p273 = scmp.ne.s32.totalorder %s268, %s270
      %p274 = scmp.eq.s32.totalorder %s29, 0
      %p275 = por %p273, %p274
      %p276 = scmp.ne.s32.totalorder %s268, %s270
      %p277 = scmp.eq.s32.totalorder %s34, 1
      %p278 = por %p276, %p277
      %p279 = scmp.ne.s32.totalorder %s270, %s271
      %p280 = scmp.eq.s32.totalorder %s34, 0
      %p281 = por %p279, %p280
      %p282 = scmp.ne.s32.totalorder %s270, %s271
      %p283 = scmp.eq.s32.totalorder %s35, 1
      %p284 = por %p282, %p283
      %p286 = scmp.ne.s32.totalorder %s271, %s285
      %p287 = scmp.eq.s32.totalorder %s35, 0
      %p288 = por %p286, %p287
      %s290 = sadd.s32 %s289, 1
      %p293 = scmp.eq.s32.totalorder %s29, 1
      %p294 = scmp.ne.s32.totalorder %s289, %s291
      %p295 = scmp.eq.s32.totalorder %s29, 0
      %p296 = por %p294, %p295
      %p297 = scmp.ne.s32.totalorder %s289, %s291
      %p298 = scmp.eq.s32.totalorder %s34, 1
      %p299 = por %p297, %p298
      %p300 = scmp.ne.s32.totalorder %s291, %s292
      %p301 = scmp.eq.s32.totalorder %s34, 0
      %p302 = por %p300, %p301
      %p303 = scmp.ne.s32.totalorder %s291, %s292
      %p304 = scmp.eq.s32.totalorder %s35, 1
      %p305 = por %p303, %p304
      %p307 = scmp.ne.s32.totalorder %s292, %s306
      %p308 = scmp.eq.s32.totalorder %s35, 0
      %p309 = por %p307, %p308
      %s311 = sadd.s32 %s310, 1
      %p314 = scmp.eq.s32.totalorder %s29, 1
      %p315 = scmp.ne.s32.totalorder %s310, %s312
      %p316 = scmp.eq.s32.totalorder %s29, 0
      %p317 = por %p315, %p316
      %p318 = scmp.ne.s32.totalorder %s310, %s312
      %p319 = scmp.eq.s32.totalorder %s34, 1
      %p320 = por %p318, %p319
      %p321 = scmp.ne.s32.totalorder %s312, %s313
      %p322 = scmp.eq.s32.totalorder %s34, 0
      %p323 = por %p321, %p322
      %p324 = scmp.ne.s32.totalorder %s312, %s313
      %p325 = scmp.eq.s32.totalorder %s35, 1
      %p326 = por %p324, %p325
      %p328 = scmp.ne.s32.totalorder %s313, %s327
      %p329 = scmp.eq.s32.totalorder %s35, 0
      %p330 = por %p328, %p329
      %s332 = sadd.s32 %s331, 1
      %p335 = scmp.eq.s32.totalorder %s29, 1
      %p336 = scmp.ne.s32.totalorder %s331, %s333
      %p337 = scmp.eq.s32.totalorder %s29, 0
      %p338 = por %p336, %p337
      %p339 = scmp.ne.s32.totalorder %s331, %s333
      %p340 = scmp.eq.s32.totalorder %s34, 1
      %p341 = por %p339, %p340
      %p342 = scmp.ne.s32.totalorder %s333, %s334
      %p343 = scmp.eq.s32.totalorder %s34, 0
      %p344 = por %p342, %p343
      %p345 = scmp.ne.s32.totalorder %s333, %s334
      %p346 = scmp.eq.s32.totalorder %s35, 1
      %p347 = por %p345, %p346
      %p349 = scmp.ne.s32.totalorder %s334, %s348
      %p350 = scmp.eq.s32.totalorder %s35, 0
      %p351 = por %p349, %p350
      %s352 = ssub.s32 %s29, %s36
      %p353 = scmp.eq.s32.totalorder %s352, 0
      %s355 = sadd.s32 %s354, 1
      %s356 = scalar_select %p353, %s354, %s355
      %p359 = pneg %p353
      %p360 = scmp.eq.s32.totalorder %s29, 1
      %p361 = por %p359, %p360
      %p362 = scmp.ne.s32.totalorder %s354, %s357
      %p363 = scmp.eq.s32.totalorder %s29, 0
      %p364 = por %p362, %p363
      %p365 = scmp.ne.s32.totalorder %s354, %s357
      %p366 = scmp.eq.s32.totalorder %s34, 1
      %p367 = por %p365, %p366
      %p368 = scmp.ne.s32.totalorder %s357, %s358
      %p369 = scmp.eq.s32.totalorder %s34, 0
      %p370 = por %p368, %p369
      %p371 = scmp.ne.s32.totalorder %s357, %s358
      %p372 = scmp.eq.s32.totalorder %s35, 1
      %p373 = por %p371, %p372
      %p375 = scmp.ne.s32.totalorder %s358, %s374
      %p376 = scmp.eq.s32.totalorder %s35, 0
      %p377 = por %p375, %p376
      %s378 = ssub.s32 %s29, %s36
      %p379 = scmp.eq.s32.totalorder %s378, 0
      %s381 = sadd.s32 %s380, 1
      %s382 = scalar_select %p379, %s380, %s381
      %p385 = pneg %p379
      %p386 = scmp.eq.s32.totalorder %s29, 1
      %p387 = por %p385, %p386
      %p388 = scmp.ne.s32.totalorder %s380, %s383
      %p389 = scmp.eq.s32.totalorder %s29, 0
      %p390 = por %p388, %p389
      %p391 = scmp.ne.s32.totalorder %s380, %s383
      %p392 = scmp.eq.s32.totalorder %s34, 1
      %p393 = por %p391, %p392
      %p394 = scmp.ne.s32.totalorder %s383, %s384
      %p395 = scmp.eq.s32.totalorder %s34, 0
      %p396 = por %p394, %p395
      %p397 = scmp.ne.s32.totalorder %s383, %s384
      %p398 = scmp.eq.s32.totalorder %s35, 1
      %p399 = por %p397, %p398
      %p401 = scmp.ne.s32.totalorder %s384, %s400
      %p402 = scmp.eq.s32.totalorder %s35, 0
      %p403 = por %p401, %p402
      %s404 = ssub.s32 %s29, %s36
      %p405 = scmp.eq.s32.totalorder %s404, 0
      %s407 = sadd.s32 %s406, 1
      %s408 = scalar_select %p405, %s406, %s407
      %p411 = pneg %p405
      %p412 = scmp.eq.s32.totalorder %s29, 1
      %p413 = por %p411, %p412
      %p414 = scmp.ne.s32.totalorder %s406, %s409
      %p415 = scmp.eq.s32.totalorder %s29, 0
      %p416 = por %p414, %p415
      %p417 = scmp.ne.s32.totalorder %s406, %s409
      %p418 = scmp.eq.s32.totalorder %s34, 1
      %p419 = por %p417, %p418
      %p420 = scmp.ne.s32.totalorder %s409, %s410
      %p421 = scmp.eq.s32.totalorder %s34, 0
      %p422 = por %p420, %p421
      %p423 = scmp.ne.s32.totalorder %s409, %s410
      %p424 = scmp.eq.s32.totalorder %s35, 1
      %p425 = por %p423, %p424
      %p427 = scmp.ne.s32.totalorder %s410, %s426
      %p428 = scmp.eq.s32.totalorder %s35, 0
      %p429 = por %p427, %p428
      %p430 = scmp.le.s32.totalorder 1, %s29
      %p431 = scmp.lt.s32.totalorder %s29, 3
      %p432 = pnand %p430, %p431
      %p433 = pneg %p432
      // Predicated region
      $region9: #{_lambda_.1} parent=5 // pred_check
        _
      $region10: #{_lambda_.1} parent=5 // pred_check_branch
        %435 = sbr.rel (%p432) target = $region12
      $region11: #{_lambda_.1} parent=5 // pred_region
        %s436 = ssub.s32 %s29, 1
        // Predicated region
        $region13: #{_lambda_.1} parent=11 // pred_check
          %p437 = pneg %p50
        $region14: #{_lambda_.1} parent=11 // pred_check_branch
          %439 = sbr.rel (%p437) target = $region16
        $region15: #{_lambda_.1} parent=11 // pred_region
          %s441 = ssub.s32 128, 128
          %442 = vsyncadd [#allocation3], %s441
          %s444 = sshll.u32 [#allocation2], 4
          %s445 = int_to_ptr.vmem [resolvable:$true] %s444
          %447 = dma.hbm_to_vmem [thread:$0]  %s0, 128, %s445, [#allocation3]
        $region16: #{_lambda_.1} parent=11 // pred_fallthru
          _
        // Predicated region
        $region17: #{_lambda_.1} parent=11 // pred_check
          %p448 = pneg %p71
        $region18: #{_lambda_.1} parent=11 // pred_check_branch
          %450 = sbr.rel (%p448) target = $region20
        $region19: #{_lambda_.1} parent=11 // pred_region
          _
        $region20: #{_lambda_.1} parent=11 // pred_fallthru
          _
        // Predicated region
        $region21: #{_lambda_.1} parent=11 // pred_check
          %p451 = pneg %p92
        $region22: #{_lambda_.1} parent=11 // pred_check_branch
          %453 = sbr.rel (%p451) target = $region24
        $region23: #{_lambda_.1} parent=11 // pred_region
          _
        $region24: #{_lambda_.1} parent=11 // pred_fallthru
          _
        // Predicated region
        $region25: #{_lambda_.1} parent=11 // pred_check
          %p454 = pneg %p113
        $region26: #{_lambda_.1} parent=11 // pred_check_branch
          %456 = sbr.rel (%p454) target = $region28
        $region27: #{_lambda_.1} parent=11 // pred_region
          %s458 = ssub.s32 2048, 2048
          %459 = vsyncadd [#allocation5], %s458
          %s460 = sshll.u32 [#allocation4], 4
          %s461 = int_to_ptr.vmem [resolvable:$true] %s460
          %466 = dma.hbm_to_vmem [thread:$0]  %s3, 2048, %s461, [#allocation5], 128, 128, 8
        $region28: #{_lambda_.1} parent=11 // pred_fallthru
          _
        // Predicated region
        $region29: #{_lambda_.1} parent=11 // pred_check
          %p467 = pneg %p134
        $region30: #{_lambda_.1} parent=11 // pred_check_branch
          %469 = sbr.rel (%p467) target = $region32
        $region31: #{_lambda_.1} parent=11 // pred_region
          %s471 = ssub.s32 32, 32
          %472 = vsyncadd [#allocation5], %s471
          %s474 = sshll.u32 [#allocation6], 4
          %s475 = int_to_ptr.vmem [resolvable:$true] %s474
          %477 = dma.hbm_to_vmem [thread:$0]  %s4, 32, %s475, [#allocation5]
        $region32: #{_lambda_.1} parent=11 // pred_fallthru
          _
        // Predicated region
        $region33: #{_lambda_.1} parent=11 // pred_check
          %p478 = pneg %p155
        $region34: #{_lambda_.1} parent=11 // pred_check_branch
          %480 = sbr.rel (%p478) target = $region36
        $region35: #{_lambda_.1} parent=11 // pred_region
          %s482 = ssub.s32 32, 32
          %483 = vsyncadd [#allocation8], %s482
          %s485 = sshll.u32 [#allocation7], 4
          %s486 = int_to_ptr.vmem [resolvable:$true] %s485
          %488 = dma.hbm_to_vmem [thread:$0]  %s5, 32, %s486, [#allocation8]
        $region36: #{_lambda_.1} parent=11 // pred_fallthru
          _
        // Predicated region
        $region37: #{_lambda_.1} parent=11 // pred_check
          %p489 = pneg %p176
        $region38: #{_lambda_.1} parent=11 // pred_check_branch
          %491 = sbr.rel (%p489) target = $region40
        $region39: #{_lambda_.1} parent=11 // pred_region
          %s493 = ssub.s32 32, 32
          %494 = vsyncadd [#allocation8], %s493
          %s496 = sshll.u32 [#allocation9], 4
          %s497 = int_to_ptr.vmem [resolvable:$true] %s496
          %499 = dma.hbm_to_vmem [thread:$0]  %s6, 32, %s497, [#allocation8]
        $region40: #{_lambda_.1} parent=11 // pred_fallthru
          _
        // Predicated region
        $region41: #{_lambda_.1} parent=11 // pred_check
          %p500 = pneg %p197
        $region42: #{_lambda_.1} parent=11 // pred_check_branch
          %502 = sbr.rel (%p500) target = $region44
        $region43: #{_lambda_.1} parent=11 // pred_region
          %s504 = ssub.s32 8192, 8192
          %505 = vsyncadd [#allocation11], %s504
          %s506 = sshll.u32 [#allocation10], 4
          %s507 = int_to_ptr.vmem [resolvable:$true] %s506
          %512 = dma.hbm_to_vmem [thread:$0]  %s7, 8192, %s507, [#allocation11], 256, 256, 16
        $region44: #{_lambda_.1} parent=11 // pred_fallthru
          _
        // Predicated region
        $region45: #{_lambda_.1} parent=11 // pred_check
          %p513 = pneg %p218
        $region46: #{_lambda_.1} parent=11 // pred_check_branch
          %515 = sbr.rel (%p513) target = $region48
        $region47: #{_lambda_.1} parent=11 // pred_region
          %s517 = ssub.s32 64, 64
          %518 = vsyncadd [#allocation11], %s517
          %s520 = sshll.u32 [#allocation12], 4
          %s521 = int_to_ptr.vmem [resolvable:$true] %s520
          %523 = dma.hbm_to_vmem [thread:$0]  %s8, 64, %s521, [#allocation11]
        $region48: #{_lambda_.1} parent=11 // pred_fallthru
          _
        // Predicated region
        $region49: #{_lambda_.1} parent=11 // pred_check
          %p524 = pneg %p239
        $region50: #{_lambda_.1} parent=11 // pred_check_branch
          %526 = sbr.rel (%p524) target = $region52
        $region51: #{_lambda_.1} parent=11 // pred_region
          _
        $region52: #{_lambda_.1} parent=11 // pred_fallthru
          _
        // Predicated region
        $region53: #{_lambda_.1} parent=11 // pred_check
          %p527 = pneg %p260
        $region54: #{_lambda_.1} parent=11 // pred_check_branch
          %529 = sbr.rel (%p527) target = $region56
        $region55: #{_lambda_.1} parent=11 // pred_region
          %s531 = ssub.s32 64, 64
          %532 = vsyncadd [#allocation14], %s531
          %s534 = sshll.u32 [#allocation13], 4
          %s535 = int_to_ptr.vmem [resolvable:$true] %s534
          %537 = dma.hbm_to_vmem [thread:$0]  %s10, 64, %s535, [#allocation14]
        $region56: #{_lambda_.1} parent=11 // pred_fallthru
          _
        // Predicated region
        $region57: #{_lambda_.1} parent=11 // pred_check
          %p538 = pneg %p281
        $region58: #{_lambda_.1} parent=11 // pred_check_branch
          %540 = sbr.rel (%p538) target = $region60
        $region59: #{_lambda_.1} parent=11 // pred_region
          %s542 = ssub.s32 32768, 32768
          %543 = vsyncadd [#allocation14], %s542
          %s544 = sshll.u32 [#allocation15], 4
          %s545 = int_to_ptr.vmem [resolvable:$true] %s544
          %550 = dma.hbm_to_vmem [thread:$0]  %s11, 32768, %s545, [#allocation14], 512, 512, 32
        $region60: #{_lambda_.1} parent=11 // pred_fallthru
          _
        // Predicated region
        $region61: #{_lambda_.1} parent=11 // pred_check
          %p551 = pneg %p302
        $region62: #{_lambda_.1} parent=11 // pred_check_branch
          %553 = sbr.rel (%p551) target = $region64
        $region63: #{_lambda_.1} parent=11 // pred_region
          _
        $region64: #{_lambda_.1} parent=11 // pred_fallthru
          _
        // Predicated region
        $region65: #{_lambda_.1} parent=11 // pred_check
          %p554 = pneg %p323
        $region66: #{_lambda_.1} parent=11 // pred_check_branch
          %556 = sbr.rel (%p554) target = $region68
        $region67: #{_lambda_.1} parent=11 // pred_region
          _
        $region68: #{_lambda_.1} parent=11 // pred_fallthru
          _
        // Predicated region
        $region69: #{_lambda_.1} parent=11 // pred_check
          %p557 = pneg %p344
        $region70: #{_lambda_.1} parent=11 // pred_check_branch
          %559 = sbr.rel (%p557) target = $region72
        $region71: #{_lambda_.1} parent=11 // pred_region
          %s561 = ssub.s32 128, 128
          %562 = vsyncadd [#allocation17], %s561
          %s564 = sshll.u32 [#allocation16], 4
          %s565 = int_to_ptr.vmem [resolvable:$true] %s564
          %567 = dma.hbm_to_vmem [thread:$0]  %s14, 128, %s565, [#allocation17]
        $region72: #{_lambda_.1} parent=11 // pred_fallthru
          _
      $region12: #{_lambda_.1} parent=5 // pred_fallthru
        _
      %p568 = scmp.lt.s32.totalorder %s29, 2
      // Predicated region
      $region73: #{_lambda_.1} parent=5 // pred_check
        %p569 = pneg %p568
      $region74: #{_lambda_.1} parent=5 // pred_check_branch
        %571 = sbr.rel (%p569) target = $region76
      $region75: #{_lambda_.1} parent=5 // pred_region
        // Predicated region
        $region77: #{_lambda_.1} parent=75 // pred_check
          %p572 = pneg %p364
        $region78: #{_lambda_.1} parent=75 // pred_check_branch
          %574 = sbr.rel (%p572) target = $region80
        $region79: #{_lambda_.1} parent=75 // pred_region
          %s575 = sand.u32 %s29, 1
          %s576 = scalar_lea.sflag [#allocation3], %s575
          %s577 = sand.u32 %s354, 1
          %s578 = smul.addr %s577, 512
          %s579 = scalar_lea.vmem [#allocation18], %s578
          %s581 = ssub.s32 8192, 8192
          %582 = vsyncadd %s576, %s581
          %s583 = smul.addr %s29, 64
          %s584 = scalar_lea.hbm %s15, %s583
          %s585 = sshll.u32 %s579, 4
          %s586 = int_to_ptr.vmem [resolvable:$true] %s585
          %591 = dma.hbm_to_vmem [thread:$0]  %s584, 8192, %s586, %s576, 128, 64, 4
        $region80: #{_lambda_.1} parent=75 // pred_fallthru
          _
        // Predicated region
        $region81: #{_lambda_.1} parent=75 // pred_check
          %p592 = pneg %p390
        $region82: #{_lambda_.1} parent=75 // pred_check_branch
          %594 = sbr.rel (%p592) target = $region84
        $region83: #{_lambda_.1} parent=75 // pred_region
          %s595 = sand.u32 %s29, 1
          %s596 = scalar_lea.sflag [#allocation3], %s595
          %s597 = sand.u32 %s380, 1
          %s598 = scalar_lea.vmem [#allocation19], %s597
          %s600 = ssub.s32 16, 16
          %601 = vsyncadd %s596, %s600
          %s602 = smul.addr %s29, 16
          %s603 = scalar_lea.hbm %s16, %s602
          %s605 = sshll.u32 %s598, 4
          %s606 = int_to_ptr.vmem [resolvable:$true] %s605
          %608 = dma.hbm_to_vmem [thread:$0]  %s603, 16, %s606, %s596
        $region84: #{_lambda_.1} parent=75 // pred_fallthru
          _
      $region76: #{_lambda_.1} parent=5 // pred_fallthru
        _
      %p609 = scmp.le.s32.totalorder 1, %s29
      %p610 = scmp.lt.s32.totalorder %s29, 3
      %p611 = pnand %p609, %p610
      %p612 = pneg %p611
      // Predicated region
      $region85: #{_lambda_.1} parent=5 // pred_check
        _
      $region86: #{_lambda_.1} parent=5 // pred_check_branch
        %614 = sbr.rel (%p611) target = $region88
      $region87: #{_lambda_.1} parent=5 // pred_region
        %s615 = ssub.s32 %s29, 1
        // Predicated region
        $region89: #{_lambda_.1} parent=87 // pred_check
          %p616 = pneg %p50
        $region90: #{_lambda_.1} parent=87 // pred_check_branch
          %618 = sbr.rel (%p616) target = $region92
        $region91: #{_lambda_.1} parent=87 // pred_region
          %619 = dma.done [#allocation3], 128
        $region92: #{_lambda_.1} parent=87 // pred_fallthru
          _
        // Predicated region
        $region93: #{_lambda_.1} parent=87 // pred_check
          %p620 = pneg %p113
        $region94: #{_lambda_.1} parent=87 // pred_check_branch
          %622 = sbr.rel (%p620) target = $region96
        $region95: #{_lambda_.1} parent=87 // pred_region
          %623 = dma.done [#allocation5], 2048
        $region96: #{_lambda_.1} parent=87 // pred_fallthru
          _
        // Predicated region
        $region97: #{_lambda_.1} parent=87 // pred_check
          %p624 = pneg %p134
        $region98: #{_lambda_.1} parent=87 // pred_check_branch
          %626 = sbr.rel (%p624) target = $region100
        $region99: #{_lambda_.1} parent=87 // pred_region
          %627 = dma.done [#allocation5], 32
        $region100: #{_lambda_.1} parent=87 // pred_fallthru
          _
        // Predicated region
        $region101: #{_lambda_.1} parent=87 // pred_check
          %p628 = pneg %p155
        $region102: #{_lambda_.1} parent=87 // pred_check_branch
          %630 = sbr.rel (%p628) target = $region104
        $region103: #{_lambda_.1} parent=87 // pred_region
          %631 = dma.done [#allocation8], 32
        $region104: #{_lambda_.1} parent=87 // pred_fallthru
          _
        // Predicated region
        $region105: #{_lambda_.1} parent=87 // pred_check
          %p632 = pneg %p176
        $region106: #{_lambda_.1} parent=87 // pred_check_branch
          %634 = sbr.rel (%p632) target = $region108
        $region107: #{_lambda_.1} parent=87 // pred_region
          %635 = dma.done [#allocation8], 32
        $region108: #{_lambda_.1} parent=87 // pred_fallthru
          _
        // Predicated region
        $region109: #{_lambda_.1} parent=87 // pred_check
          %p636 = pneg %p197
        $region110: #{_lambda_.1} parent=87 // pred_check_branch
          %638 = sbr.rel (%p636) target = $region112
        $region111: #{_lambda_.1} parent=87 // pred_region
          %639 = dma.done [#allocation11], 8192
        $region112: #{_lambda_.1} parent=87 // pred_fallthru
          _
        // Predicated region
        $region113: #{_lambda_.1} parent=87 // pred_check
          %p640 = pneg %p218
        $region114: #{_lambda_.1} parent=87 // pred_check_branch
          %642 = sbr.rel (%p640) target = $region116
        $region115: #{_lambda_.1} parent=87 // pred_region
          %643 = dma.done [#allocation11], 64
        $region116: #{_lambda_.1} parent=87 // pred_fallthru
          _
        // Predicated region
        $region117: #{_lambda_.1} parent=87 // pred_check
          %p644 = pneg %p260
        $region118: #{_lambda_.1} parent=87 // pred_check_branch
          %646 = sbr.rel (%p644) target = $region120
        $region119: #{_lambda_.1} parent=87 // pred_region
          %647 = dma.done [#allocation14], 64
        $region120: #{_lambda_.1} parent=87 // pred_fallthru
          _
        // Predicated region
        $region121: #{_lambda_.1} parent=87 // pred_check
          %p648 = pneg %p281
        $region122: #{_lambda_.1} parent=87 // pred_check_branch
          %650 = sbr.rel (%p648) target = $region124
        $region123: #{_lambda_.1} parent=87 // pred_region
          %651 = dma.done [#allocation14], 32768
        $region124: #{_lambda_.1} parent=87 // pred_fallthru
          _
        // Predicated region
        $region125: #{_lambda_.1} parent=87 // pred_check
          %p652 = pneg %p344
        $region126: #{_lambda_.1} parent=87 // pred_check_branch
          %654 = sbr.rel (%p652) target = $region128
        $region127: #{_lambda_.1} parent=87 // pred_region
          %655 = dma.done [#allocation17], 128
        $region128: #{_lambda_.1} parent=87 // pred_fallthru
          _
        %s656 = sand.u32 %s34, 1
        %s657 = scalar_lea.sflag [#allocation3], %s656
        %s658 = sand.u32 %s357, 1
        %s659 = smul.addr %s658, 512
        %s660 = scalar_lea.vmem [#allocation18], %s659
        // Predicated region
        $region129: #{_lambda_.1} parent=87 // pred_check
          %p661 = pneg %p370
        $region130: #{_lambda_.1} parent=87 // pred_check_branch
          %663 = sbr.rel (%p661) target = $region132
        $region131: #{_lambda_.1} parent=87 // pred_region
          %664 = dma.done %s657, 8192
        $region132: #{_lambda_.1} parent=87 // pred_fallthru
          _
        %s665 = sand.u32 %s34, 1
        %s666 = scalar_lea.sflag [#allocation3], %s665
        %s667 = sand.u32 %s383, 1
        %s668 = scalar_lea.vmem [#allocation19], %s667
        // Predicated region
        $region133: #{_lambda_.1} parent=87 // pred_check
          %p669 = pneg %p396
        $region134: #{_lambda_.1} parent=87 // pred_check_branch
          %671 = sbr.rel (%p669) target = $region136
        $region135: #{_lambda_.1} parent=87 // pred_region
          %672 = dma.done %s666, 16
        $region136: #{_lambda_.1} parent=87 // pred_fallthru
          _
        %p673 = pneg %p50
        %p674 = pneg %p47
        %p675 = pneg %p71
        %p676 = pneg %p68
        %p677 = pneg %p92
        %p678 = pneg %p89
        %p679 = pneg %p113
        %p680 = pneg %p110
        %p681 = pneg %p134
        %p682 = pneg %p131
        %p683 = pneg %p155
        %p684 = pneg %p152
        %p685 = pneg %p176
        %p686 = pneg %p173
        %p687 = pneg %p197
        %p688 = pneg %p194
        %p689 = pneg %p218
        %p690 = pneg %p215
        %p691 = pneg %p239
        %p692 = pneg %p236
        %p693 = pneg %p260
        %p694 = pneg %p257
        %p695 = pneg %p281
        %p696 = pneg %p278
        %p697 = pneg %p302
        %p698 = pneg %p299
        %p699 = pneg %p323
        %p700 = pneg %p320
        %p701 = pneg %p344
        %p702 = pneg %p341
        %s703 = sand.u32 %s34, 1
        %s704 = scalar_lea.sflag [#allocation3], %s703
        %s705 = sand.u32 %s357, 1
        %s706 = smul.addr %s705, 512
        %s707 = scalar_lea.vmem [#allocation18], %s706
        %p708 = pneg %p370
        %p709 = pneg %p367
        %s710 = sand.u32 %s34, 1
        %s711 = scalar_lea.sflag [#allocation3], %s710
        %s712 = sand.u32 %s383, 1
        %s713 = scalar_lea.vmem [#allocation19], %s712
        %p714 = pneg %p396
        %p715 = pneg %p393
        %p716 = pneg %p422
        %p717 = pneg %p419
        %p718 = scmp.lt.s32.totalorder %s34, 1
        %s719 = scalar_select %p718, %s34, 1
        %s720 = smul.addr %s719, 8
        %s721 = scalar_lea.vmem %s17, %s720
        %p722 = scmp.lt.s32.totalorder %s34, 1
        %s723 = scalar_select %p722, %s34, 1
        %s724 = smul.addr %s723, 8
        %s725 = scalar_lea.vmem %s17, %s724
        %v727 = vld [vmem:[#allocation2] sm:$0xff]
        %v728 = vpack.c.bf16 %v727, %v727
        %v729 = vld [vmem:[%s1] sm:$0xf]
        %v730 = vld [vmem:[%s1 + $0x4] sm:$0xf]
        %v731 = vld [vmem:[%s1 + $0x8] sm:$0xf]
        %v732 = vld [vmem:[%s1 + $0xc] sm:$0xf]
        %v733 = vld [vmem:[%s2] sm:$0x1]
        %v735 = vlaneseq
        %v736 = vshrl.u32 %v735, 7
        %v737 = vsub.s32 0, %v736
        %v738 = vrot.slane %v733, %v737
        %v744 = vunpack.c.l.b16 %v729
        %v745 = vunpack.c.l.b16 %v730
        %v746 = vunpack.c.l.b16 %v731
        %v747 = vunpack.c.l.b16 %v732
        %v748 = vpack.c.b16 %v745, %v744
        %v749 = vpack.c.b16 %v747, %v746
        %vm752 = vcmask 261120
        %v754 = vsel %vm752, %v728, 0
        %756 = vmatprep.subr.bf16.mxu0 0
        %757 = vmatpush1.bf16.msra.mxu0 %v748
        %758 = vmatprep.subr.bf16.mxu0 0
        %759 = vmatpush1.bf16.msra.mxu0 %v749
        %760 = vmatprep.subr.bf16.mxu0 0
        %761 = vmatpush1.bf16.msra.mxu0 0
        %762 = vmatprep.subr.bf16.mxu0 0
        %763 = vmatpush1.bf16.msra.mxu0 0
        %764 = vmatprep.subr.bf16.mxu0 0
        %765 = vmatpush1.bf16.msra.mxu0 0
        %766 = vmatprep.subr.bf16.mxu0 0
        %767 = vmatpush1.bf16.msra.mxu0 0
        %768 = vmatprep.subr.bf16.mxu0 0
        %769 = vmatpush1.bf16.msra.mxu0 0
        %770 = vmatprep.subr.bf16.mxu0 0
        %771 = vmatpush1.bf16.msra.mxu0 0
        %772 = vmatprep.subr.bf16.mxu0 0
        %773 = vmatpush1.bf16.msra.mxu0 0
        %774 = vmatprep.subr.bf16.mxu0 0
        %775 = vmatpush1.bf16.msra.mxu0 0
        %776 = vmatprep.subr.bf16.mxu0 0
        %777 = vmatpush1.bf16.msra.mxu0 0
        %778 = vmatprep.subr.bf16.mxu0 0
        %779 = vmatpush1.bf16.msra.mxu0 0
        %780 = vmatprep.subr.bf16.mxu0 0
        %781 = vmatpush1.bf16.msra.mxu0 0
        %782 = vmatprep.subr.bf16.mxu0 0
        %783 = vmatpush1.bf16.msra.mxu0 0
        %784 = vmatprep.subr.bf16.mxu0 0
        %785 = vmatpush1.bf16.msra.mxu0 0
        %786 = vmatprep.subr.bf16.mxu0 0
        %787 = vmatpush1.bf16.msra.mxu0 0
        %788 = vmatprep.mubr.bf16.mxu0 0
        %789 = vmatmul.mubr.bf16.gmra.mrb[0].mxu0 %v754
        %v790 = vpop.f32.mrb[0].mxu0
        %v791 = vadd.f32 %v738, %v790
        %v792 = vpop.f32.mrb[0].mxu0
        %v793 = vpop.f32.mrb[0].mxu0
        %v794 = vpop.f32.mrb[0].mxu0
        %795 = vdwg.mxu0
        %vm796 = vcmp.gt.f32.partialorder %v791, 0.0
        %v797 = vmul.f32 %v791, 0.2
        %v798 = vsel %vm796, %v791, %v797
        %v799 = vpack.c.bf16 %v798, %v798
        %v800 = vld [vmem:[#allocation4] sm:$0xff]
        %v801 = vld [vmem:[#allocation4 + $0x8] sm:$0xff]
        %v802 = vld [vmem:[#allocation4 + $0x10] sm:$0xff]
        %v803 = vld [vmem:[#allocation4 + $0x18] sm:$0xff]
        %v804 = vld [vmem:[#allocation4 + $0x20] sm:$0xff]
        %v805 = vld [vmem:[#allocation4 + $0x28] sm:$0xff]
        %v806 = vld [vmem:[#allocation4 + $0x30] sm:$0xff]
        %v807 = vld [vmem:[#allocation4 + $0x38] sm:$0xff]
        %v808 = vld [vmem:[#allocation4 + $0x40] sm:$0xff]
        %v809 = vld [vmem:[#allocation4 + $0x48] sm:$0xff]
        %v810 = vld [vmem:[#allocation4 + $0x50] sm:$0xff]
        %v811 = vld [vmem:[#allocation4 + $0x58] sm:$0xff]
        %v812 = vld [vmem:[#allocation4 + $0x60] sm:$0xff]
        %v813 = vld [vmem:[#allocation4 + $0x68] sm:$0xff]
        %v814 = vld [vmem:[#allocation4 + $0x70] sm:$0xff]
        %v815 = vld [vmem:[#allocation4 + $0x78] sm:$0xff]
        %v816 = vld [vmem:[#allocation6] sm:$0x3]
        %v818 = vlaneseq
        %v819 = vshrl.u32 %v818, 7
        %v820 = vsub.s32 0, %v819
        %v821 = vrot.slane %v816, %v820
        %v822 = vlaneseq
        %v823 = vshrl.u32 %v822, 7
        %v824 = vsub.s32 1, %v823
        %v825 = vrot.slane %v816, %v824
        %v844 = vunpack.c.l.b16 %v800
        %v845 = vunpack.c.h.b16 %v800
        %v846 = vunpack.c.l.b16 %v801
        %v847 = vunpack.c.h.b16 %v801
        %v848 = vunpack.c.l.b16 %v802
        %v849 = vunpack.c.h.b16 %v802
        %v850 = vunpack.c.l.b16 %v803
        %v851 = vunpack.c.h.b16 %v803
        %v852 = vunpack.c.l.b16 %v804
        %v853 = vunpack.c.h.b16 %v804
        %v854 = vunpack.c.l.b16 %v805
        %v855 = vunpack.c.h.b16 %v805
        %v856 = vunpack.c.l.b16 %v806
        %v857 = vunpack.c.h.b16 %v806
        %v858 = vunpack.c.l.b16 %v807
        %v859 = vunpack.c.h.b16 %v807
        %v860 = vunpack.c.l.b16 %v808
        %v861 = vunpack.c.h.b16 %v808
        %v862 = vunpack.c.l.b16 %v809
        %v863 = vunpack.c.h.b16 %v809
        %v864 = vunpack.c.l.b16 %v810
        %v865 = vunpack.c.h.b16 %v810
        %v866 = vunpack.c.l.b16 %v811
        %v867 = vunpack.c.h.b16 %v811
        %v868 = vunpack.c.l.b16 %v812
        %v869 = vunpack.c.h.b16 %v812
        %v870 = vunpack.c.l.b16 %v813
        %v871 = vunpack.c.h.b16 %v813
        %v872 = vunpack.c.l.b16 %v814
        %v873 = vunpack.c.h.b16 %v814
        %v874 = vunpack.c.l.b16 %v815
        %v875 = vunpack.c.h.b16 %v815
        %v876 = vpack.c.b16 %v846, %v844
        %v877 = vpack.c.b16 %v847, %v845
        %v878 = vpack.c.b16 %v850, %v848
        %v879 = vpack.c.b16 %v851, %v849
        %v880 = vpack.c.b16 %v854, %v852
        %v881 = vpack.c.b16 %v855, %v853
        %v882 = vpack.c.b16 %v858, %v856
        %v883 = vpack.c.b16 %v859, %v857
        %v884 = vpack.c.b16 %v862, %v860
        %v885 = vpack.c.b16 %v863, %v861
        %v886 = vpack.c.b16 %v866, %v864
        %v887 = vpack.c.b16 %v867, %v865
        %v888 = vpack.c.b16 %v870, %v868
        %v889 = vpack.c.b16 %v871, %v869
        %v890 = vpack.c.b16 %v874, %v872
        %v891 = vpack.c.b16 %v875, %v873
        %908 = vmatprep.subr.bf16.mxu0 %v877
        %909 = vmatpush1.bf16.msra.mxu0 %v876
        %910 = vmatprep.subr.bf16.mxu0 %v879
        %911 = vmatpush1.bf16.msra.mxu0 %v878
        %912 = vmatprep.subr.bf16.mxu0 %v881
        %913 = vmatpush1.bf16.msra.mxu0 %v880
        %914 = vmatprep.subr.bf16.mxu0 %v883
        %915 = vmatpush1.bf16.msra.mxu0 %v882
        %916 = vmatprep.subr.bf16.mxu0 %v885
        %917 = vmatpush1.bf16.msra.mxu0 %v884
        %918 = vmatprep.subr.bf16.mxu0 %v887
        %919 = vmatpush1.bf16.msra.mxu0 %v886
        %920 = vmatprep.subr.bf16.mxu0 %v889
        %921 = vmatpush1.bf16.msra.mxu0 %v888
        %922 = vmatprep.subr.bf16.mxu0 %v891
        %923 = vmatpush1.bf16.msra.mxu0 %v890
        %924 = vmatprep.subr.bf16.mxu0 0
        %925 = vmatpush1.bf16.msra.mxu0 0
        %926 = vmatprep.subr.bf16.mxu0 0
        %927 = vmatpush1.bf16.msra.mxu0 0
        %928 = vmatprep.subr.bf16.mxu0 0
        %929 = vmatpush1.bf16.msra.mxu0 0
        %930 = vmatprep.subr.bf16.mxu0 0
        %931 = vmatpush1.bf16.msra.mxu0 0
        %932 = vmatprep.subr.bf16.mxu0 0
        %933 = vmatpush1.bf16.msra.mxu0 0
        %934 = vmatprep.subr.bf16.mxu0 0
        %935 = vmatpush1.bf16.msra.mxu0 0
        %936 = vmatprep.subr.bf16.mxu0 0
        %937 = vmatpush1.bf16.msra.mxu0 0
        %938 = vmatprep.subr.bf16.mxu0 0
        %939 = vmatpush1.bf16.msra.mxu0 0
        %940 = vmatprep.mubr.bf16.mxu0 0
        %941 = vmatmul.mubr.bf16.gmra.mrb[0].mxu0 %v799
        %v942 = vpop.f32.mrb[0].mxu0
        %v943 = vadd.f32 %v821, %v942
        %v944 = vpop.f32.mrb[0].mxu0
        %v945 = vadd.f32 %v825, %v944
        %v946 = vpop.f32.mrb[0].mxu0
        %v947 = vpop.f32.mrb[0].mxu0
        %948 = vdwg.mxu0
        %v949 = vrot.slane %v943, 4
        %v950 = vadd.f32 %v943, %v949
        %v951 = vrot.slane %v950, 2
        %v952 = vadd.f32 %v950, %v951
        %v953 = vrot.slane %v952, 1
        %v954 = vadd.f32 %v952, %v953
        %v955 = vrot.slane %v945, 4
        %v956 = vadd.f32 %v945, %v955
        %v957 = vrot.slane %v956, 2
        %v958 = vadd.f32 %v956, %v957
        %v959 = vrot.slane %v958, 1
        %v960 = vadd.f32 %v958, %v959
        %v961 = vrcp.pop 8.0
        %v962 = vmul.f32 %v954, %v961
        %v963 = vmul.f32 %v960, %v961
        %v964 = vsub.f32 %v943, %v962
        %v965 = vsub.f32 %v945, %v963
        %v966 = vmul.f32 %v964, %v964
        %v967 = vmul.f32 %v965, %v965
        %v968 = vrot.slane %v966, 4
        %v969 = vadd.f32 %v966, %v968
        %v970 = vrot.slane %v969, 2
        %v971 = vadd.f32 %v969, %v970
        %v972 = vrot.slane %v971, 1
        %v973 = vadd.f32 %v971, %v972
        %v974 = vrot.slane %v967, 4
        %v975 = vadd.f32 %v967, %v974
        %v976 = vrot.slane %v975, 2
        %v977 = vadd.f32 %v975, %v976
        %v978 = vrot.slane %v977, 1
        %v979 = vadd.f32 %v977, %v978
        %v980 = vmul.f32 %v973, %v961
        %v981 = vmul.f32 %v979, %v961
        %v982 = vld [vmem:[#allocation7] sm:$0x3]
        %v983 = vadd.f32 %v980, 0.8
        %v984 = vadd.f32 %v981, 0.8
        %v985 = vrsqrt.pop %v983
        %v986 = vrsqrt.pop %v984
        %v989 = vcombine.low %v985, %v986
        %v991 = vunpack.c.l.s4 1966171168
        %v992 = vunpack.c.0.s8 %v991
        %v993 = vlaneseq
        %v994 = vshrl.u32 %v993, 7
        %v995 = vsub.s32 %v992, %v994
        %v996 = vrot.slane %v989, %v995
        %v998 = vunpack.c.l.s4 1966171168
        %v999 = vunpack.c.0.s8 %v998
        %v1000 = vlaneseq
        %v1001 = vshrl.u32 %v1000, 7
        %v1002 = vsub.s32 %v999, %v1001
        %v1003 = vrot.slane %v996, %v1002
        %v1005 = vmul.f32 %v982, %v1003
        %v1006 = vld [vmem:[#allocation9] sm:$0x3]
        %v1008 = vlaneseq
        %v1009 = vshrl.u32 %v1008, 7
        %v1010 = vsub.s32 0, %v1009
        %v1011 = vrot.slane %v1005, %v1010
        %v1012 = vlaneseq
        %v1013 = vshrl.u32 %v1012, 7
        %v1014 = vsub.s32 1, %v1013
        %v1015 = vrot.slane %v1005, %v1014
        %v1018 = vmul.f32 %v962, %v1011
        %v1019 = vmul.f32 %v963, %v1015
        %v1022 = vcombine.low %v1018, %v1019
        %v1024 = vunpack.c.l.s4 1966171168
        %v1025 = vunpack.c.0.s8 %v1024
        %v1026 = vlaneseq
        %v1027 = vshrl.u32 %v1026, 7
        %v1028 = vsub.s32 %v1025, %v1027
        %v1029 = vrot.slane %v1022, %v1028
        %v1031 = vunpack.c.l.s4 1966171168
        %v1032 = vunpack.c.0.s8 %v1031
        %v1033 = vlaneseq
        %v1034 = vshrl.u32 %v1033, 7
        %v1035 = vsub.s32 %v1032, %v1034
        %v1036 = vrot.slane %v1029, %v1035
        %v1038 = vsub.f32 %v1006, %v1036
        %v1039 = vmul.f32 %v943, %v1011
        %v1040 = vmul.f32 %v945, %v1015
        %v1042 = vlaneseq
        %v1043 = vshrl.u32 %v1042, 7
        %v1044 = vsub.s32 0, %v1043
        %v1045 = vrot.slane %v1038, %v1044
        %v1046 = vlaneseq
        %v1047 = vshrl.u32 %v1046, 7
        %v1048 = vsub.s32 1, %v1047
        %v1049 = vrot.slane %v1038, %v1048
        %v1052 = vadd.f32 %v1039, %v1045
        %v1053 = vadd.f32 %v1040, %v1049
        %vm1054 = vcmp.gt.f32.partialorder %v1052, 0.0
        %vm1055 = vcmp.gt.f32.partialorder %v1053, 0.0
        %v1056 = vmul.f32 %v1052, 0.2
        %v1057 = vmul.f32 %v1053, 0.2
        %v1058 = vsel %vm1054, %v1052, %v1056
        %v1059 = vsel %vm1055, %v1053, %v1057
        %v1060 = vpack.c.bf16 %v1058, %v1058
        %v1061 = vpack.c.bf16 %v1059, %v1059
        %v1062 = vld [vmem:[#allocation10] sm:$0xff]
        %v1063 = vld [vmem:[#allocation10 + $0x8] sm:$0xff]
        %v1064 = vld [vmem:[#allocation10 + $0x10] sm:$0xff]
        %v1065 = vld [vmem:[#allocation10 + $0x18] sm:$0xff]
        %v1066 = vld [vmem:[#allocation10 + $0x20] sm:$0xff]
        %v1067 = vld [vmem:[#allocation10 + $0x28] sm:$0xff]
        %v1068 = vld [vmem:[#allocation10 + $0x30] sm:$0xff]
        %v1069 = vld [vmem:[#allocation10 + $0x38] sm:$0xff]
        %v1070 = vld [vmem:[#allocation10 + $0x40] sm:$0xff]
        %v1071 = vld [vmem:[#allocation10 + $0x48] sm:$0xff]
        %v1072 = vld [vmem:[#allocation10 + $0x50] sm:$0xff]
        %v1073 = vld [vmem:[#allocation10 + $0x58] sm:$0xff]
        %v1074 = vld [vmem:[#allocation10 + $0x60] sm:$0xff]
        %v1075 = vld [vmem:[#allocation10 + $0x68] sm:$0xff]
        %v1076 = vld [vmem:[#allocation10 + $0x70] sm:$0xff]
        %v1077 = vld [vmem:[#allocation10 + $0x78] sm:$0xff]
        %v1078 = vld [vmem:[#allocation10 + $0x80] sm:$0xff]
        %v1079 = vld [vmem:[#allocation10 + $0x88] sm:$0xff]
        %v1080 = vld [vmem:[#allocation10 + $0x90] sm:$0xff]
        %v1081 = vld [vmem:[#allocation10 + $0x98] sm:$0xff]
        %v1082 = vld [vmem:[#allocation10 + $0xa0] sm:$0xff]
        %v1083 = vld [vmem:[#allocation10 + $0xa8] sm:$0xff]
        %v1084 = vld [vmem:[#allocation10 + $0xb0] sm:$0xff]
        %v1085 = vld [vmem:[#allocation10 + $0xb8] sm:$0xff]
        %v1086 = vld [vmem:[#allocation10 + $0xc0] sm:$0xff]
        %v1087 = vld [vmem:[#allocation10 + $0xc8] sm:$0xff]
        %v1088 = vld [vmem:[#allocation10 + $0xd0] sm:$0xff]
        %v1089 = vld [vmem:[#allocation10 + $0xd8] sm:$0xff]
        %v1090 = vld [vmem:[#allocation10 + $0xe0] sm:$0xff]
        %v1091 = vld [vmem:[#allocation10 + $0xe8] sm:$0xff]
        %v1092 = vld [vmem:[#allocation10 + $0xf0] sm:$0xff]
        %v1093 = vld [vmem:[#allocation10 + $0xf8] sm:$0xff]
        %v1094 = vld [vmem:[#allocation10 + $0x100] sm:$0xff]
        %v1095 = vld [vmem:[#allocation10 + $0x108] sm:$0xff]
        %v1096 = vld [vmem:[#allocation10 + $0x110] sm:$0xff]
        %v1097 = vld [vmem:[#allocation10 + $0x118] sm:$0xff]
        %v1098 = vld [vmem:[#allocation10 + $0x120] sm:$0xff]
        %v1099 = vld [vmem:[#allocation10 + $0x128] sm:$0xff]
        %v1100 = vld [vmem:[#allocation10 + $0x130] sm:$0xff]
        %v1101 = vld [vmem:[#allocation10 + $0x138] sm:$0xff]
        %v1102 = vld [vmem:[#allocation10 + $0x140] sm:$0xff]
        %v1103 = vld [vmem:[#allocation10 + $0x148] sm:$0xff]
        %v1104 = vld [vmem:[#allocation10 + $0x150] sm:$0xff]
        %v1105 = vld [vmem:[#allocation10 + $0x158] sm:$0xff]
        %v1106 = vld [vmem:[#allocation10 + $0x160] sm:$0xff]
        %v1107 = vld [vmem:[#allocation10 + $0x168] sm:$0xff]
        %v1108 = vld [vmem:[#allocation10 + $0x170] sm:$0xff]
        %v1109 = vld [vmem:[#allocation10 + $0x178] sm:$0xff]
        %v1110 = vld [vmem:[#allocation10 + $0x180] sm:$0xff]
        %v1111 = vld [vmem:[#allocation10 + $0x188] sm:$0xff]
        %v1112 = vld [vmem:[#allocation10 + $0x190] sm:$0xff]
        %v1113 = vld [vmem:[#allocation10 + $0x198] sm:$0xff]
        %v1114 = vld [vmem:[#allocation10 + $0x1a0] sm:$0xff]
        %v1115 = vld [vmem:[#allocation10 + $0x1a8] sm:$0xff]
        %v1116 = vld [vmem:[#allocation10 + $0x1b0] sm:$0xff]
        %v1117 = vld [vmem:[#allocation10 + $0x1b8] sm:$0xff]
        %v1118 = vld [vmem:[#allocation10 + $0x1c0] sm:$0xff]
        %v1119 = vld [vmem:[#allocation10 + $0x1c8] sm:$0xff]
        %v1120 = vld [vmem:[#allocation10 + $0x1d0] sm:$0xff]
        %v1121 = vld [vmem:[#allocation10 + $0x1d8] sm:$0xff]
        %v1122 = vld [vmem:[#allocation10 + $0x1e0] sm:$0xff]
        %v1123 = vld [vmem:[#allocation10 + $0x1e8] sm:$0xff]
        %v1124 = vld [vmem:[#allocation10 + $0x1f0] sm:$0xff]
        %v1125 = vld [vmem:[#allocation10 + $0x1f8] sm:$0xff]
        %v1126 = vld [vmem:[#allocation12] sm:$0xf]
        %v1128 = vlaneseq
        %v1129 = vshrl.u32 %v1128, 7
        %v1130 = vsub.s32 0, %v1129
        %v1131 = vrot.slane %v1126, %v1130
        %v1132 = vlaneseq
        %v1133 = vshrl.u32 %v1132, 7
        %v1134 = vsub.s32 1, %v1133
        %v1135 = vrot.slane %v1126, %v1134
        %v1136 = vlaneseq
        %v1137 = vshrl.u32 %v1136, 7
        %v1138 = vsub.s32 2, %v1137
        %v1139 = vrot.slane %v1126, %v1138
        %v1140 = vlaneseq
        %v1141 = vshrl.u32 %v1140, 7
        %v1142 = vsub.s32 3, %v1141
        %v1143 = vrot.slane %v1126, %v1142
        %v1212 = vunpack.c.l.b16 %v1062
        %v1213 = vunpack.c.h.b16 %v1062
        %v1214 = vunpack.c.l.b16 %v1063
        %v1215 = vunpack.c.h.b16 %v1063
        %v1216 = vunpack.c.l.b16 %v1064
        %v1217 = vunpack.c.h.b16 %v1064
        %v1218 = vunpack.c.l.b16 %v1065
        %v1219 = vunpack.c.h.b16 %v1065
        %v1220 = vunpack.c.l.b16 %v1066
        %v1221 = vunpack.c.h.b16 %v1066
        %v1222 = vunpack.c.l.b16 %v1067
        %v1223 = vunpack.c.h.b16 %v1067
        %v1224 = vunpack.c.l.b16 %v1068
        %v1225 = vunpack.c.h.b16 %v1068
        %v1226 = vunpack.c.l.b16 %v1069
        %v1227 = vunpack.c.h.b16 %v1069
        %v1228 = vunpack.c.l.b16 %v1070
        %v1229 = vunpack.c.h.b16 %v1070
        %v1230 = vunpack.c.l.b16 %v1071
        %v1231 = vunpack.c.h.b16 %v1071
        %v1232 = vunpack.c.l.b16 %v1072
        %v1233 = vunpack.c.h.b16 %v1072
        %v1234 = vunpack.c.l.b16 %v1073
        %v1235 = vunpack.c.h.b16 %v1073
        %v1236 = vunpack.c.l.b16 %v1074
        %v1237 = vunpack.c.h.b16 %v1074
        %v1238 = vunpack.c.l.b16 %v1075
        %v1239 = vunpack.c.h.b16 %v1075
        %v1240 = vunpack.c.l.b16 %v1076
        %v1241 = vunpack.c.h.b16 %v1076
        %v1242 = vunpack.c.l.b16 %v1077
        %v1243 = vunpack.c.h.b16 %v1077
        %v1244 = vunpack.c.l.b16 %v1078
        %v1245 = vunpack.c.h.b16 %v1078
        %v1246 = vunpack.c.l.b16 %v1079
        %v1247 = vunpack.c.h.b16 %v1079
        %v1248 = vunpack.c.l.b16 %v1080
        %v1249 = vunpack.c.h.b16 %v1080
        %v1250 = vunpack.c.l.b16 %v1081
        %v1251 = vunpack.c.h.b16 %v1081
        %v1252 = vunpack.c.l.b16 %v1082
        %v1253 = vunpack.c.h.b16 %v1082
        %v1254 = vunpack.c.l.b16 %v1083
        %v1255 = vunpack.c.h.b16 %v1083
        %v1256 = vunpack.c.l.b16 %v1084
        %v1257 = vunpack.c.h.b16 %v1084
        %v1258 = vunpack.c.l.b16 %v1085
        %v1259 = vunpack.c.h.b16 %v1085
        %v1260 = vunpack.c.l.b16 %v1086
        %v1261 = vunpack.c.h.b16 %v1086
        %v1262 = vunpack.c.l.b16 %v1087
        %v1263 = vunpack.c.h.b16 %v1087
        %v1264 = vunpack.c.l.b16 %v1088
        %v1265 = vunpack.c.h.b16 %v1088
        %v1266 = vunpack.c.l.b16 %v1089
        %v1267 = vunpack.c.h.b16 %v1089
        %v1268 = vunpack.c.l.b16 %v1090
        %v1269 = vunpack.c.h.b16 %v1090
        %v1270 = vunpack.c.l.b16 %v1091
        %v1271 = vunpack.c.h.b16 %v1091
        %v1272 = vunpack.c.l.b16 %v1092
        %v1273 = vunpack.c.h.b16 %v1092
        %v1274 = vunpack.c.l.b16 %v1093
        %v1275 = vunpack.c.h.b16 %v1093
        %v1276 = vunpack.c.l.b16 %v1094
        %v1277 = vunpack.c.h.b16 %v1094
        %v1278 = vunpack.c.l.b16 %v1095
        %v1279 = vunpack.c.h.b16 %v1095
        %v1280 = vunpack.c.l.b16 %v1096
        %v1281 = vunpack.c.h.b16 %v1096
        %v1282 = vunpack.c.l.b16 %v1097
        %v1283 = vunpack.c.h.b16 %v1097
        %v1284 = vunpack.c.l.b16 %v1098
        %v1285 = vunpack.c.h.b16 %v1098
        %v1286 = vunpack.c.l.b16 %v1099
        %v1287 = vunpack.c.h.b16 %v1099
        %v1288 = vunpack.c.l.b16 %v1100
        %v1289 = vunpack.c.h.b16 %v1100
        %v1290 = vunpack.c.l.b16 %v1101
        %v1291 = vunpack.c.h.b16 %v1101
        %v1292 = vunpack.c.l.b16 %v1102
        %v1293 = vunpack.c.h.b16 %v1102
        %v1294 = vunpack.c.l.b16 %v1103
        %v1295 = vunpack.c.h.b16 %v1103
        %v1296 = vunpack.c.l.b16 %v1104
        %v1297 = vunpack.c.h.b16 %v1104
        %v1298 = vunpack.c.l.b16 %v1105
        %v1299 = vunpack.c.h.b16 %v1105
        %v1300 = vunpack.c.l.b16 %v1106
        %v1301 = vunpack.c.h.b16 %v1106
        %v1302 = vunpack.c.l.b16 %v1107
        %v1303 = vunpack.c.h.b16 %v1107
        %v1304 = vunpack.c.l.b16 %v1108
        %v1305 = vunpack.c.h.b16 %v1108
        %v1306 = vunpack.c.l.b16 %v1109
        %v1307 = vunpack.c.h.b16 %v1109
        %v1308 = vunpack.c.l.b16 %v1110
        %v1309 = vunpack.c.h.b16 %v1110
        %v1310 = vunpack.c.l.b16 %v1111
        %v1311 = vunpack.c.h.b16 %v1111
        %v1312 = vunpack.c.l.b16 %v1112
        %v1313 = vunpack.c.h.b16 %v1112
        %v1314 = vunpack.c.l.b16 %v1113
        %v1315 = vunpack.c.h.b16 %v1113
        %v1316 = vunpack.c.l.b16 %v1114
        %v1317 = vunpack.c.h.b16 %v1114
        %v1318 = vunpack.c.l.b16 %v1115
        %v1319 = vunpack.c.h.b16 %v1115
        %v1320 = vunpack.c.l.b16 %v1116
        %v1321 = vunpack.c.h.b16 %v1116
        %v1322 = vunpack.c.l.b16 %v1117
        %v1323 = vunpack.c.h.b16 %v1117
        %v1324 = vunpack.c.l.b16 %v1118
        %v1325 = vunpack.c.h.b16 %v1118
        %v1326 = vunpack.c.l.b16 %v1119
        %v1327 = vunpack.c.h.b16 %v1119
        %v1328 = vunpack.c.l.b16 %v1120
        %v1329 = vunpack.c.h.b16 %v1120
        %v1330 = vunpack.c.l.b16 %v1121
        %v1331 = vunpack.c.h.b16 %v1121
        %v1332 = vunpack.c.l.b16 %v1122
        %v1333 = vunpack.c.h.b16 %v1122
        %v1334 = vunpack.c.l.b16 %v1123
        %v1335 = vunpack.c.h.b16 %v1123
        %v1336 = vunpack.c.l.b16 %v1124
        %v1337 = vunpack.c.h.b16 %v1124
        %v1338 = vunpack.c.l.b16 %v1125
        %v1339 = vunpack.c.h.b16 %v1125
        %v1340 = vpack.c.b16 %v1216, %v1212
        %v1341 = vpack.c.b16 %v1217, %v1213
        %v1342 = vpack.c.b16 %v1218, %v1214
        %v1343 = vpack.c.b16 %v1219, %v1215
        %v1344 = vpack.c.b16 %v1224, %v1220
        %v1345 = vpack.c.b16 %v1225, %v1221
        %v1346 = vpack.c.b16 %v1226, %v1222
        %v1347 = vpack.c.b16 %v1227, %v1223
        %v1348 = vpack.c.b16 %v1232, %v1228
        %v1349 = vpack.c.b16 %v1233, %v1229
        %v1350 = vpack.c.b16 %v1234, %v1230
        %v1351 = vpack.c.b16 %v1235, %v1231
        %v1352 = vpack.c.b16 %v1240, %v1236
        %v1353 = vpack.c.b16 %v1241, %v1237
        %v1354 = vpack.c.b16 %v1242, %v1238
        %v1355 = vpack.c.b16 %v1243, %v1239
        %v1356 = vpack.c.b16 %v1248, %v1244
        %v1357 = vpack.c.b16 %v1249, %v1245
        %v1358 = vpack.c.b16 %v1250, %v1246
        %v1359 = vpack.c.b16 %v1251, %v1247
        %v1360 = vpack.c.b16 %v1256, %v1252
        %v1361 = vpack.c.b16 %v1257, %v1253
        %v1362 = vpack.c.b16 %v1258, %v1254
        %v1363 = vpack.c.b16 %v1259, %v1255
        %v1364 = vpack.c.b16 %v1264, %v1260
        %v1365 = vpack.c.b16 %v1265, %v1261
        %v1366 = vpack.c.b16 %v1266, %v1262
        %v1367 = vpack.c.b16 %v1267, %v1263
        %v1368 = vpack.c.b16 %v1272, %v1268
        %v1369 = vpack.c.b16 %v1273, %v1269
        %v1370 = vpack.c.b16 %v1274, %v1270
        %v1371 = vpack.c.b16 %v1275, %v1271
        %v1372 = vpack.c.b16 %v1280, %v1276
        %v1373 = vpack.c.b16 %v1281, %v1277
        %v1374 = vpack.c.b16 %v1282, %v1278
        %v1375 = vpack.c.b16 %v1283, %v1279
        %v1376 = vpack.c.b16 %v1288, %v1284
        %v1377 = vpack.c.b16 %v1289, %v1285
        %v1378 = vpack.c.b16 %v1290, %v1286
        %v1379 = vpack.c.b16 %v1291, %v1287
        %v1380 = vpack.c.b16 %v1296, %v1292
        %v1381 = vpack.c.b16 %v1297, %v1293
        %v1382 = vpack.c.b16 %v1298, %v1294
        %v1383 = vpack.c.b16 %v1299, %v1295
        %v1384 = vpack.c.b16 %v1304, %v1300
        %v1385 = vpack.c.b16 %v1305, %v1301
        %v1386 = vpack.c.b16 %v1306, %v1302
        %v1387 = vpack.c.b16 %v1307, %v1303
        %v1388 = vpack.c.b16 %v1312, %v1308
        %v1389 = vpack.c.b16 %v1313, %v1309
        %v1390 = vpack.c.b16 %v1314, %v1310
        %v1391 = vpack.c.b16 %v1315, %v1311
        %v1392 = vpack.c.b16 %v1320, %v1316
        %v1393 = vpack.c.b16 %v1321, %v1317
        %v1394 = vpack.c.b16 %v1322, %v1318
        %v1395 = vpack.c.b16 %v1323, %v1319
        %v1396 = vpack.c.b16 %v1328, %v1324
        %v1397 = vpack.c.b16 %v1329, %v1325
        %v1398 = vpack.c.b16 %v1330, %v1326
        %v1399 = vpack.c.b16 %v1331, %v1327
        %v1400 = vpack.c.b16 %v1336, %v1332
        %v1401 = vpack.c.b16 %v1337, %v1333
        %v1402 = vpack.c.b16 %v1338, %v1334
        %v1403 = vpack.c.b16 %v1339, %v1335
        %1468 = vmatprep.subr.bf16.mxu0 %v1341
        %1469 = vmatpush1.bf16.msra.mxu0 %v1340
        %1470 = vmatprep.subr.bf16.mxu0 %v1345
        %1471 = vmatpush1.bf16.msra.mxu0 %v1344
        %1472 = vmatprep.subr.bf16.mxu0 %v1349
        %1473 = vmatpush1.bf16.msra.mxu0 %v1348
        %1474 = vmatprep.subr.bf16.mxu0 %v1353
        %1475 = vmatpush1.bf16.msra.mxu0 %v1352
        %1476 = vmatprep.subr.bf16.mxu0 %v1357
        %1477 = vmatpush1.bf16.msra.mxu0 %v1356
        %1478 = vmatprep.subr.bf16.mxu0 %v1361
        %1479 = vmatpush1.bf16.msra.mxu0 %v1360
        %1480 = vmatprep.subr.bf16.mxu0 %v1365
        %1481 = vmatpush1.bf16.msra.mxu0 %v1364
        %1482 = vmatprep.subr.bf16.mxu0 %v1369
        %1483 = vmatpush1.bf16.msra.mxu0 %v1368
        %1484 = vmatprep.subr.bf16.mxu0 %v1373
        %1485 = vmatpush1.bf16.msra.mxu0 %v1372
        %1486 = vmatprep.subr.bf16.mxu0 %v1377
        %1487 = vmatpush1.bf16.msra.mxu0 %v1376
        %1488 = vmatprep.subr.bf16.mxu0 %v1381
        %1489 = vmatpush1.bf16.msra.mxu0 %v1380
        %1490 = vmatprep.subr.bf16.mxu0 %v1385
        %1491 = vmatpush1.bf16.msra.mxu0 %v1384
        %1492 = vmatprep.subr.bf16.mxu0 %v1389
        %1493 = vmatpush1.bf16.msra.mxu0 %v1388
        %1494 = vmatprep.subr.bf16.mxu0 %v1393
        %1495 = vmatpush1.bf16.msra.mxu0 %v1392
        %1496 = vmatprep.subr.bf16.mxu0 %v1397
        %1497 = vmatpush1.bf16.msra.mxu0 %v1396
        %1498 = vmatprep.subr.bf16.mxu0 %v1401
        %1499 = vmatpush1.bf16.msra.mxu0 %v1400
        %1500 = vmatprep.mubr.bf16.mxu0 %v1061
        %1501 = vmatmul.mubr.bf16.gmra.mrb[0].mxu0 %v1060
        %v1502 = vpop.f32.mrb[0].mxu0
        %v1503 = vadd.f32 %v1131, %v1502
        %v1504 = vpop.f32.mrb[0].mxu0
        %v1505 = vadd.f32 %v1135, %v1504
        %v1506 = vpop.f32.mrb[0].mxu0
        %v1507 = vpop.f32.mrb[0].mxu0
        %1508 = vdwg.mxu0
        %1509 = vmatprep.subr.bf16.mxu0 %v1343
        %1510 = vmatpush1.bf16.msra.mxu0 %v1342
        %1511 = vmatprep.subr.bf16.mxu0 %v1347
        %1512 = vmatpush1.bf16.msra.mxu0 %v1346
        %1513 = vmatprep.subr.bf16.mxu0 %v1351
        %1514 = vmatpush1.bf16.msra.mxu0 %v1350
        %1515 = vmatprep.subr.bf16.mxu0 %v1355
        %1516 = vmatpush1.bf16.msra.mxu0 %v1354
        %1517 = vmatprep.subr.bf16.mxu0 %v1359
        %1518 = vmatpush1.bf16.msra.mxu0 %v1358
        %1519 = vmatprep.subr.bf16.mxu0 %v1363
        %1520 = vmatpush1.bf16.msra.mxu0 %v1362
        %1521 = vmatprep.subr.bf16.mxu0 %v1367
        %1522 = vmatpush1.bf16.msra.mxu0 %v1366
        %1523 = vmatprep.subr.bf16.mxu0 %v1371
        %1524 = vmatpush1.bf16.msra.mxu0 %v1370
        %1525 = vmatprep.subr.bf16.mxu0 %v1375
        %1526 = vmatpush1.bf16.msra.mxu0 %v1374
        %1527 = vmatprep.subr.bf16.mxu0 %v1379
        %1528 = vmatpush1.bf16.msra.mxu0 %v1378
        %1529 = vmatprep.subr.bf16.mxu0 %v1383
        %1530 = vmatpush1.bf16.msra.mxu0 %v1382
        %1531 = vmatprep.subr.bf16.mxu0 %v1387
        %1532 = vmatpush1.bf16.msra.mxu0 %v1386
        %1533 = vmatprep.subr.bf16.mxu0 %v1391
        %1534 = vmatpush1.bf16.msra.mxu0 %v1390
        %1535 = vmatprep.subr.bf16.mxu0 %v1395
        %1536 = vmatpush1.bf16.msra.mxu0 %v1394
        %1537 = vmatprep.subr.bf16.mxu0 %v1399
        %1538 = vmatpush1.bf16.msra.mxu0 %v1398
        %1539 = vmatprep.subr.bf16.mxu0 %v1403
        %1540 = vmatpush1.bf16.msra.mxu0 %v1402
        %1541 = vmatprep.mubr.bf16.mxu0 %v1061
        %1542 = vmatmul.mubr.bf16.gmra.mrb[0].mxu0 %v1060
        %v1543 = vpop.f32.mrb[0].mxu0
        %v1544 = vadd.f32 %v1139, %v1543
        %v1545 = vpop.f32.mrb[0].mxu0
        %v1546 = vadd.f32 %v1143, %v1545
        %v1547 = vpop.f32.mrb[0].mxu0
        %v1548 = vpop.f32.mrb[0].mxu0
        %1549 = vdwg.mxu0
        %v1550 = vrot.slane %v1503, 4
        %v1551 = vadd.f32 %v1503, %v1550
        %v1552 = vrot.slane %v1551, 2
        %v1553 = vadd.f32 %v1551, %v1552
        %v1554 = vrot.slane %v1553, 1
        %v1555 = vadd.f32 %v1553, %v1554
        %v1556 = vrot.slane %v1505, 4
        %v1557 = vadd.f32 %v1505, %v1556
        %v1558 = vrot.slane %v1557, 2
        %v1559 = vadd.f32 %v1557, %v1558
        %v1560 = vrot.slane %v1559, 1
        %v1561 = vadd.f32 %v1559, %v1560
        %v1562 = vrot.slane %v1544, 4
        %v1563 = vadd.f32 %v1544, %v1562
        %v1564 = vrot.slane %v1563, 2
        %v1565 = vadd.f32 %v1563, %v1564
        %v1566 = vrot.slane %v1565, 1
        %v1567 = vadd.f32 %v1565, %v1566
        %v1568 = vrot.slane %v1546, 4
        %v1569 = vadd.f32 %v1546, %v1568
        %v1570 = vrot.slane %v1569, 2
        %v1571 = vadd.f32 %v1569, %v1570
        %v1572 = vrot.slane %v1571, 1
        %v1573 = vadd.f32 %v1571, %v1572
        %v1574 = vmul.f32 %v1555, %v961
        %v1575 = vmul.f32 %v1561, %v961
        %v1576 = vmul.f32 %v1567, %v961
        %v1577 = vmul.f32 %v1573, %v961
        %v1578 = vsub.f32 %v1503, %v1574
        %v1579 = vsub.f32 %v1505, %v1575
        %v1580 = vsub.f32 %v1544, %v1576
        %v1581 = vsub.f32 %v1546, %v1577
        %v1582 = vmul.f32 %v1578, %v1578
        %v1583 = vmul.f32 %v1579, %v1579
        %v1584 = vmul.f32 %v1580, %v1580
        %v1585 = vmul.f32 %v1581, %v1581
        %v1586 = vrot.slane %v1582, 4
        %v1587 = vadd.f32 %v1582, %v1586
        %v1588 = vrot.slane %v1587, 2
        %v1589 = vadd.f32 %v1587, %v1588
        %v1590 = vrot.slane %v1589, 1
        %v1591 = vadd.f32 %v1589, %v1590
        %v1592 = vrot.slane %v1583, 4
        %v1593 = vadd.f32 %v1583, %v1592
        %v1594 = vrot.slane %v1593, 2
        %v1595 = vadd.f32 %v1593, %v1594
        %v1596 = vrot.slane %v1595, 1
        %v1597 = vadd.f32 %v1595, %v1596
        %v1598 = vrot.slane %v1584, 4
        %v1599 = vadd.f32 %v1584, %v1598
        %v1600 = vrot.slane %v1599, 2
        %v1601 = vadd.f32 %v1599, %v1600
        %v1602 = vrot.slane %v1601, 1
        %v1603 = vadd.f32 %v1601, %v1602
        %v1604 = vrot.slane %v1585, 4
        %v1605 = vadd.f32 %v1585, %v1604
        %v1606 = vrot.slane %v1605, 2
        %v1607 = vadd.f32 %v1605, %v1606
        %v1608 = vrot.slane %v1607, 1
        %v1609 = vadd.f32 %v1607, %v1608
        %v1610 = vmul.f32 %v1591, %v961
        %v1611 = vmul.f32 %v1597, %v961
        %v1612 = vmul.f32 %v1603, %v961
        %v1613 = vmul.f32 %v1609, %v961
        %v1614 = vld [vmem:[%s9] sm:$0xf]
        %v1615 = vadd.f32 %v1610, 0.8
        %v1616 = vadd.f32 %v1611, 0.8
        %v1617 = vadd.f32 %v1612, 0.8
        %v1618 = vadd.f32 %v1613, 0.8
        %v1619 = vrsqrt.pop %v1615
        %v1620 = vrsqrt.pop %v1616
        %v1621 = vrsqrt.pop %v1617
        %v1622 = vrsqrt.pop %v1618
        %v1627 = vcombine.low %v1619, %v1620
        %v1628 = vcombine.low %v1621, %v1622
        %v1630 = vunpack.c.l.s4 1966171168
        %v1631 = vunpack.c.0.s8 %v1630
        %v1632 = vlaneseq
        %v1633 = vshrl.u32 %v1632, 7
        %v1634 = vsub.s32 %v1631, %v1633
        %v1635 = vrot.slane %v1627, %v1634
        %v1637 = vunpack.c.l.s4 1966171168
        %v1638 = vunpack.c.0.s8 %v1637
        %v1639 = vlaneseq
        %v1640 = vshrl.u32 %v1639, 7
        %v1641 = vsub.s32 %v1638, %v1640
        %v1642 = vrot.slane %v1628, %v1641
        %v1643 = vcombine.low %v1635, %v1642
        %v1645 = vunpack.c.l.s4 1966171168
        %v1646 = vunpack.c.0.s8 %v1645
        %v1647 = vlaneseq
        %v1648 = vshrl.u32 %v1647, 7
        %v1649 = vsub.s32 %v1646, %v1648
        %v1650 = vrot.slane %v1643, %v1649
        %v1652 = vmul.f32 %v1614, %v1650
        %v1653 = vld [vmem:[#allocation13] sm:$0xf]
        %v1655 = vlaneseq
        %v1656 = vshrl.u32 %v1655, 7
        %v1657 = vsub.s32 0, %v1656
        %v1658 = vrot.slane %v1652, %v1657
        %v1659 = vlaneseq
        %v1660 = vshrl.u32 %v1659, 7
        %v1661 = vsub.s32 1, %v1660
        %v1662 = vrot.slane %v1652, %v1661
        %v1663 = vlaneseq
        %v1664 = vshrl.u32 %v1663, 7
        %v1665 = vsub.s32 2, %v1664
        %v1666 = vrot.slane %v1652, %v1665
        %v1667 = vlaneseq
        %v1668 = vshrl.u32 %v1667, 7
        %v1669 = vsub.s32 3, %v1668
        %v1670 = vrot.slane %v1652, %v1669
        %v1675 = vmul.f32 %v1574, %v1658
        %v1676 = vmul.f32 %v1575, %v1662
        %v1677 = vmul.f32 %v1576, %v1666
        %v1678 = vmul.f32 %v1577, %v1670
        %v1683 = vcombine.low %v1675, %v1676
        %v1684 = vcombine.low %v1677, %v1678
        %v1686 = vunpack.c.l.s4 1966171168
        %v1687 = vunpack.c.0.s8 %v1686
        %v1688 = vlaneseq
        %v1689 = vshrl.u32 %v1688, 7
        %v1690 = vsub.s32 %v1687, %v1689
        %v1691 = vrot.slane %v1683, %v1690
        %v1693 = vunpack.c.l.s4 1966171168
        %v1694 = vunpack.c.0.s8 %v1693
        %v1695 = vlaneseq
        %v1696 = vshrl.u32 %v1695, 7
        %v1697 = vsub.s32 %v1694, %v1696
        %v1698 = vrot.slane %v1684, %v1697
        %v1699 = vcombine.low %v1691, %v1698
        %v1701 = vunpack.c.l.s4 1966171168
        %v1702 = vunpack.c.0.s8 %v1701
        %v1703 = vlaneseq
        %v1704 = vshrl.u32 %v1703, 7
        %v1705 = vsub.s32 %v1702, %v1704
        %v1706 = vrot.slane %v1699, %v1705
        %v1708 = vsub.f32 %v1653, %v1706
        %v1709 = vmul.f32 %v1503, %v1658
        %v1710 = vmul.f32 %v1505, %v1662
        %v1711 = vmul.f32 %v1544, %v1666
        %v1712 = vmul.f32 %v1546, %v1670
        %v1714 = vlaneseq
        %v1715 = vshrl.u32 %v1714, 7
        %v1716 = vsub.s32 0, %v1715
        %v1717 = vrot.slane %v1708, %v1716
        %v1718 = vlaneseq
        %v1719 = vshrl.u32 %v1718, 7
        %v1720 = vsub.s32 1, %v1719
        %v1721 = vrot.slane %v1708, %v1720
        %v1722 = vlaneseq
        %v1723 = vshrl.u32 %v1722, 7
        %v1724 = vsub.s32 2, %v1723
        %v1725 = vrot.slane %v1708, %v1724
        %v1726 = vlaneseq
        %v1727 = vshrl.u32 %v1726, 7
        %v1728 = vsub.s32 3, %v1727
        %v1729 = vrot.slane %v1708, %v1728
        %v1734 = vadd.f32 %v1709, %v1717
        %v1735 = vadd.f32 %v1710, %v1721
        %v1736 = vadd.f32 %v1711, %v1725
        %v1737 = vadd.f32 %v1712, %v1729
        %vm1738 = vcmp.gt.f32.partialorder %v1734, 0.0
        %vm1739 = vcmp.gt.f32.partialorder %v1735, 0.0
        %vm1740 = vcmp.gt.f32.partialorder %v1736, 0.0
        %vm1741 = vcmp.gt.f32.partialorder %v1737, 0.0
        %v1742 = vmul.f32 %v1734, 0.2
        %v1743 = vmul.f32 %v1735, 0.2
        %v1744 = vmul.f32 %v1736, 0.2
        %v1745 = vmul.f32 %v1737, 0.2
        %v1746 = vsel %vm1738, %v1734, %v1742
        %v1747 = vsel %vm1739, %v1735, %v1743
        %v1748 = vsel %vm1740, %v1736, %v1744
        %v1749 = vsel %vm1741, %v1737, %v1745
        %v1750 = vpack.c.bf16 %v1746, %v1746
        %v1751 = vpack.c.bf16 %v1747, %v1747
        %v1752 = vpack.c.bf16 %v1748, %v1748
        %v1753 = vpack.c.bf16 %v1749, %v1749
        %v1754 = vld [vmem:[#allocation15] sm:$0xff]
        %v1755 = vld [vmem:[#allocation15 + $0x8] sm:$0xff]
        %v1756 = vld [vmem:[#allocation15 + $0x10] sm:$0xff]
        %v1757 = vld [vmem:[#allocation15 + $0x18] sm:$0xff]
        %v1758 = vld [vmem:[#allocation15 + $0x20] sm:$0xff]
        %v1759 = vld [vmem:[#allocation15 + $0x28] sm:$0xff]
        %v1760 = vld [vmem:[#allocation15 + $0x30] sm:$0xff]
        %v1761 = vld [vmem:[#allocation15 + $0x38] sm:$0xff]
        %v1762 = vld [vmem:[#allocation15 + $0x40] sm:$0xff]
        %v1763 = vld [vmem:[#allocation15 + $0x48] sm:$0xff]
        %v1764 = vld [vmem:[#allocation15 + $0x50] sm:$0xff]
        %v1765 = vld [vmem:[#allocation15 + $0x58] sm:$0xff]
        %v1766 = vld [vmem:[#allocation15 + $0x60] sm:$0xff]
        %v1767 = vld [vmem:[#allocation15 + $0x68] sm:$0xff]
        %v1768 = vld [vmem:[#allocation15 + $0x70] sm:$0xff]
        %v1769 = vld [vmem:[#allocation15 + $0x78] sm:$0xff]
        %v1770 = vld [vmem:[#allocation15 + $0x80] sm:$0xff]
        %v1771 = vld [vmem:[#allocation15 + $0x88] sm:$0xff]
        %v1772 = vld [vmem:[#allocation15 + $0x90] sm:$0xff]
        %v1773 = vld [vmem:[#allocation15 + $0x98] sm:$0xff]
        %v1774 = vld [vmem:[#allocation15 + $0xa0] sm:$0xff]
        %v1775 = vld [vmem:[#allocation15 + $0xa8] sm:$0xff]
        %v1776 = vld [vmem:[#allocation15 + $0xb0] sm:$0xff]
        %v1777 = vld [vmem:[#allocation15 + $0xb8] sm:$0xff]
        %v1778 = vld [vmem:[#allocation15 + $0xc0] sm:$0xff]
        %v1779 = vld [vmem:[#allocation15 + $0xc8] sm:$0xff]
        %v1780 = vld [vmem:[#allocation15 + $0xd0] sm:$0xff]
        %v1781 = vld [vmem:[#allocation15 + $0xd8] sm:$0xff]
        %v1782 = vld [vmem:[#allocation15 + $0xe0] sm:$0xff]
        %v1783 = vld [vmem:[#allocation15 + $0xe8] sm:$0xff]
        %v1784 = vld [vmem:[#allocation15 + $0xf0] sm:$0xff]
        %v1785 = vld [vmem:[#allocation15 + $0xf8] sm:$0xff]
        %v1786 = vld [vmem:[#allocation15 + $0x100] sm:$0xff]
        %v1787 = vld [vmem:[#allocation15 + $0x108] sm:$0xff]
        %v1788 = vld [vmem:[#allocation15 + $0x110] sm:$0xff]
        %v1789 = vld [vmem:[#allocation15 + $0x118] sm:$0xff]
        %v1790 = vld [vmem:[#allocation15 + $0x120] sm:$0xff]
        %v1791 = vld [vmem:[#allocation15 + $0x128] sm:$0xff]
        %v1792 = vld [vmem:[#allocation15 + $0x130] sm:$0xff]
        %v1793 = vld [vmem:[#allocation15 + $0x138] sm:$0xff]
        %v1794 = vld [vmem:[#allocation15 + $0x140] sm:$0xff]
        %v1795 = vld [vmem:[#allocation15 + $0x148] sm:$0xff]
        %v1796 = vld [vmem:[#allocation15 + $0x150] sm:$0xff]
        %v1797 = vld [vmem:[#allocation15 + $0x158] sm:$0xff]
        %v1798 = vld [vmem:[#allocation15 + $0x160] sm:$0xff]
        %v1799 = vld [vmem:[#allocation15 + $0x168] sm:$0xff]
        %v1800 = vld [vmem:[#allocation15 + $0x170] sm:$0xff]
        %v1801 = vld [vmem:[#allocation15 + $0x178] sm:$0xff]
        %v1802 = vld [vmem:[#allocation15 + $0x180] sm:$0xff]
        %v1803 = vld [vmem:[#allocation15 + $0x188] sm:$0xff]
        %v1804 = vld [vmem:[#allocation15 + $0x190] sm:$0xff]
        %v1805 = vld [vmem:[#allocation15 + $0x198] sm:$0xff]
        %v1806 = vld [vmem:[#allocation15 + $0x1a0] sm:$0xff]
        %v1807 = vld [vmem:[#allocation15 + $0x1a8] sm:$0xff]
        %v1808 = vld [vmem:[#allocation15 + $0x1b0] sm:$0xff]
        %v1809 = vld [vmem:[#allocation15 + $0x1b8] sm:$0xff]
        %v1810 = vld [vmem:[#allocation15 + $0x1c0] sm:$0xff]
        %v1811 = vld [vmem:[#allocation15 + $0x1c8] sm:$0xff]
        %v1812 = vld [vmem:[#allocation15 + $0x1d0] sm:$0xff]
        %v1813 = vld [vmem:[#allocation15 + $0x1d8] sm:$0xff]
        %v1814 = vld [vmem:[#allocation15 + $0x1e0] sm:$0xff]
        %v1815 = vld [vmem:[#allocation15 + $0x1e8] sm:$0xff]
        %v1816 = vld [vmem:[#allocation15 + $0x1f0] sm:$0xff]
        %v1817 = vld [vmem:[#allocation15 + $0x1f8] sm:$0xff]
        %v1818 = vld [vmem:[#allocation15 + $0x200] sm:$0xff]
        %v1819 = vld [vmem:[#allocation15 + $0x208] sm:$0xff]
        %v1820 = vld [vmem:[#allocation15 + $0x210] sm:$0xff]
        %v1821 = vld [vmem:[#allocation15 + $0x218] sm:$0xff]
        %v1822 = vld [vmem:[#allocation15 + $0x220] sm:$0xff]
        %v1823 = vld [vmem:[#allocation15 + $0x228] sm:$0xff]
        %v1824 = vld [vmem:[#allocation15 + $0x230] sm:$0xff]
        %v1825 = vld [vmem:[#allocation15 + $0x238] sm:$0xff]
        %v1826 = vld [vmem:[#allocation15 + $0x240] sm:$0xff]
        %v1827 = vld [vmem:[#allocation15 + $0x248] sm:$0xff]
        %v1828 = vld [vmem:[#allocation15 + $0x250] sm:$0xff]
        %v1829 = vld [vmem:[#allocation15 + $0x258] sm:$0xff]
        %v1830 = vld [vmem:[#allocation15 + $0x260] sm:$0xff]
        %v1831 = vld [vmem:[#allocation15 + $0x268] sm:$0xff]
        %v1832 = vld [vmem:[#allocation15 + $0x270] sm:$0xff]
        %v1833 = vld [vmem:[#allocation15 + $0x278] sm:$0xff]
        %v1834 = vld [vmem:[#allocation15 + $0x280] sm:$0xff]
        %v1835 = vld [vmem:[#allocation15 + $0x288] sm:$0xff]
        %v1836 = vld [vmem:[#allocation15 + $0x290] sm:$0xff]
        %v1837 = vld [vmem:[#allocation15 + $0x298] sm:$0xff]
        %v1838 = vld [vmem:[#allocation15 + $0x2a0] sm:$0xff]
        %v1839 = vld [vmem:[#allocation15 + $0x2a8] sm:$0xff]
        %v1840 = vld [vmem:[#allocation15 + $0x2b0] sm:$0xff]
        %v1841 = vld [vmem:[#allocation15 + $0x2b8] sm:$0xff]
        %v1842 = vld [vmem:[#allocation15 + $0x2c0] sm:$0xff]
        %v1843 = vld [vmem:[#allocation15 + $0x2c8] sm:$0xff]
        %v1844 = vld [vmem:[#allocation15 + $0x2d0] sm:$0xff]
        %v1845 = vld [vmem:[#allocation15 + $0x2d8] sm:$0xff]
        %v1846 = vld [vmem:[#allocation15 + $0x2e0] sm:$0xff]
        %v1847 = vld [vmem:[#allocation15 + $0x2e8] sm:$0xff]
        %v1848 = vld [vmem:[#allocation15 + $0x2f0] sm:$0xff]
        %v1849 = vld [vmem:[#allocation15 + $0x2f8] sm:$0xff]
        %v1850 = vld [vmem:[#allocation15 + $0x300] sm:$0xff]
        %v1851 = vld [vmem:[#allocation15 + $0x308] sm:$0xff]
        %v1852 = vld [vmem:[#allocation15 + $0x310] sm:$0xff]
        %v1853 = vld [vmem:[#allocation15 + $0x318] sm:$0xff]
        %v1854 = vld [vmem:[#allocation15 + $0x320] sm:$0xff]
        %v1855 = vld [vmem:[#allocation15 + $0x328] sm:$0xff]
        %v1856 = vld [vmem:[#allocation15 + $0x330] sm:$0xff]
        %v1857 = vld [vmem:[#allocation15 + $0x338] sm:$0xff]
        %v1858 = vld [vmem:[#allocation15 + $0x340] sm:$0xff]
        %v1859 = vld [vmem:[#allocation15 + $0x348] sm:$0xff]
        %v1860 = vld [vmem:[#allocation15 + $0x350] sm:$0xff]
        %v1861 = vld [vmem:[#allocation15 + $0x358] sm:$0xff]
        %v1862 = vld [vmem:[#allocation15 + $0x360] sm:$0xff]
        %v1863 = vld [vmem:[#allocation15 + $0x368] sm:$0xff]
        %v1864 = vld [vmem:[#allocation15 + $0x370] sm:$0xff]
        %v1865 = vld [vmem:[#allocation15 + $0x378] sm:$0xff]
        %v1866 = vld [vmem:[#allocation15 + $0x380] sm:$0xff]
        %v1867 = vld [vmem:[#allocation15 + $0x388] sm:$0xff]
        %v1868 = vld [vmem:[#allocation15 + $0x390] sm:$0xff]
        %v1869 = vld [vmem:[#allocation15 + $0x398] sm:$0xff]
        %v1870 = vld [vmem:[#allocation15 + $0x3a0] sm:$0xff]
        %v1871 = vld [vmem:[#allocation15 + $0x3a8] sm:$0xff]
        %v1872 = vld [vmem:[#allocation15 + $0x3b0] sm:$0xff]
        %v1873 = vld [vmem:[#allocation15 + $0x3b8] sm:$0xff]
        %v1874 = vld [vmem:[#allocation15 + $0x3c0] sm:$0xff]
        %v1875 = vld [vmem:[#allocation15 + $0x3c8] sm:$0xff]
        %v1876 = vld [vmem:[#allocation15 + $0x3d0] sm:$0xff]
        %v1877 = vld [vmem:[#allocation15 + $0x3d8] sm:$0xff]
        %v1878 = vld [vmem:[#allocation15 + $0x3e0] sm:$0xff]
        %v1879 = vld [vmem:[#allocation15 + $0x3e8] sm:$0xff]
        %v1880 = vld [vmem:[#allocation15 + $0x3f0] sm:$0xff]
        %v1881 = vld [vmem:[#allocation15 + $0x3f8] sm:$0xff]
        %v1882 = vld [vmem:[#allocation15 + $0x400] sm:$0xff]
        %v1883 = vld [vmem:[#allocation15 + $0x408] sm:$0xff]
        %v1884 = vld [vmem:[#allocation15 + $0x410] sm:$0xff]
        %v1885 = vld [vmem:[#allocation15 + $0x418] sm:$0xff]
        %v1886 = vld [vmem:[#allocation15 + $0x420] sm:$0xff]
        %v1887 = vld [vmem:[#allocation15 + $0x428] sm:$0xff]
        %v1888 = vld [vmem:[#allocation15 + $0x430] sm:$0xff]
        %v1889 = vld [vmem:[#allocation15 + $0x438] sm:$0xff]
        %v1890 = vld [vmem:[#allocation15 + $0x440] sm:$0xff]
        %v1891 = vld [vmem:[#allocation15 + $0x448] sm:$0xff]
        %v1892 = vld [vmem:[#allocation15 + $0x450] sm:$0xff]
        %v1893 = vld [vmem:[#allocation15 + $0x458] sm:$0xff]
        %v1894 = vld [vmem:[#allocation15 + $0x460] sm:$0xff]
        %v1895 = vld [vmem:[#allocation15 + $0x468] sm:$0xff]
        %v1896 = vld [vmem:[#allocation15 + $0x470] sm:$0xff]
        %v1897 = vld [vmem:[#allocation15 + $0x478] sm:$0xff]
        %v1898 = vld [vmem:[#allocation15 + $0x480] sm:$0xff]
        %v1899 = vld [vmem:[#allocation15 + $0x488] sm:$0xff]
        %v1900 = vld [vmem:[#allocation15 + $0x490] sm:$0xff]
        %v1901 = vld [vmem:[#allocation15 + $0x498] sm:$0xff]
        %v1902 = vld [vmem:[#allocation15 + $0x4a0] sm:$0xff]
        %v1903 = vld [vmem:[#allocation15 + $0x4a8] sm:$0xff]
        %v1904 = vld [vmem:[#allocation15 + $0x4b0] sm:$0xff]
        %v1905 = vld [vmem:[#allocation15 + $0x4b8] sm:$0xff]
        %v1906 = vld [vmem:[#allocation15 + $0x4c0] sm:$0xff]
        %v1907 = vld [vmem:[#allocation15 + $0x4c8] sm:$0xff]
        %v1908 = vld [vmem:[#allocation15 + $0x4d0] sm:$0xff]
        %v1909 = vld [vmem:[#allocation15 + $0x4d8] sm:$0xff]
        %v1910 = vld [vmem:[#allocation15 + $0x4e0] sm:$0xff]
        %v1911 = vld [vmem:[#allocation15 + $0x4e8] sm:$0xff]
        %v1912 = vld [vmem:[#allocation15 + $0x4f0] sm:$0xff]
        %v1913 = vld [vmem:[#allocation15 + $0x4f8] sm:$0xff]
        %v1914 = vld [vmem:[#allocation15 + $0x500] sm:$0xff]
        %v1915 = vld [vmem:[#allocation15 + $0x508] sm:$0xff]
        %v1916 = vld [vmem:[#allocation15 + $0x510] sm:$0xff]
        %v1917 = vld [vmem:[#allocation15 + $0x518] sm:$0xff]
        %v1918 = vld [vmem:[#allocation15 + $0x520] sm:$0xff]
        %v1919 = vld [vmem:[#allocation15 + $0x528] sm:$0xff]
        %v1920 = vld [vmem:[#allocation15 + $0x530] sm:$0xff]
        %v1921 = vld [vmem:[#allocation15 + $0x538] sm:$0xff]
        %v1922 = vld [vmem:[#allocation15 + $0x540] sm:$0xff]
        %v1923 = vld [vmem:[#allocation15 + $0x548] sm:$0xff]
        %v1924 = vld [vmem:[#allocation15 + $0x550] sm:$0xff]
        %v1925 = vld [vmem:[#allocation15 + $0x558] sm:$0xff]
        %v1926 = vld [vmem:[#allocation15 + $0x560] sm:$0xff]
        %v1927 = vld [vmem:[#allocation15 + $0x568] sm:$0xff]
        %v1928 = vld [vmem:[#allocation15 + $0x570] sm:$0xff]
        %v1929 = vld [vmem:[#allocation15 + $0x578] sm:$0xff]
        %v1930 = vld [vmem:[#allocation15 + $0x580] sm:$0xff]
        %v1931 = vld [vmem:[#allocation15 + $0x588] sm:$0xff]
        %v1932 = vld [vmem:[#allocation15 + $0x590] sm:$0xff]
        %v1933 = vld [vmem:[#allocation15 + $0x598] sm:$0xff]
        %v1934 = vld [vmem:[#allocation15 + $0x5a0] sm:$0xff]
        %v1935 = vld [vmem:[#allocation15 + $0x5a8] sm:$0xff]
        %v1936 = vld [vmem:[#allocation15 + $0x5b0] sm:$0xff]
        %v1937 = vld [vmem:[#allocation15 + $0x5b8] sm:$0xff]
        %v1938 = vld [vmem:[#allocation15 + $0x5c0] sm:$0xff]
        %v1939 = vld [vmem:[#allocation15 + $0x5c8] sm:$0xff]
        %v1940 = vld [vmem:[#allocation15 + $0x5d0] sm:$0xff]
        %v1941 = vld [vmem:[#allocation15 + $0x5d8] sm:$0xff]
        %v1942 = vld [vmem:[#allocation15 + $0x5e0] sm:$0xff]
        %v1943 = vld [vmem:[#allocation15 + $0x5e8] sm:$0xff]
        %v1944 = vld [vmem:[#allocation15 + $0x5f0] sm:$0xff]
        %v1945 = vld [vmem:[#allocation15 + $0x5f8] sm:$0xff]
        %v1946 = vld [vmem:[#allocation15 + $0x600] sm:$0xff]
        %v1947 = vld [vmem:[#allocation15 + $0x608] sm:$0xff]
        %v1948 = vld [vmem:[#allocation15 + $0x610] sm:$0xff]
        %v1949 = vld [vmem:[#allocation15 + $0x618] sm:$0xff]
        %v1950 = vld [vmem:[#allocation15 + $0x620] sm:$0xff]
        %v1951 = vld [vmem:[#allocation15 + $0x628] sm:$0xff]
        %v1952 = vld [vmem:[#allocation15 + $0x630] sm:$0xff]
        %v1953 = vld [vmem:[#allocation15 + $0x638] sm:$0xff]
        %v1954 = vld [vmem:[#allocation15 + $0x640] sm:$0xff]
        %v1955 = vld [vmem:[#allocation15 + $0x648] sm:$0xff]
        %v1956 = vld [vmem:[#allocation15 + $0x650] sm:$0xff]
        %v1957 = vld [vmem:[#allocation15 + $0x658] sm:$0xff]
        %v1958 = vld [vmem:[#allocation15 + $0x660] sm:$0xff]
        %v1959 = vld [vmem:[#allocation15 + $0x668] sm:$0xff]
        %v1960 = vld [vmem:[#allocation15 + $0x670] sm:$0xff]
        %v1961 = vld [vmem:[#allocation15 + $0x678] sm:$0xff]
        %v1962 = vld [vmem:[#allocation15 + $0x680] sm:$0xff]
        %v1963 = vld [vmem:[#allocation15 + $0x688] sm:$0xff]
        %v1964 = vld [vmem:[#allocation15 + $0x690] sm:$0xff]
        %v1965 = vld [vmem:[#allocation15 + $0x698] sm:$0xff]
        %v1966 = vld [vmem:[#allocation15 + $0x6a0] sm:$0xff]
        %v1967 = vld [vmem:[#allocation15 + $0x6a8] sm:$0xff]
        %v1968 = vld [vmem:[#allocation15 + $0x6b0] sm:$0xff]
        %v1969 = vld [vmem:[#allocation15 + $0x6b8] sm:$0xff]
        %v1970 = vld [vmem:[#allocation15 + $0x6c0] sm:$0xff]
        %v1971 = vld [vmem:[#allocation15 + $0x6c8] sm:$0xff]
        %v1972 = vld [vmem:[#allocation15 + $0x6d0] sm:$0xff]
        %v1973 = vld [vmem:[#allocation15 + $0x6d8] sm:$0xff]
        %v1974 = vld [vmem:[#allocation15 + $0x6e0] sm:$0xff]
        %v1975 = vld [vmem:[#allocation15 + $0x6e8] sm:$0xff]
        %v1976 = vld [vmem:[#allocation15 + $0x6f0] sm:$0xff]
        %v1977 = vld [vmem:[#allocation15 + $0x6f8] sm:$0xff]
        %v1978 = vld [vmem:[#allocation15 + $0x700] sm:$0xff]
        %v1979 = vld [vmem:[#allocation15 + $0x708] sm:$0xff]
        %v1980 = vld [vmem:[#allocation15 + $0x710] sm:$0xff]
        %v1981 = vld [vmem:[#allocation15 + $0x718] sm:$0xff]
        %v1982 = vld [vmem:[#allocation15 + $0x720] sm:$0xff]
        %v1983 = vld [vmem:[#allocation15 + $0x728] sm:$0xff]
        %v1984 = vld [vmem:[#allocation15 + $0x730] sm:$0xff]
        %v1985 = vld [vmem:[#allocation15 + $0x738] sm:$0xff]
        %v1986 = vld [vmem:[#allocation15 + $0x740] sm:$0xff]
        %v1987 = vld [vmem:[#allocation15 + $0x748] sm:$0xff]
        %v1988 = vld [vmem:[#allocation15 + $0x750] sm:$0xff]
        %v1989 = vld [vmem:[#allocation15 + $0x758] sm:$0xff]
        %v1990 = vld [vmem:[#allocation15 + $0x760] sm:$0xff]
        %v1991 = vld [vmem:[#allocation15 + $0x768] sm:$0xff]
        %v1992 = vld [vmem:[#allocation15 + $0x770] sm:$0xff]
        %v1993 = vld [vmem:[#allocation15 + $0x778] sm:$0xff]
        %v1994 = vld [vmem:[#allocation15 + $0x780] sm:$0xff]
        %v1995 = vld [vmem:[#allocation15 + $0x788] sm:$0xff]
        %v1996 = vld [vmem:[#allocation15 + $0x790] sm:$0xff]
        %v1997 = vld [vmem:[#allocation15 + $0x798] sm:$0xff]
        %v1998 = vld [vmem:[#allocation15 + $0x7a0] sm:$0xff]
        %v1999 = vld [vmem:[#allocation15 + $0x7a8] sm:$0xff]
        %v2000 = vld [vmem:[#allocation15 + $0x7b0] sm:$0xff]
        %v2001 = vld [vmem:[#allocation15 + $0x7b8] sm:$0xff]
        %v2002 = vld [vmem:[#allocation15 + $0x7c0] sm:$0xff]
        %v2003 = vld [vmem:[#allocation15 + $0x7c8] sm:$0xff]
        %v2004 = vld [vmem:[#allocation15 + $0x7d0] sm:$0xff]
        %v2005 = vld [vmem:[#allocation15 + $0x7d8] sm:$0xff]
        %v2006 = vld [vmem:[#allocation15 + $0x7e0] sm:$0xff]
        %v2007 = vld [vmem:[#allocation15 + $0x7e8] sm:$0xff]
        %v2008 = vld [vmem:[#allocation15 + $0x7f0] sm:$0xff]
        %v2009 = vld [vmem:[#allocation15 + $0x7f8] sm:$0xff]
        %v2010 = vld [vmem:[%s12] sm:$0xff]
        %v2012 = vlaneseq
        %v2013 = vshrl.u32 %v2012, 7
        %v2014 = vsub.s32 0, %v2013
        %v2015 = vrot.slane %v2010, %v2014
        %v2016 = vlaneseq
        %v2017 = vshrl.u32 %v2016, 7
        %v2018 = vsub.s32 1, %v2017
        %v2019 = vrot.slane %v2010, %v2018
        %v2020 = vlaneseq
        %v2021 = vshrl.u32 %v2020, 7
        %v2022 = vsub.s32 2, %v2021
        %v2023 = vrot.slane %v2010, %v2022
        %v2024 = vlaneseq
        %v2025 = vshrl.u32 %v2024, 7
        %v2026 = vsub.s32 3, %v2025
        %v2027 = vrot.slane %v2010, %v2026
        %v2028 = vlaneseq
        %v2029 = vshrl.u32 %v2028, 7
        %v2030 = vsub.s32 4, %v2029
        %v2031 = vrot.slane %v2010, %v2030
        %v2032 = vlaneseq
        %v2033 = vshrl.u32 %v2032, 7
        %v2034 = vsub.s32 5, %v2033
        %v2035 = vrot.slane %v2010, %v2034
        %v2036 = vlaneseq
        %v2037 = vshrl.u32 %v2036, 7
        %v2038 = vsub.s32 6, %v2037
        %v2039 = vrot.slane %v2010, %v2038
        %v2040 = vlaneseq
        %v2041 = vshrl.u32 %v2040, 7
        %v2042 = vsub.s32 7, %v2041
        %v2043 = vrot.slane %v2010, %v2042
        %v2308 = vunpack.c.l.b16 %v1754
        %v2309 = vunpack.c.h.b16 %v1754
        %v2310 = vunpack.c.l.b16 %v1755
        %v2311 = vunpack.c.h.b16 %v1755
        %v2312 = vunpack.c.l.b16 %v1756
        %v2313 = vunpack.c.h.b16 %v1756
        %v2314 = vunpack.c.l.b16 %v1757
        %v2315 = vunpack.c.h.b16 %v1757
        %v2316 = vunpack.c.l.b16 %v1758
        %v2317 = vunpack.c.h.b16 %v1758
        %v2318 = vunpack.c.l.b16 %v1759
        %v2319 = vunpack.c.h.b16 %v1759
        %v2320 = vunpack.c.l.b16 %v1760
        %v2321 = vunpack.c.h.b16 %v1760
        %v2322 = vunpack.c.l.b16 %v1761
        %v2323 = vunpack.c.h.b16 %v1761
        %v2324 = vunpack.c.l.b16 %v1762
        %v2325 = vunpack.c.h.b16 %v1762
        %v2326 = vunpack.c.l.b16 %v1763
        %v2327 = vunpack.c.h.b16 %v1763
        %v2328 = vunpack.c.l.b16 %v1764
        %v2329 = vunpack.c.h.b16 %v1764
        %v2330 = vunpack.c.l.b16 %v1765
        %v2331 = vunpack.c.h.b16 %v1765
        %v2332 = vunpack.c.l.b16 %v1766
        %v2333 = vunpack.c.h.b16 %v1766
        %v2334 = vunpack.c.l.b16 %v1767
        %v2335 = vunpack.c.h.b16 %v1767
        %v2336 = vunpack.c.l.b16 %v1768
        %v2337 = vunpack.c.h.b16 %v1768
        %v2338 = vunpack.c.l.b16 %v1769
        %v2339 = vunpack.c.h.b16 %v1769
        %v2340 = vunpack.c.l.b16 %v1770
        %v2341 = vunpack.c.h.b16 %v1770
        %v2342 = vunpack.c.l.b16 %v1771
        %v2343 = vunpack.c.h.b16 %v1771
        %v2344 = vunpack.c.l.b16 %v1772
        %v2345 = vunpack.c.h.b16 %v1772
        %v2346 = vunpack.c.l.b16 %v1773
        %v2347 = vunpack.c.h.b16 %v1773
        %v2348 = vunpack.c.l.b16 %v1774
        %v2349 = vunpack.c.h.b16 %v1774
        %v2350 = vunpack.c.l.b16 %v1775
        %v2351 = vunpack.c.h.b16 %v1775
        %v2352 = vunpack.c.l.b16 %v1776
        %v2353 = vunpack.c.h.b16 %v1776
        %v2354 = vunpack.c.l.b16 %v1777
        %v2355 = vunpack.c.h.b16 %v1777
        %v2356 = vunpack.c.l.b16 %v1778
        %v2357 = vunpack.c.h.b16 %v1778
        %v2358 = vunpack.c.l.b16 %v1779
        %v2359 = vunpack.c.h.b16 %v1779
        %v2360 = vunpack.c.l.b16 %v1780
        %v2361 = vunpack.c.h.b16 %v1780
        %v2362 = vunpack.c.l.b16 %v1781
        %v2363 = vunpack.c.h.b16 %v1781
        %v2364 = vunpack.c.l.b16 %v1782
        %v2365 = vunpack.c.h.b16 %v1782
        %v2366 = vunpack.c.l.b16 %v1783
        %v2367 = vunpack.c.h.b16 %v1783
        %v2368 = vunpack.c.l.b16 %v1784
        %v2369 = vunpack.c.h.b16 %v1784
        %v2370 = vunpack.c.l.b16 %v1785
        %v2371 = vunpack.c.h.b16 %v1785
        %v2372 = vunpack.c.l.b16 %v1786
        %v2373 = vunpack.c.h.b16 %v1786
        %v2374 = vunpack.c.l.b16 %v1787
        %v2375 = vunpack.c.h.b16 %v1787
        %v2376 = vunpack.c.l.b16 %v1788
        %v2377 = vunpack.c.h.b16 %v1788
        %v2378 = vunpack.c.l.b16 %v1789
        %v2379 = vunpack.c.h.b16 %v1789
        %v2380 = vunpack.c.l.b16 %v1790
        %v2381 = vunpack.c.h.b16 %v1790
        %v2382 = vunpack.c.l.b16 %v1791
        %v2383 = vunpack.c.h.b16 %v1791
        %v2384 = vunpack.c.l.b16 %v1792
        %v2385 = vunpack.c.h.b16 %v1792
        %v2386 = vunpack.c.l.b16 %v1793
        %v2387 = vunpack.c.h.b16 %v1793
        %v2388 = vunpack.c.l.b16 %v1794
        %v2389 = vunpack.c.h.b16 %v1794
        %v2390 = vunpack.c.l.b16 %v1795
        %v2391 = vunpack.c.h.b16 %v1795
        %v2392 = vunpack.c.l.b16 %v1796
        %v2393 = vunpack.c.h.b16 %v1796
        %v2394 = vunpack.c.l.b16 %v1797
        %v2395 = vunpack.c.h.b16 %v1797
        %v2396 = vunpack.c.l.b16 %v1798
        %v2397 = vunpack.c.h.b16 %v1798
        %v2398 = vunpack.c.l.b16 %v1799
        %v2399 = vunpack.c.h.b16 %v1799
        %v2400 = vunpack.c.l.b16 %v1800
        %v2401 = vunpack.c.h.b16 %v1800
        %v2402 = vunpack.c.l.b16 %v1801
        %v2403 = vunpack.c.h.b16 %v1801
        %v2404 = vunpack.c.l.b16 %v1802
        %v2405 = vunpack.c.h.b16 %v1802
        %v2406 = vunpack.c.l.b16 %v1803
        %v2407 = vunpack.c.h.b16 %v1803
        %v2408 = vunpack.c.l.b16 %v1804
        %v2409 = vunpack.c.h.b16 %v1804
        %v2410 = vunpack.c.l.b16 %v1805
        %v2411 = vunpack.c.h.b16 %v1805
        %v2412 = vunpack.c.l.b16 %v1806
        %v2413 = vunpack.c.h.b16 %v1806
        %v2414 = vunpack.c.l.b16 %v1807
        %v2415 = vunpack.c.h.b16 %v1807
        %v2416 = vunpack.c.l.b16 %v1808
        %v2417 = vunpack.c.h.b16 %v1808
        %v2418 = vunpack.c.l.b16 %v1809
        %v2419 = vunpack.c.h.b16 %v1809
        %v2420 = vunpack.c.l.b16 %v1810
        %v2421 = vunpack.c.h.b16 %v1810
        %v2422 = vunpack.c.l.b16 %v1811
        %v2423 = vunpack.c.h.b16 %v1811
        %v2424 = vunpack.c.l.b16 %v1812
        %v2425 = vunpack.c.h.b16 %v1812
        %v2426 = vunpack.c.l.b16 %v1813
        %v2427 = vunpack.c.h.b16 %v1813
        %v2428 = vunpack.c.l.b16 %v1814
        %v2429 = vunpack.c.h.b16 %v1814
        %v2430 = vunpack.c.l.b16 %v1815
        %v2431 = vunpack.c.h.b16 %v1815
        %v2432 = vunpack.c.l.b16 %v1816
        %v2433 = vunpack.c.h.b16 %v1816
        %v2434 = vunpack.c.l.b16 %v1817
        %v2435 = vunpack.c.h.b16 %v1817
        %v2436 = vunpack.c.l.b16 %v1818
        %v2437 = vunpack.c.h.b16 %v1818
        %v2438 = vunpack.c.l.b16 %v1819
        %v2439 = vunpack.c.h.b16 %v1819
        %v2440 = vunpack.c.l.b16 %v1820
        %v2441 = vunpack.c.h.b16 %v1820
        %v2442 = vunpack.c.l.b16 %v1821
        %v2443 = vunpack.c.h.b16 %v1821
        %v2444 = vunpack.c.l.b16 %v1822
        %v2445 = vunpack.c.h.b16 %v1822
        %v2446 = vunpack.c.l.b16 %v1823
        %v2447 = vunpack.c.h.b16 %v1823
        %v2448 = vunpack.c.l.b16 %v1824
        %v2449 = vunpack.c.h.b16 %v1824
        %v2450 = vunpack.c.l.b16 %v1825
        %v2451 = vunpack.c.h.b16 %v1825
        %v2452 = vunpack.c.l.b16 %v1826
        %v2453 = vunpack.c.h.b16 %v1826
        %v2454 = vunpack.c.l.b16 %v1827
        %v2455 = vunpack.c.h.b16 %v1827
        %v2456 = vunpack.c.l.b16 %v1828
        %v2457 = vunpack.c.h.b16 %v1828
        %v2458 = vunpack.c.l.b16 %v1829
        %v2459 = vunpack.c.h.b16 %v1829
        %v2460 = vunpack.c.l.b16 %v1830
        %v2461 = vunpack.c.h.b16 %v1830
        %v2462 = vunpack.c.l.b16 %v1831
        %v2463 = vunpack.c.h.b16 %v1831
        %v2464 = vunpack.c.l.b16 %v1832
        %v2465 = vunpack.c.h.b16 %v1832
        %v2466 = vunpack.c.l.b16 %v1833
        %v2467 = vunpack.c.h.b16 %v1833
        %v2468 = vunpack.c.l.b16 %v1834
        %v2469 = vunpack.c.h.b16 %v1834
        %v2470 = vunpack.c.l.b16 %v1835
        %v2471 = vunpack.c.h.b16 %v1835
        %v2472 = vunpack.c.l.b16 %v1836
        %v2473 = vunpack.c.h.b16 %v1836
        %v2474 = vunpack.c.l.b16 %v1837
        %v2475 = vunpack.c.h.b16 %v1837
        %v2476 = vunpack.c.l.b16 %v1838
        %v2477 = vunpack.c.h.b16 %v1838
        %v2478 = vunpack.c.l.b16 %v1839
        %v2479 = vunpack.c.h.b16 %v1839
        %v2480 = vunpack.c.l.b16 %v1840
        %v2481 = vunpack.c.h.b16 %v1840
        %v2482 = vunpack.c.l.b16 %v1841
        %v2483 = vunpack.c.h.b16 %v1841
        %v2484 = vunpack.c.l.b16 %v1842
        %v2485 = vunpack.c.h.b16 %v1842
        %v2486 = vunpack.c.l.b16 %v1843
        %v2487 = vunpack.c.h.b16 %v1843
        %v2488 = vunpack.c.l.b16 %v1844
        %v2489 = vunpack.c.h.b16 %v1844
        %v2490 = vunpack.c.l.b16 %v1845
        %v2491 = vunpack.c.h.b16 %v1845
        %v2492 = vunpack.c.l.b16 %v1846
        %v2493 = vunpack.c.h.b16 %v1846
        %v2494 = vunpack.c.l.b16 %v1847
        %v2495 = vunpack.c.h.b16 %v1847
        %v2496 = vunpack.c.l.b16 %v1848
        %v2497 = vunpack.c.h.b16 %v1848
        %v2498 = vunpack.c.l.b16 %v1849
        %v2499 = vunpack.c.h.b16 %v1849
        %v2500 = vunpack.c.l.b16 %v1850
        %v2501 = vunpack.c.h.b16 %v1850
        %v2502 = vunpack.c.l.b16 %v1851
        %v2503 = vunpack.c.h.b16 %v1851
        %v2504 = vunpack.c.l.b16 %v1852
        %v2505 = vunpack.c.h.b16 %v1852
        %v2506 = vunpack.c.l.b16 %v1853
        %v2507 = vunpack.c.h.b16 %v1853
        %v2508 = vunpack.c.l.b16 %v1854
        %v2509 = vunpack.c.h.b16 %v1854
        %v2510 = vunpack.c.l.b16 %v1855
        %v2511 = vunpack.c.h.b16 %v1855
        %v2512 = vunpack.c.l.b16 %v1856
        %v2513 = vunpack.c.h.b16 %v1856
        %v2514 = vunpack.c.l.b16 %v1857
        %v2515 = vunpack.c.h.b16 %v1857
        %v2516 = vunpack.c.l.b16 %v1858
        %v2517 = vunpack.c.h.b16 %v1858
        %v2518 = vunpack.c.l.b16 %v1859
        %v2519 = vunpack.c.h.b16 %v1859
        %v2520 = vunpack.c.l.b16 %v1860
        %v2521 = vunpack.c.h.b16 %v1860
        %v2522 = vunpack.c.l.b16 %v1861
        %v2523 = vunpack.c.h.b16 %v1861
        %v2524 = vunpack.c.l.b16 %v1862
        %v2525 = vunpack.c.h.b16 %v1862
        %v2526 = vunpack.c.l.b16 %v1863
        %v2527 = vunpack.c.h.b16 %v1863
        %v2528 = vunpack.c.l.b16 %v1864
        %v2529 = vunpack.c.h.b16 %v1864
        %v2530 = vunpack.c.l.b16 %v1865
        %v2531 = vunpack.c.h.b16 %v1865
        %v2532 = vunpack.c.l.b16 %v1866
        %v2533 = vunpack.c.h.b16 %v1866
        %v2534 = vunpack.c.l.b16 %v1867
        %v2535 = vunpack.c.h.b16 %v1867
        %v2536 = vunpack.c.l.b16 %v1868
        %v2537 = vunpack.c.h.b16 %v1868
        %v2538 = vunpack.c.l.b16 %v1869
        %v2539 = vunpack.c.h.b16 %v1869
        %v2540 = vunpack.c.l.b16 %v1870
        %v2541 = vunpack.c.h.b16 %v1870
        %v2542 = vunpack.c.l.b16 %v1871
        %v2543 = vunpack.c.h.b16 %v1871
        %v2544 = vunpack.c.l.b16 %v1872
        %v2545 = vunpack.c.h.b16 %v1872
        %v2546 = vunpack.c.l.b16 %v1873
        %v2547 = vunpack.c.h.b16 %v1873
        %v2548 = vunpack.c.l.b16 %v1874
        %v2549 = vunpack.c.h.b16 %v1874
        %v2550 = vunpack.c.l.b16 %v1875
        %v2551 = vunpack.c.h.b16 %v1875
        %v2552 = vunpack.c.l.b16 %v1876
        %v2553 = vunpack.c.h.b16 %v1876
        %v2554 = vunpack.c.l.b16 %v1877
        %v2555 = vunpack.c.h.b16 %v1877
        %v2556 = vunpack.c.l.b16 %v1878
        %v2557 = vunpack.c.h.b16 %v1878
        %v2558 = vunpack.c.l.b16 %v1879
        %v2559 = vunpack.c.h.b16 %v1879
        %v2560 = vunpack.c.l.b16 %v1880
        %v2561 = vunpack.c.h.b16 %v1880
        %v2562 = vunpack.c.l.b16 %v1881
        %v2563 = vunpack.c.h.b16 %v1881
        %v2564 = vunpack.c.l.b16 %v1882
        %v2565 = vunpack.c.h.b16 %v1882
        %v2566 = vunpack.c.l.b16 %v1883
        %v2567 = vunpack.c.h.b16 %v1883
        %v2568 = vunpack.c.l.b16 %v1884
        %v2569 = vunpack.c.h.b16 %v1884
        %v2570 = vunpack.c.l.b16 %v1885
        %v2571 = vunpack.c.h.b16 %v1885
        %v2572 = vunpack.c.l.b16 %v1886
        %v2573 = vunpack.c.h.b16 %v1886
        %v2574 = vunpack.c.l.b16 %v1887
        %v2575 = vunpack.c.h.b16 %v1887
        %v2576 = vunpack.c.l.b16 %v1888
        %v2577 = vunpack.c.h.b16 %v1888
        %v2578 = vunpack.c.l.b16 %v1889
        %v2579 = vunpack.c.h.b16 %v1889
        %v2580 = vunpack.c.l.b16 %v1890
        %v2581 = vunpack.c.h.b16 %v1890
        %v2582 = vunpack.c.l.b16 %v1891
        %v2583 = vunpack.c.h.b16 %v1891
        %v2584 = vunpack.c.l.b16 %v1892
        %v2585 = vunpack.c.h.b16 %v1892
        %v2586 = vunpack.c.l.b16 %v1893
        %v2587 = vunpack.c.h.b16 %v1893
        %v2588 = vunpack.c.l.b16 %v1894
        %v2589 = vunpack.c.h.b16 %v1894
        %v2590 = vunpack.c.l.b16 %v1895
        %v2591 = vunpack.c.h.b16 %v1895
        %v2592 = vunpack.c.l.b16 %v1896
        %v2593 = vunpack.c.h.b16 %v1896
        %v2594 = vunpack.c.l.b16 %v1897
        %v2595 = vunpack.c.h.b16 %v1897
        %v2596 = vunpack.c.l.b16 %v1898
        %v2597 = vunpack.c.h.b16 %v1898
        %v2598 = vunpack.c.l.b16 %v1899
        %v2599 = vunpack.c.h.b16 %v1899
        %v2600 = vunpack.c.l.b16 %v1900
        %v2601 = vunpack.c.h.b16 %v1900
        %v2602 = vunpack.c.l.b16 %v1901
        %v2603 = vunpack.c.h.b16 %v1901
        %v2604 = vunpack.c.l.b16 %v1902
        %v2605 = vunpack.c.h.b16 %v1902
        %v2606 = vunpack.c.l.b16 %v1903
        %v2607 = vunpack.c.h.b16 %v1903
        %v2608 = vunpack.c.l.b16 %v1904
        %v2609 = vunpack.c.h.b16 %v1904
        %v2610 = vunpack.c.l.b16 %v1905
        %v2611 = vunpack.c.h.b16 %v1905
        %v2612 = vunpack.c.l.b16 %v1906
        %v2613 = vunpack.c.h.b16 %v1906
        %v2614 = vunpack.c.l.b16 %v1907
        %v2615 = vunpack.c.h.b16 %v1907
        %v2616 = vunpack.c.l.b16 %v1908
        %v2617 = vunpack.c.h.b16 %v1908
        %v2618 = vunpack.c.l.b16 %v1909
        %v2619 = vunpack.c.h.b16 %v1909
        %v2620 = vunpack.c.l.b16 %v1910
        %v2621 = vunpack.c.h.b16 %v1910
        %v2622 = vunpack.c.l.b16 %v1911
        %v2623 = vunpack.c.h.b16 %v1911
        %v2624 = vunpack.c.l.b16 %v1912
        %v2625 = vunpack.c.h.b16 %v1912
        %v2626 = vunpack.c.l.b16 %v1913
        %v2627 = vunpack.c.h.b16 %v1913
        %v2628 = vunpack.c.l.b16 %v1914
        %v2629 = vunpack.c.h.b16 %v1914
        %v2630 = vunpack.c.l.b16 %v1915
        %v2631 = vunpack.c.h.b16 %v1915
        %v2632 = vunpack.c.l.b16 %v1916
        %v2633 = vunpack.c.h.b16 %v1916
        %v2634 = vunpack.c.l.b16 %v1917
        %v2635 = vunpack.c.h.b16 %v1917
        %v2636 = vunpack.c.l.b16 %v1918
        %v2637 = vunpack.c.h.b16 %v1918
        %v2638 = vunpack.c.l.b16 %v1919
        %v2639 = vunpack.c.h.b16 %v1919
        %v2640 = vunpack.c.l.b16 %v1920
        %v2641 = vunpack.c.h.b16 %v1920
        %v2642 = vunpack.c.l.b16 %v1921
        %v2643 = vunpack.c.h.b16 %v1921
        %v2644 = vunpack.c.l.b16 %v1922
        %v2645 = vunpack.c.h.b16 %v1922
        %v2646 = vunpack.c.l.b16 %v1923
        %v2647 = vunpack.c.h.b16 %v1923
        %v2648 = vunpack.c.l.b16 %v1924
        %v2649 = vunpack.c.h.b16 %v1924
        %v2650 = vunpack.c.l.b16 %v1925
        %v2651 = vunpack.c.h.b16 %v1925
        %v2652 = vunpack.c.l.b16 %v1926
        %v2653 = vunpack.c.h.b16 %v1926
        %v2654 = vunpack.c.l.b16 %v1927
        %v2655 = vunpack.c.h.b16 %v1927
        %v2656 = vunpack.c.l.b16 %v1928
        %v2657 = vunpack.c.h.b16 %v1928
        %v2658 = vunpack.c.l.b16 %v1929
        %v2659 = vunpack.c.h.b16 %v1929
        %v2660 = vunpack.c.l.b16 %v1930
        %v2661 = vunpack.c.h.b16 %v1930
        %v2662 = vunpack.c.l.b16 %v1931
        %v2663 = vunpack.c.h.b16 %v1931
        %v2664 = vunpack.c.l.b16 %v1932
        %v2665 = vunpack.c.h.b16 %v1932
        %v2666 = vunpack.c.l.b16 %v1933
        %v2667 = vunpack.c.h.b16 %v1933
        %v2668 = vunpack.c.l.b16 %v1934
        %v2669 = vunpack.c.h.b16 %v1934
        %v2670 = vunpack.c.l.b16 %v1935
        %v2671 = vunpack.c.h.b16 %v1935
        %v2672 = vunpack.c.l.b16 %v1936
        %v2673 = vunpack.c.h.b16 %v1936
        %v2674 = vunpack.c.l.b16 %v1937
        %v2675 = vunpack.c.h.b16 %v1937
        %v2676 = vunpack.c.l.b16 %v1938
        %v2677 = vunpack.c.h.b16 %v1938
        %v2678 = vunpack.c.l.b16 %v1939
        %v2679 = vunpack.c.h.b16 %v1939
        %v2680 = vunpack.c.l.b16 %v1940
        %v2681 = vunpack.c.h.b16 %v1940
        %v2682 = vunpack.c.l.b16 %v1941
        %v2683 = vunpack.c.h.b16 %v1941
        %v2684 = vunpack.c.l.b16 %v1942
        %v2685 = vunpack.c.h.b16 %v1942
        %v2686 = vunpack.c.l.b16 %v1943
        %v2687 = vunpack.c.h.b16 %v1943
        %v2688 = vunpack.c.l.b16 %v1944
        %v2689 = vunpack.c.h.b16 %v1944
        %v2690 = vunpack.c.l.b16 %v1945
        %v2691 = vunpack.c.h.b16 %v1945
        %v2692 = vunpack.c.l.b16 %v1946
        %v2693 = vunpack.c.h.b16 %v1946
        %v2694 = vunpack.c.l.b16 %v1947
        %v2695 = vunpack.c.h.b16 %v1947
        %v2696 = vunpack.c.l.b16 %v1948
        %v2697 = vunpack.c.h.b16 %v1948
        %v2698 = vunpack.c.l.b16 %v1949
        %v2699 = vunpack.c.h.b16 %v1949
        %v2700 = vunpack.c.l.b16 %v1950
        %v2701 = vunpack.c.h.b16 %v1950
        %v2702 = vunpack.c.l.b16 %v1951
        %v2703 = vunpack.c.h.b16 %v1951
        %v2704 = vunpack.c.l.b16 %v1952
        %v2705 = vunpack.c.h.b16 %v1952
        %v2706 = vunpack.c.l.b16 %v1953
        %v2707 = vunpack.c.h.b16 %v1953
        %v2708 = vunpack.c.l.b16 %v1954
        %v2709 = vunpack.c.h.b16 %v1954
        %v2710 = vunpack.c.l.b16 %v1955
        %v2711 = vunpack.c.h.b16 %v1955
        %v2712 = vunpack.c.l.b16 %v1956
        %v2713 = vunpack.c.h.b16 %v1956
        %v2714 = vunpack.c.l.b16 %v1957
        %v2715 = vunpack.c.h.b16 %v1957
        %v2716 = vunpack.c.l.b16 %v1958
        %v2717 = vunpack.c.h.b16 %v1958
        %v2718 = vunpack.c.l.b16 %v1959
        %v2719 = vunpack.c.h.b16 %v1959
        %v2720 = vunpack.c.l.b16 %v1960
        %v2721 = vunpack.c.h.b16 %v1960
        %v2722 = vunpack.c.l.b16 %v1961
        %v2723 = vunpack.c.h.b16 %v1961
        %v2724 = vunpack.c.l.b16 %v1962
        %v2725 = vunpack.c.h.b16 %v1962
        %v2726 = vunpack.c.l.b16 %v1963
        %v2727 = vunpack.c.h.b16 %v1963
        %v2728 = vunpack.c.l.b16 %v1964
        %v2729 = vunpack.c.h.b16 %v1964
        %v2730 = vunpack.c.l.b16 %v1965
        %v2731 = vunpack.c.h.b16 %v1965
        %v2732 = vunpack.c.l.b16 %v1966
        %v2733 = vunpack.c.h.b16 %v1966
        %v2734 = vunpack.c.l.b16 %v1967
        %v2735 = vunpack.c.h.b16 %v1967
        %v2736 = vunpack.c.l.b16 %v1968
        %v2737 = vunpack.c.h.b16 %v1968
        %v2738 = vunpack.c.l.b16 %v1969
        %v2739 = vunpack.c.h.b16 %v1969
        %v2740 = vunpack.c.l.b16 %v1970
        %v2741 = vunpack.c.h.b16 %v1970
        %v2742 = vunpack.c.l.b16 %v1971
        %v2743 = vunpack.c.h.b16 %v1971
        %v2744 = vunpack.c.l.b16 %v1972
        %v2745 = vunpack.c.h.b16 %v1972
        %v2746 = vunpack.c.l.b16 %v1973
        %v2747 = vunpack.c.h.b16 %v1973
        %v2748 = vunpack.c.l.b16 %v1974
        %v2749 = vunpack.c.h.b16 %v1974
        %v2750 = vunpack.c.l.b16 %v1975
        %v2751 = vunpack.c.h.b16 %v1975
        %v2752 = vunpack.c.l.b16 %v1976
        %v2753 = vunpack.c.h.b16 %v1976
        %v2754 = vunpack.c.l.b16 %v1977
        %v2755 = vunpack.c.h.b16 %v1977
        %v2756 = vunpack.c.l.b16 %v1978
        %v2757 = vunpack.c.h.b16 %v1978
        %v2758 = vunpack.c.l.b16 %v1979
        %v2759 = vunpack.c.h.b16 %v1979
        %v2760 = vunpack.c.l.b16 %v1980
        %v2761 = vunpack.c.h.b16 %v1980
        %v2762 = vunpack.c.l.b16 %v1981
        %v2763 = vunpack.c.h.b16 %v1981
        %v2764 = vunpack.c.l.b16 %v1982
        %v2765 = vunpack.c.h.b16 %v1982
        %v2766 = vunpack.c.l.b16 %v1983
        %v2767 = vunpack.c.h.b16 %v1983
        %v2768 = vunpack.c.l.b16 %v1984
        %v2769 = vunpack.c.h.b16 %v1984
        %v2770 = vunpack.c.l.b16 %v1985
        %v2771 = vunpack.c.h.b16 %v1985
        %v2772 = vunpack.c.l.b16 %v1986
        %v2773 = vunpack.c.h.b16 %v1986
        %v2774 = vunpack.c.l.b16 %v1987
        %v2775 = vunpack.c.h.b16 %v1987
        %v2776 = vunpack.c.l.b16 %v1988
        %v2777 = vunpack.c.h.b16 %v1988
        %v2778 = vunpack.c.l.b16 %v1989
        %v2779 = vunpack.c.h.b16 %v1989
        %v2780 = vunpack.c.l.b16 %v1990
        %v2781 = vunpack.c.h.b16 %v1990
        %v2782 = vunpack.c.l.b16 %v1991
        %v2783 = vunpack.c.h.b16 %v1991
        %v2784 = vunpack.c.l.b16 %v1992
        %v2785 = vunpack.c.h.b16 %v1992
        %v2786 = vunpack.c.l.b16 %v1993
        %v2787 = vunpack.c.h.b16 %v1993
        %v2788 = vunpack.c.l.b16 %v1994
        %v2789 = vunpack.c.h.b16 %v1994
        %v2790 = vunpack.c.l.b16 %v1995
        %v2791 = vunpack.c.h.b16 %v1995
        %v2792 = vunpack.c.l.b16 %v1996
        %v2793 = vunpack.c.h.b16 %v1996
        %v2794 = vunpack.c.l.b16 %v1997
        %v2795 = vunpack.c.h.b16 %v1997
        %v2796 = vunpack.c.l.b16 %v1998
        %v2797 = vunpack.c.h.b16 %v1998
        %v2798 = vunpack.c.l.b16 %v1999
        %v2799 = vunpack.c.h.b16 %v1999
        %v2800 = vunpack.c.l.b16 %v2000
        %v2801 = vunpack.c.h.b16 %v2000
        %v2802 = vunpack.c.l.b16 %v2001
        %v2803 = vunpack.c.h.b16 %v2001
        %v2804 = vunpack.c.l.b16 %v2002
        %v2805 = vunpack.c.h.b16 %v2002
        %v2806 = vunpack.c.l.b16 %v2003
        %v2807 = vunpack.c.h.b16 %v2003
        %v2808 = vunpack.c.l.b16 %v2004
        %v2809 = vunpack.c.h.b16 %v2004
        %v2810 = vunpack.c.l.b16 %v2005
        %v2811 = vunpack.c.h.b16 %v2005
        %v2812 = vunpack.c.l.b16 %v2006
        %v2813 = vunpack.c.h.b16 %v2006
        %v2814 = vunpack.c.l.b16 %v2007
        %v2815 = vunpack.c.h.b16 %v2007
        %v2816 = vunpack.c.l.b16 %v2008
        %v2817 = vunpack.c.h.b16 %v2008
        %v2818 = vunpack.c.l.b16 %v2009
        %v2819 = vunpack.c.h.b16 %v2009
        %v2820 = vpack.c.b16 %v2316, %v2308
        %v2821 = vpack.c.b16 %v2317, %v2309
        %v2822 = vpack.c.b16 %v2318, %v2310
        %v2823 = vpack.c.b16 %v2319, %v2311
        %v2824 = vpack.c.b16 %v2320, %v2312
        %v2825 = vpack.c.b16 %v2321, %v2313
        %v2826 = vpack.c.b16 %v2322, %v2314
        %v2827 = vpack.c.b16 %v2323, %v2315
        %v2828 = vpack.c.b16 %v2332, %v2324
        %v2829 = vpack.c.b16 %v2333, %v2325
        %v2830 = vpack.c.b16 %v2334, %v2326
        %v2831 = vpack.c.b16 %v2335, %v2327
        %v2832 = vpack.c.b16 %v2336, %v2328
        %v2833 = vpack.c.b16 %v2337, %v2329
        %v2834 = vpack.c.b16 %v2338, %v2330
        %v2835 = vpack.c.b16 %v2339, %v2331
        %v2836 = vpack.c.b16 %v2348, %v2340
        %v2837 = vpack.c.b16 %v2349, %v2341
        %v2838 = vpack.c.b16 %v2350, %v2342
        %v2839 = vpack.c.b16 %v2351, %v2343
        %v2840 = vpack.c.b16 %v2352, %v2344
        %v2841 = vpack.c.b16 %v2353, %v2345
        %v2842 = vpack.c.b16 %v2354, %v2346
        %v2843 = vpack.c.b16 %v2355, %v2347
        %v2844 = vpack.c.b16 %v2364, %v2356
        %v2845 = vpack.c.b16 %v2365, %v2357
        %v2846 = vpack.c.b16 %v2366, %v2358
        %v2847 = vpack.c.b16 %v2367, %v2359
        %v2848 = vpack.c.b16 %v2368, %v2360
        %v2849 = vpack.c.b16 %v2369, %v2361
        %v2850 = vpack.c.b16 %v2370, %v2362
        %v2851 = vpack.c.b16 %v2371, %v2363
        %v2852 = vpack.c.b16 %v2380, %v2372
        %v2853 = vpack.c.b16 %v2381, %v2373
        %v2854 = vpack.c.b16 %v2382, %v2374
        %v2855 = vpack.c.b16 %v2383, %v2375
        %v2856 = vpack.c.b16 %v2384, %v2376
        %v2857 = vpack.c.b16 %v2385, %v2377
        %v2858 = vpack.c.b16 %v2386, %v2378
        %v2859 = vpack.c.b16 %v2387, %v2379
        %v2860 = vpack.c.b16 %v2396, %v2388
        %v2861 = vpack.c.b16 %v2397, %v2389
        %v2862 = vpack.c.b16 %v2398, %v2390
        %v2863 = vpack.c.b16 %v2399, %v2391
        %v2864 = vpack.c.b16 %v2400, %v2392
        %v2865 = vpack.c.b16 %v2401, %v2393
        %v2866 = vpack.c.b16 %v2402, %v2394
        %v2867 = vpack.c.b16 %v2403, %v2395
        %v2868 = vpack.c.b16 %v2412, %v2404
        %v2869 = vpack.c.b16 %v2413, %v2405
        %v2870 = vpack.c.b16 %v2414, %v2406
        %v2871 = vpack.c.b16 %v2415, %v2407
        %v2872 = vpack.c.b16 %v2416, %v2408
        %v2873 = vpack.c.b16 %v2417, %v2409
        %v2874 = vpack.c.b16 %v2418, %v2410
        %v2875 = vpack.c.b16 %v2419, %v2411
        %v2876 = vpack.c.b16 %v2428, %v2420
        %v2877 = vpack.c.b16 %v2429, %v2421
        %v2878 = vpack.c.b16 %v2430, %v2422
        %v2879 = vpack.c.b16 %v2431, %v2423
        %v2880 = vpack.c.b16 %v2432, %v2424
        %v2881 = vpack.c.b16 %v2433, %v2425
        %v2882 = vpack.c.b16 %v2434, %v2426
        %v2883 = vpack.c.b16 %v2435, %v2427
        %v2884 = vpack.c.b16 %v2444, %v2436
        %v2885 = vpack.c.b16 %v2445, %v2437
        %v2886 = vpack.c.b16 %v2446, %v2438
        %v2887 = vpack.c.b16 %v2447, %v2439
        %v2888 = vpack.c.b16 %v2448, %v2440
        %v2889 = vpack.c.b16 %v2449, %v2441
        %v2890 = vpack.c.b16 %v2450, %v2442
        %v2891 = vpack.c.b16 %v2451, %v2443
        %v2892 = vpack.c.b16 %v2460, %v2452
        %v2893 = vpack.c.b16 %v2461, %v2453
        %v2894 = vpack.c.b16 %v2462, %v2454
        %v2895 = vpack.c.b16 %v2463, %v2455
        %v2896 = vpack.c.b16 %v2464, %v2456
        %v2897 = vpack.c.b16 %v2465, %v2457
        %v2898 = vpack.c.b16 %v2466, %v2458
        %v2899 = vpack.c.b16 %v2467, %v2459
        %v2900 = vpack.c.b16 %v2476, %v2468
        %v2901 = vpack.c.b16 %v2477, %v2469
        %v2902 = vpack.c.b16 %v2478, %v2470
        %v2903 = vpack.c.b16 %v2479, %v2471
        %v2904 = vpack.c.b16 %v2480, %v2472
        %v2905 = vpack.c.b16 %v2481, %v2473
        %v2906 = vpack.c.b16 %v2482, %v2474
        %v2907 = vpack.c.b16 %v2483, %v2475
        %v2908 = vpack.c.b16 %v2492, %v2484
        %v2909 = vpack.c.b16 %v2493, %v2485
        %v2910 = vpack.c.b16 %v2494, %v2486
        %v2911 = vpack.c.b16 %v2495, %v2487
        %v2912 = vpack.c.b16 %v2496, %v2488
        %v2913 = vpack.c.b16 %v2497, %v2489
        %v2914 = vpack.c.b16 %v2498, %v2490
        %v2915 = vpack.c.b16 %v2499, %v2491
        %v2916 = vpack.c.b16 %v2508, %v2500
        %v2917 = vpack.c.b16 %v2509, %v2501
        %v2918 = vpack.c.b16 %v2510, %v2502
        %v2919 = vpack.c.b16 %v2511, %v2503
        %v2920 = vpack.c.b16 %v2512, %v2504
        %v2921 = vpack.c.b16 %v2513, %v2505
        %v2922 = vpack.c.b16 %v2514, %v2506
        %v2923 = vpack.c.b16 %v2515, %v2507
        %v2924 = vpack.c.b16 %v2524, %v2516
        %v2925 = vpack.c.b16 %v2525, %v2517
        %v2926 = vpack.c.b16 %v2526, %v2518
        %v2927 = vpack.c.b16 %v2527, %v2519
        %v2928 = vpack.c.b16 %v2528, %v2520
        %v2929 = vpack.c.b16 %v2529, %v2521
        %v2930 = vpack.c.b16 %v2530, %v2522
        %v2931 = vpack.c.b16 %v2531, %v2523
        %v2932 = vpack.c.b16 %v2540, %v2532
        %v2933 = vpack.c.b16 %v2541, %v2533
        %v2934 = vpack.c.b16 %v2542, %v2534
        %v2935 = vpack.c.b16 %v2543, %v2535
        %v2936 = vpack.c.b16 %v2544, %v2536
        %v2937 = vpack.c.b16 %v2545, %v2537
        %v2938 = vpack.c.b16 %v2546, %v2538
        %v2939 = vpack.c.b16 %v2547, %v2539
        %v2940 = vpack.c.b16 %v2556, %v2548
        %v2941 = vpack.c.b16 %v2557, %v2549
        %v2942 = vpack.c.b16 %v2558, %v2550
        %v2943 = vpack.c.b16 %v2559, %v2551
        %v2944 = vpack.c.b16 %v2560, %v2552
        %v2945 = vpack.c.b16 %v2561, %v2553
        %v2946 = vpack.c.b16 %v2562, %v2554
        %v2947 = vpack.c.b16 %v2563, %v2555
        %v2948 = vpack.c.b16 %v2572, %v2564
        %v2949 = vpack.c.b16 %v2573, %v2565
        %v2950 = vpack.c.b16 %v2574, %v2566
        %v2951 = vpack.c.b16 %v2575, %v2567
        %v2952 = vpack.c.b16 %v2576, %v2568
        %v2953 = vpack.c.b16 %v2577, %v2569
        %v2954 = vpack.c.b16 %v2578, %v2570
        %v2955 = vpack.c.b16 %v2579, %v2571
        %v2956 = vpack.c.b16 %v2588, %v2580
        %v2957 = vpack.c.b16 %v2589, %v2581
        %v2958 = vpack.c.b16 %v2590, %v2582
        %v2959 = vpack.c.b16 %v2591, %v2583
        %v2960 = vpack.c.b16 %v2592, %v2584
        %v2961 = vpack.c.b16 %v2593, %v2585
        %v2962 = vpack.c.b16 %v2594, %v2586
        %v2963 = vpack.c.b16 %v2595, %v2587
        %v2964 = vpack.c.b16 %v2604, %v2596
        %v2965 = vpack.c.b16 %v2605, %v2597
        %v2966 = vpack.c.b16 %v2606, %v2598
        %v2967 = vpack.c.b16 %v2607, %v2599
        %v2968 = vpack.c.b16 %v2608, %v2600
        %v2969 = vpack.c.b16 %v2609, %v2601
        %v2970 = vpack.c.b16 %v2610, %v2602
        %v2971 = vpack.c.b16 %v2611, %v2603
        %v2972 = vpack.c.b16 %v2620, %v2612
        %v2973 = vpack.c.b16 %v2621, %v2613
        %v2974 = vpack.c.b16 %v2622, %v2614
        %v2975 = vpack.c.b16 %v2623, %v2615
        %v2976 = vpack.c.b16 %v2624, %v2616
        %v2977 = vpack.c.b16 %v2625, %v2617
        %v2978 = vpack.c.b16 %v2626, %v2618
        %v2979 = vpack.c.b16 %v2627, %v2619
        %v2980 = vpack.c.b16 %v2636, %v2628
        %v2981 = vpack.c.b16 %v2637, %v2629
        %v2982 = vpack.c.b16 %v2638, %v2630
        %v2983 = vpack.c.b16 %v2639, %v2631
        %v2984 = vpack.c.b16 %v2640, %v2632
        %v2985 = vpack.c.b16 %v2641, %v2633
        %v2986 = vpack.c.b16 %v2642, %v2634
        %v2987 = vpack.c.b16 %v2643, %v2635
        %v2988 = vpack.c.b16 %v2652, %v2644
        %v2989 = vpack.c.b16 %v2653, %v2645
        %v2990 = vpack.c.b16 %v2654, %v2646
        %v2991 = vpack.c.b16 %v2655, %v2647
        %v2992 = vpack.c.b16 %v2656, %v2648
        %v2993 = vpack.c.b16 %v2657, %v2649
        %v2994 = vpack.c.b16 %v2658, %v2650
        %v2995 = vpack.c.b16 %v2659, %v2651
        %v2996 = vpack.c.b16 %v2668, %v2660
        %v2997 = vpack.c.b16 %v2669, %v2661
        %v2998 = vpack.c.b16 %v2670, %v2662
        %v2999 = vpack.c.b16 %v2671, %v2663
        %v3000 = vpack.c.b16 %v2672, %v2664
        %v3001 = vpack.c.b16 %v2673, %v2665
        %v3002 = vpack.c.b16 %v2674, %v2666
        %v3003 = vpack.c.b16 %v2675, %v2667
        %v3004 = vpack.c.b16 %v2684, %v2676
        %v3005 = vpack.c.b16 %v2685, %v2677
        %v3006 = vpack.c.b16 %v2686, %v2678
        %v3007 = vpack.c.b16 %v2687, %v2679
        %v3008 = vpack.c.b16 %v2688, %v2680
        %v3009 = vpack.c.b16 %v2689, %v2681
        %v3010 = vpack.c.b16 %v2690, %v2682
        %v3011 = vpack.c.b16 %v2691, %v2683
        %v3012 = vpack.c.b16 %v2700, %v2692
        %v3013 = vpack.c.b16 %v2701, %v2693
        %v3014 = vpack.c.b16 %v2702, %v2694
        %v3015 = vpack.c.b16 %v2703, %v2695
        %v3016 = vpack.c.b16 %v2704, %v2696
        %v3017 = vpack.c.b16 %v2705, %v2697
        %v3018 = vpack.c.b16 %v2706, %v2698
        %v3019 = vpack.c.b16 %v2707, %v2699
        %v3020 = vpack.c.b16 %v2716, %v2708
        %v3021 = vpack.c.b16 %v2717, %v2709
        %v3022 = vpack.c.b16 %v2718, %v2710
        %v3023 = vpack.c.b16 %v2719, %v2711
        %v3024 = vpack.c.b16 %v2720, %v2712
        %v3025 = vpack.c.b16 %v2721, %v2713
        %v3026 = vpack.c.b16 %v2722, %v2714
        %v3027 = vpack.c.b16 %v2723, %v2715
        %v3028 = vpack.c.b16 %v2732, %v2724
        %v3029 = vpack.c.b16 %v2733, %v2725
        %v3030 = vpack.c.b16 %v2734, %v2726
        %v3031 = vpack.c.b16 %v2735, %v2727
        %v3032 = vpack.c.b16 %v2736, %v2728
        %v3033 = vpack.c.b16 %v2737, %v2729
        %v3034 = vpack.c.b16 %v2738, %v2730
        %v3035 = vpack.c.b16 %v2739, %v2731
        %v3036 = vpack.c.b16 %v2748, %v2740
        %v3037 = vpack.c.b16 %v2749, %v2741
        %v3038 = vpack.c.b16 %v2750, %v2742
        %v3039 = vpack.c.b16 %v2751, %v2743
        %v3040 = vpack.c.b16 %v2752, %v2744
        %v3041 = vpack.c.b16 %v2753, %v2745
        %v3042 = vpack.c.b16 %v2754, %v2746
        %v3043 = vpack.c.b16 %v2755, %v2747
        %v3044 = vpack.c.b16 %v2764, %v2756
        %v3045 = vpack.c.b16 %v2765, %v2757
        %v3046 = vpack.c.b16 %v2766, %v2758
        %v3047 = vpack.c.b16 %v2767, %v2759
        %v3048 = vpack.c.b16 %v2768, %v2760
        %v3049 = vpack.c.b16 %v2769, %v2761
        %v3050 = vpack.c.b16 %v2770, %v2762
        %v3051 = vpack.c.b16 %v2771, %v2763
        %v3052 = vpack.c.b16 %v2780, %v2772
        %v3053 = vpack.c.b16 %v2781, %v2773
        %v3054 = vpack.c.b16 %v2782, %v2774
        %v3055 = vpack.c.b16 %v2783, %v2775
        %v3056 = vpack.c.b16 %v2784, %v2776
        %v3057 = vpack.c.b16 %v2785, %v2777
        %v3058 = vpack.c.b16 %v2786, %v2778
        %v3059 = vpack.c.b16 %v2787, %v2779
        %v3060 = vpack.c.b16 %v2796, %v2788
        %v3061 = vpack.c.b16 %v2797, %v2789
        %v3062 = vpack.c.b16 %v2798, %v2790
        %v3063 = vpack.c.b16 %v2799, %v2791
        %v3064 = vpack.c.b16 %v2800, %v2792
        %v3065 = vpack.c.b16 %v2801, %v2793
        %v3066 = vpack.c.b16 %v2802, %v2794
        %v3067 = vpack.c.b16 %v2803, %v2795
        %v3068 = vpack.c.b16 %v2812, %v2804
        %v3069 = vpack.c.b16 %v2813, %v2805
        %v3070 = vpack.c.b16 %v2814, %v2806
        %v3071 = vpack.c.b16 %v2815, %v2807
        %v3072 = vpack.c.b16 %v2816, %v2808
        %v3073 = vpack.c.b16 %v2817, %v2809
        %v3074 = vpack.c.b16 %v2818, %v2810
        %v3075 = vpack.c.b16 %v2819, %v2811
        %3332 = vmatprep.subr.bf16.mxu0 %v2821
        %3333 = vmatpush1.bf16.msra.mxu0 %v2820
        %3334 = vmatprep.subr.bf16.mxu0 %v2829
        %3335 = vmatpush1.bf16.msra.mxu0 %v2828
        %3336 = vmatprep.subr.bf16.mxu0 %v2837
        %3337 = vmatpush1.bf16.msra.mxu0 %v2836
        %3338 = vmatprep.subr.bf16.mxu0 %v2845
        %3339 = vmatpush1.bf16.msra.mxu0 %v2844
        %3340 = vmatprep.subr.bf16.mxu0 %v2853
        %3341 = vmatpush1.bf16.msra.mxu0 %v2852
        %3342 = vmatprep.subr.bf16.mxu0 %v2861
        %3343 = vmatpush1.bf16.msra.mxu0 %v2860
        %3344 = vmatprep.subr.bf16.mxu0 %v2869
        %3345 = vmatpush1.bf16.msra.mxu0 %v2868
        %3346 = vmatprep.subr.bf16.mxu0 %v2877
        %3347 = vmatpush1.bf16.msra.mxu0 %v2876
        %3348 = vmatprep.subr.bf16.mxu0 %v2885
        %3349 = vmatpush1.bf16.msra.mxu0 %v2884
        %3350 = vmatprep.subr.bf16.mxu0 %v2893
        %3351 = vmatpush1.bf16.msra.mxu0 %v2892
        %3352 = vmatprep.subr.bf16.mxu0 %v2901
        %3353 = vmatpush1.bf16.msra.mxu0 %v2900
        %3354 = vmatprep.subr.bf16.mxu0 %v2909
        %3355 = vmatpush1.bf16.msra.mxu0 %v2908
        %3356 = vmatprep.subr.bf16.mxu0 %v2917
        %3357 = vmatpush1.bf16.msra.mxu0 %v2916
        %3358 = vmatprep.subr.bf16.mxu0 %v2925
        %3359 = vmatpush1.bf16.msra.mxu0 %v2924
        %3360 = vmatprep.subr.bf16.mxu0 %v2933
        %3361 = vmatpush1.bf16.msra.mxu0 %v2932
        %3362 = vmatprep.subr.bf16.mxu0 %v2941
        %3363 = vmatpush1.bf16.msra.mxu0 %v2940
        %3364 = vmatprep.mubr.bf16.mxu0 %v1751
        %3365 = vmatmul.mubr.bf16.gmra.mrb[0].mxu0 %v1750
        %v3366 = vpop.f32.mrb[0].mxu0
        %v3367 = vadd.f32 %v2015, %v3366
        %v3368 = vpop.f32.mrb[0].mxu0
        %v3369 = vadd.f32 %v2019, %v3368
        %v3370 = vpop.f32.mrb[0].mxu0
        %v3371 = vpop.f32.mrb[0].mxu0
        %3372 = vdwg.mxu0
        %3373 = vmatprep.subr.bf16.mxu0 %v2949
        %3374 = vmatpush1.bf16.msra.mxu0 %v2948
        %3375 = vmatprep.subr.bf16.mxu0 %v2957
        %3376 = vmatpush1.bf16.msra.mxu0 %v2956
        %3377 = vmatprep.subr.bf16.mxu0 %v2965
        %3378 = vmatpush1.bf16.msra.mxu0 %v2964
        %3379 = vmatprep.subr.bf16.mxu0 %v2973
        %3380 = vmatpush1.bf16.msra.mxu0 %v2972
        %3381 = vmatprep.subr.bf16.mxu0 %v2981
        %3382 = vmatpush1.bf16.msra.mxu0 %v2980
        %3383 = vmatprep.subr.bf16.mxu0 %v2989
        %3384 = vmatpush1.bf16.msra.mxu0 %v2988
        %3385 = vmatprep.subr.bf16.mxu0 %v2997
        %3386 = vmatpush1.bf16.msra.mxu0 %v2996
        %3387 = vmatprep.subr.bf16.mxu0 %v3005
        %3388 = vmatpush1.bf16.msra.mxu0 %v3004
        %3389 = vmatprep.subr.bf16.mxu0 %v3013
        %3390 = vmatpush1.bf16.msra.mxu0 %v3012
        %3391 = vmatprep.subr.bf16.mxu0 %v3021
        %3392 = vmatpush1.bf16.msra.mxu0 %v3020
        %3393 = vmatprep.subr.bf16.mxu0 %v3029
        %3394 = vmatpush1.bf16.msra.mxu0 %v3028
        %3395 = vmatprep.subr.bf16.mxu0 %v3037
        %3396 = vmatpush1.bf16.msra.mxu0 %v3036
        %3397 = vmatprep.subr.bf16.mxu0 %v3045
        %3398 = vmatpush1.bf16.msra.mxu0 %v3044
        %3399 = vmatprep.subr.bf16.mxu0 %v3053
        %3400 = vmatpush1.bf16.msra.mxu0 %v3052
        %3401 = vmatprep.subr.bf16.mxu0 %v3061
        %3402 = vmatpush1.bf16.msra.mxu0 %v3060
        %3403 = vmatprep.subr.bf16.mxu0 %v3069
        %3404 = vmatpush1.bf16.msra.mxu0 %v3068
        %3405 = vmatprep.mubr.bf16.mxu0 %v1753
        %3406 = vmatmul.mubr.bf16.gmra.mrb[0].mxu0 %v1752
        %v3407 = vpop.f32.mrb[0].mxu0
        %v3408 = vadd.f32 %v3367, %v3407
        %v3409 = vpop.f32.mrb[0].mxu0
        %v3410 = vadd.f32 %v3369, %v3409
        %v3411 = vpop.f32.mrb[0].mxu0
        %v3412 = vpop.f32.mrb[0].mxu0
        %3413 = vdwg.mxu0
        %3414 = vmatprep.subr.bf16.mxu0 %v2823
        %3415 = vmatpush1.bf16.msra.mxu0 %v2822
        %3416 = vmatprep.subr.bf16.mxu0 %v2831
        %3417 = vmatpush1.bf16.msra.mxu0 %v2830
        %3418 = vmatprep.subr.bf16.mxu0 %v2839
        %3419 = vmatpush1.bf16.msra.mxu0 %v2838
        %3420 = vmatprep.subr.bf16.mxu0 %v2847
        %3421 = vmatpush1.bf16.msra.mxu0 %v2846
        %3422 = vmatprep.subr.bf16.mxu0 %v2855
        %3423 = vmatpush1.bf16.msra.mxu0 %v2854
        %3424 = vmatprep.subr.bf16.mxu0 %v2863
        %3425 = vmatpush1.bf16.msra.mxu0 %v2862
        %3426 = vmatprep.subr.bf16.mxu0 %v2871
        %3427 = vmatpush1.bf16.msra.mxu0 %v2870
        %3428 = vmatprep.subr.bf16.mxu0 %v2879
        %3429 = vmatpush1.bf16.msra.mxu0 %v2878
        %3430 = vmatprep.subr.bf16.mxu0 %v2887
        %3431 = vmatpush1.bf16.msra.mxu0 %v2886
        %3432 = vmatprep.subr.bf16.mxu0 %v2895
        %3433 = vmatpush1.bf16.msra.mxu0 %v2894
        %3434 = vmatprep.subr.bf16.mxu0 %v2903
        %3435 = vmatpush1.bf16.msra.mxu0 %v2902
        %3436 = vmatprep.subr.bf16.mxu0 %v2911
        %3437 = vmatpush1.bf16.msra.mxu0 %v2910
        %3438 = vmatprep.subr.bf16.mxu0 %v2919
        %3439 = vmatpush1.bf16.msra.mxu0 %v2918
        %3440 = vmatprep.subr.bf16.mxu0 %v2927
        %3441 = vmatpush1.bf16.msra.mxu0 %v2926
        %3442 = vmatprep.subr.bf16.mxu0 %v2935
        %3443 = vmatpush1.bf16.msra.mxu0 %v2934
        %3444 = vmatprep.subr.bf16.mxu0 %v2943
        %3445 = vmatpush1.bf16.msra.mxu0 %v2942
        %3446 = vmatprep.mubr.bf16.mxu0 %v1751
        %3447 = vmatmul.mubr.bf16.gmra.mrb[0].mxu0 %v1750
        %v3448 = vpop.f32.mrb[0].mxu0
        %v3449 = vadd.f32 %v2023, %v3448
        %v3450 = vpop.f32.mrb[0].mxu0
        %v3451 = vadd.f32 %v2027, %v3450
        %v3452 = vpop.f32.mrb[0].mxu0
        %v3453 = vpop.f32.mrb[0].mxu0
        %3454 = vdwg.mxu0
        %3455 = vmatprep.subr.bf16.mxu0 %v2951
        %3456 = vmatpush1.bf16.msra.mxu0 %v2950
        %3457 = vmatprep.subr.bf16.mxu0 %v2959
        %3458 = vmatpush1.bf16.msra.mxu0 %v2958
        %3459 = vmatprep.subr.bf16.mxu0 %v2967
        %3460 = vmatpush1.bf16.msra.mxu0 %v2966
        %3461 = vmatprep.subr.bf16.mxu0 %v2975
        %3462 = vmatpush1.bf16.msra.mxu0 %v2974
        %3463 = vmatprep.subr.bf16.mxu0 %v2983
        %3464 = vmatpush1.bf16.msra.mxu0 %v2982
        %3465 = vmatprep.subr.bf16.mxu0 %v2991
        %3466 = vmatpush1.bf16.msra.mxu0 %v2990
        %3467 = vmatprep.subr.bf16.mxu0 %v2999
        %3468 = vmatpush1.bf16.msra.mxu0 %v2998
        %3469 = vmatprep.subr.bf16.mxu0 %v3007
        %3470 = vmatpush1.bf16.msra.mxu0 %v3006
        %3471 = vmatprep.subr.bf16.mxu0 %v3015
        %3472 = vmatpush1.bf16.msra.mxu0 %v3014
        %3473 = vmatprep.subr.bf16.mxu0 %v3023
        %3474 = vmatpush1.bf16.msra.mxu0 %v3022
        %3475 = vmatprep.subr.bf16.mxu0 %v3031
        %3476 = vmatpush1.bf16.msra.mxu0 %v3030
        %3477 = vmatprep.subr.bf16.mxu0 %v3039
        %3478 = vmatpush1.bf16.msra.mxu0 %v3038
        %3479 = vmatprep.subr.bf16.mxu0 %v3047
        %3480 = vmatpush1.bf16.msra.mxu0 %v3046
        %3481 = vmatprep.subr.bf16.mxu0 %v3055
        %3482 = vmatpush1.bf16.msra.mxu0 %v3054
        %3483 = vmatprep.subr.bf16.mxu0 %v3063
        %3484 = vmatpush1.bf16.msra.mxu0 %v3062
        %3485 = vmatprep.subr.bf16.mxu0 %v3071
        %3486 = vmatpush1.bf16.msra.mxu0 %v3070
        %3487 = vmatprep.mubr.bf16.mxu0 %v1753
        %3488 = vmatmul.mubr.bf16.gmra.mrb[0].mxu0 %v1752
        %v3489 = vpop.f32.mrb[0].mxu0
        %v3490 = vadd.f32 %v3449, %v3489
        %v3491 = vpop.f32.mrb[0].mxu0
        %v3492 = vadd.f32 %v3451, %v3491
        %v3493 = vpop.f32.mrb[0].mxu0
        %v3494 = vpop.f32.mrb[0].mxu0
        %3495 = vdwg.mxu0
        %3496 = vmatprep.subr.bf16.mxu0 %v2825
        %3497 = vmatpush1.bf16.msra.mxu0 %v2824
        %3498 = vmatprep.subr.bf16.mxu0 %v2833
        %3499 = vmatpush1.bf16.msra.mxu0 %v2832
        %3500 = vmatprep.subr.bf16.mxu0 %v2841
        %3501 = vmatpush1.bf16.msra.mxu0 %v2840
        %3502 = vmatprep.subr.bf16.mxu0 %v2849
        %3503 = vmatpush1.bf16.msra.mxu0 %v2848
        %3504 = vmatprep.subr.bf16.mxu0 %v2857
        %3505 = vmatpush1.bf16.msra.mxu0 %v2856
        %3506 = vmatprep.subr.bf16.mxu0 %v2865
        %3507 = vmatpush1.bf16.msra.mxu0 %v2864
        %3508 = vmatprep.subr.bf16.mxu0 %v2873
        %3509 = vmatpush1.bf16.msra.mxu0 %v2872
        %3510 = vmatprep.subr.bf16.mxu0 %v2881
        %3511 = vmatpush1.bf16.msra.mxu0 %v2880
        %3512 = vmatprep.subr.bf16.mxu0 %v2889
        %3513 = vmatpush1.bf16.msra.mxu0 %v2888
        %3514 = vmatprep.subr.bf16.mxu0 %v2897
        %3515 = vmatpush1.bf16.msra.mxu0 %v2896
        %3516 = vmatprep.subr.bf16.mxu0 %v2905
        %3517 = vmatpush1.bf16.msra.mxu0 %v2904
        %3518 = vmatprep.subr.bf16.mxu0 %v2913
        %3519 = vmatpush1.bf16.msra.mxu0 %v2912
        %3520 = vmatprep.subr.bf16.mxu0 %v2921
        %3521 = vmatpush1.bf16.msra.mxu0 %v2920
        %3522 = vmatprep.subr.bf16.mxu0 %v2929
        %3523 = vmatpush1.bf16.msra.mxu0 %v2928
        %3524 = vmatprep.subr.bf16.mxu0 %v2937
        %3525 = vmatpush1.bf16.msra.mxu0 %v2936
        %3526 = vmatprep.subr.bf16.mxu0 %v2945
        %3527 = vmatpush1.bf16.msra.mxu0 %v2944
        %3528 = vmatprep.mubr.bf16.mxu0 %v1751
        %3529 = vmatmul.mubr.bf16.gmra.mrb[0].mxu0 %v1750
        %v3530 = vpop.f32.mrb[0].mxu0
        %v3531 = vadd.f32 %v2031, %v3530
        %v3532 = vpop.f32.mrb[0].mxu0
        %v3533 = vadd.f32 %v2035, %v3532
        %v3534 = vpop.f32.mrb[0].mxu0
        %v3535 = vpop.f32.mrb[0].mxu0
        %3536 = vdwg.mxu0
        %3537 = vmatprep.subr.bf16.mxu0 %v2953
        %3538 = vmatpush1.bf16.msra.mxu0 %v2952
        %3539 = vmatprep.subr.bf16.mxu0 %v2961
        %3540 = vmatpush1.bf16.msra.mxu0 %v2960
        %3541 = vmatprep.subr.bf16.mxu0 %v2969
        %3542 = vmatpush1.bf16.msra.mxu0 %v2968
        %3543 = vmatprep.subr.bf16.mxu0 %v2977
        %3544 = vmatpush1.bf16.msra.mxu0 %v2976
        %3545 = vmatprep.subr.bf16.mxu0 %v2985
        %3546 = vmatpush1.bf16.msra.mxu0 %v2984
        %3547 = vmatprep.subr.bf16.mxu0 %v2993
        %3548 = vmatpush1.bf16.msra.mxu0 %v2992
        %3549 = vmatprep.subr.bf16.mxu0 %v3001
        %3550 = vmatpush1.bf16.msra.mxu0 %v3000
        %3551 = vmatprep.subr.bf16.mxu0 %v3009
        %3552 = vmatpush1.bf16.msra.mxu0 %v3008
        %3553 = vmatprep.subr.bf16.mxu0 %v3017
        %3554 = vmatpush1.bf16.msra.mxu0 %v3016
        %3555 = vmatprep.subr.bf16.mxu0 %v3025
        %3556 = vmatpush1.bf16.msra.mxu0 %v3024
        %3557 = vmatprep.subr.bf16.mxu0 %v3033
        %3558 = vmatpush1.bf16.msra.mxu0 %v3032
        %3559 = vmatprep.subr.bf16.mxu0 %v3041
        %3560 = vmatpush1.bf16.msra.mxu0 %v3040
        %3561 = vmatprep.subr.bf16.mxu0 %v3049
        %3562 = vmatpush1.bf16.msra.mxu0 %v3048
        %3563 = vmatprep.subr.bf16.mxu0 %v3057
        %3564 = vmatpush1.bf16.msra.mxu0 %v3056
        %3565 = vmatprep.subr.bf16.mxu0 %v3065
        %3566 = vmatpush1.bf16.msra.mxu0 %v3064
        %3567 = vmatprep.subr.bf16.mxu0 %v3073
        %3568 = vmatpush1.bf16.msra.mxu0 %v3072
        %3569 = vmatprep.mubr.bf16.mxu0 %v1753
        %3570 = vmatmul.mubr.bf16.gmra.mrb[0].mxu0 %v1752
        %v3571 = vpop.f32.mrb[0].mxu0
        %v3572 = vadd.f32 %v3531, %v3571
        %v3573 = vpop.f32.mrb[0].mxu0
        %v3574 = vadd.f32 %v3533, %v3573
        %v3575 = vpop.f32.mrb[0].mxu0
        %v3576 = vpop.f32.mrb[0].mxu0
        %3577 = vdwg.mxu0
        %3578 = vmatprep.subr.bf16.mxu0 %v2827
        %3579 = vmatpush1.bf16.msra.mxu0 %v2826
        %3580 = vmatprep.subr.bf16.mxu0 %v2835
        %3581 = vmatpush1.bf16.msra.mxu0 %v2834
        %3582 = vmatprep.subr.bf16.mxu0 %v2843
        %3583 = vmatpush1.bf16.msra.mxu0 %v2842
        %3584 = vmatprep.subr.bf16.mxu0 %v2851
        %3585 = vmatpush1.bf16.msra.mxu0 %v2850
        %3586 = vmatprep.subr.bf16.mxu0 %v2859
        %3587 = vmatpush1.bf16.msra.mxu0 %v2858
        %3588 = vmatprep.subr.bf16.mxu0 %v2867
        %3589 = vmatpush1.bf16.msra.mxu0 %v2866
        %3590 = vmatprep.subr.bf16.mxu0 %v2875
        %3591 = vmatpush1.bf16.msra.mxu0 %v2874
        %3592 = vmatprep.subr.bf16.mxu0 %v2883
        %3593 = vmatpush1.bf16.msra.mxu0 %v2882
        %3594 = vmatprep.subr.bf16.mxu0 %v2891
        %3595 = vmatpush1.bf16.msra.mxu0 %v2890
        %3596 = vmatprep.subr.bf16.mxu0 %v2899
        %3597 = vmatpush1.bf16.msra.mxu0 %v2898
        %3598 = vmatprep.subr.bf16.mxu0 %v2907
        %3599 = vmatpush1.bf16.msra.mxu0 %v2906
        %3600 = vmatprep.subr.bf16.mxu0 %v2915
        %3601 = vmatpush1.bf16.msra.mxu0 %v2914
        %3602 = vmatprep.subr.bf16.mxu0 %v2923
        %3603 = vmatpush1.bf16.msra.mxu0 %v2922
        %3604 = vmatprep.subr.bf16.mxu0 %v2931
        %3605 = vmatpush1.bf16.msra.mxu0 %v2930
        %3606 = vmatprep.subr.bf16.mxu0 %v2939
        %3607 = vmatpush1.bf16.msra.mxu0 %v2938
        %3608 = vmatprep.subr.bf16.mxu0 %v2947
        %3609 = vmatpush1.bf16.msra.mxu0 %v2946
        %3610 = vmatprep.mubr.bf16.mxu0 %v1751
        %3611 = vmatmul.mubr.bf16.gmra.mrb[0].mxu0 %v1750
        %v3612 = vpop.f32.mrb[0].mxu0
        %v3613 = vadd.f32 %v2039, %v3612
        %v3614 = vpop.f32.mrb[0].mxu0
        %v3615 = vadd.f32 %v2043, %v3614
        %v3616 = vpop.f32.mrb[0].mxu0
        %v3617 = vpop.f32.mrb[0].mxu0
        %3618 = vdwg.mxu0
        %3619 = vmatprep.subr.bf16.mxu0 %v2955
        %3620 = vmatpush1.bf16.msra.mxu0 %v2954
        %3621 = vmatprep.subr.bf16.mxu0 %v2963
        %3622 = vmatpush1.bf16.msra.mxu0 %v2962
        %3623 = vmatprep.subr.bf16.mxu0 %v2971
        %3624 = vmatpush1.bf16.msra.mxu0 %v2970
        %3625 = vmatprep.subr.bf16.mxu0 %v2979
        %3626 = vmatpush1.bf16.msra.mxu0 %v2978
        %3627 = vmatprep.subr.bf16.mxu0 %v2987
        %3628 = vmatpush1.bf16.msra.mxu0 %v2986
        %3629 = vmatprep.subr.bf16.mxu0 %v2995
        %3630 = vmatpush1.bf16.msra.mxu0 %v2994
        %3631 = vmatprep.subr.bf16.mxu0 %v3003
        %3632 = vmatpush1.bf16.msra.mxu0 %v3002
        %3633 = vmatprep.subr.bf16.mxu0 %v3011
        %3634 = vmatpush1.bf16.msra.mxu0 %v3010
        %3635 = vmatprep.subr.bf16.mxu0 %v3019
        %3636 = vmatpush1.bf16.msra.mxu0 %v3018
        %3637 = vmatprep.subr.bf16.mxu0 %v3027
        %3638 = vmatpush1.bf16.msra.mxu0 %v3026
        %3639 = vmatprep.subr.bf16.mxu0 %v3035
        %3640 = vmatpush1.bf16.msra.mxu0 %v3034
        %3641 = vmatprep.subr.bf16.mxu0 %v3043
        %3642 = vmatpush1.bf16.msra.mxu0 %v3042
        %3643 = vmatprep.subr.bf16.mxu0 %v3051
        %3644 = vmatpush1.bf16.msra.mxu0 %v3050
        %3645 = vmatprep.subr.bf16.mxu0 %v3059
        %3646 = vmatpush1.bf16.msra.mxu0 %v3058
        %3647 = vmatprep.subr.bf16.mxu0 %v3067
        %3648 = vmatpush1.bf16.msra.mxu0 %v3066
        %3649 = vmatprep.subr.bf16.mxu0 %v3075
        %3650 = vmatpush1.bf16.msra.mxu0 %v3074
        %3651 = vmatprep.mubr.bf16.mxu0 %v1753
        %3652 = vmatmul.mubr.bf16.gmra.mrb[0].mxu0 %v1752
        %v3653 = vpop.f32.mrb[0].mxu0
        %v3654 = vadd.f32 %v3613, %v3653
        %v3655 = vpop.f32.mrb[0].mxu0
        %v3656 = vadd.f32 %v3615, %v3655
        %v3657 = vpop.f32.mrb[0].mxu0
        %v3658 = vpop.f32.mrb[0].mxu0
        %3659 = vdwg.mxu0
        %v3660 = vrot.slane %v3408, 4
        %v3661 = vadd.f32 %v3408, %v3660
        %v3662 = vrot.slane %v3661, 2
        %v3663 = vadd.f32 %v3661, %v3662
        %v3664 = vrot.slane %v3663, 1
        %v3665 = vadd.f32 %v3663, %v3664
        %v3666 = vrot.slane %v3410, 4
        %v3667 = vadd.f32 %v3410, %v3666
        %v3668 = vrot.slane %v3667, 2
        %v3669 = vadd.f32 %v3667, %v3668
        %v3670 = vrot.slane %v3669, 1
        %v3671 = vadd.f32 %v3669, %v3670
        %v3672 = vrot.slane %v3490, 4
        %v3673 = vadd.f32 %v3490, %v3672
        %v3674 = vrot.slane %v3673, 2
        %v3675 = vadd.f32 %v3673, %v3674
        %v3676 = vrot.slane %v3675, 1
        %v3677 = vadd.f32 %v3675, %v3676
        %v3678 = vrot.slane %v3492, 4
        %v3679 = vadd.f32 %v3492, %v3678
        %v3680 = vrot.slane %v3679, 2
        %v3681 = vadd.f32 %v3679, %v3680
        %v3682 = vrot.slane %v3681, 1
        %v3683 = vadd.f32 %v3681, %v3682
        %v3684 = vrot.slane %v3572, 4
        %v3685 = vadd.f32 %v3572, %v3684
        %v3686 = vrot.slane %v3685, 2
        %v3687 = vadd.f32 %v3685, %v3686
        %v3688 = vrot.slane %v3687, 1
        %v3689 = vadd.f32 %v3687, %v3688
        %v3690 = vrot.slane %v3574, 4
        %v3691 = vadd.f32 %v3574, %v3690
        %v3692 = vrot.slane %v3691, 2
        %v3693 = vadd.f32 %v3691, %v3692
        %v3694 = vrot.slane %v3693, 1
        %v3695 = vadd.f32 %v3693, %v3694
        %v3696 = vrot.slane %v3654, 4
        %v3697 = vadd.f32 %v3654, %v3696
        %v3698 = vrot.slane %v3697, 2
        %v3699 = vadd.f32 %v3697, %v3698
        %v3700 = vrot.slane %v3699, 1
        %v3701 = vadd.f32 %v3699, %v3700
        %v3702 = vrot.slane %v3656, 4
        %v3703 = vadd.f32 %v3656, %v3702
        %v3704 = vrot.slane %v3703, 2
        %v3705 = vadd.f32 %v3703, %v3704
        %v3706 = vrot.slane %v3705, 1
        %v3707 = vadd.f32 %v3705, %v3706
        %v3708 = vmul.f32 %v3665, %v961
        %v3709 = vmul.f32 %v3671, %v961
        %v3710 = vmul.f32 %v3677, %v961
        %v3711 = vmul.f32 %v3683, %v961
        %v3712 = vmul.f32 %v3689, %v961
        %v3713 = vmul.f32 %v3695, %v961
        %v3714 = vmul.f32 %v3701, %v961
        %v3715 = vmul.f32 %v3707, %v961
        %v3716 = vsub.f32 %v3408, %v3708
        %v3717 = vsub.f32 %v3410, %v3709
        %v3718 = vsub.f32 %v3490, %v3710
        %v3719 = vsub.f32 %v3492, %v3711
        %v3720 = vsub.f32 %v3572, %v3712
        %v3721 = vsub.f32 %v3574, %v3713
        %v3722 = vsub.f32 %v3654, %v3714
        %v3723 = vsub.f32 %v3656, %v3715
        %v3724 = vmul.f32 %v3716, %v3716
        %v3725 = vmul.f32 %v3717, %v3717
        %v3726 = vmul.f32 %v3718, %v3718
        %v3727 = vmul.f32 %v3719, %v3719
        %v3728 = vmul.f32 %v3720, %v3720
        %v3729 = vmul.f32 %v3721, %v3721
        %v3730 = vmul.f32 %v3722, %v3722
        %v3731 = vmul.f32 %v3723, %v3723
        %v3732 = vrot.slane %v3724, 4
        %v3733 = vadd.f32 %v3724, %v3732
        %v3734 = vrot.slane %v3733, 2
        %v3735 = vadd.f32 %v3733, %v3734
        %v3736 = vrot.slane %v3735, 1
        %v3737 = vadd.f32 %v3735, %v3736
        %v3738 = vrot.slane %v3725, 4
        %v3739 = vadd.f32 %v3725, %v3738
        %v3740 = vrot.slane %v3739, 2
        %v3741 = vadd.f32 %v3739, %v3740
        %v3742 = vrot.slane %v3741, 1
        %v3743 = vadd.f32 %v3741, %v3742
        %v3744 = vrot.slane %v3726, 4
        %v3745 = vadd.f32 %v3726, %v3744
        %v3746 = vrot.slane %v3745, 2
        %v3747 = vadd.f32 %v3745, %v3746
        %v3748 = vrot.slane %v3747, 1
        %v3749 = vadd.f32 %v3747, %v3748
        %v3750 = vrot.slane %v3727, 4
        %v3751 = vadd.f32 %v3727, %v3750
        %v3752 = vrot.slane %v3751, 2
        %v3753 = vadd.f32 %v3751, %v3752
        %v3754 = vrot.slane %v3753, 1
        %v3755 = vadd.f32 %v3753, %v3754
        %v3756 = vrot.slane %v3728, 4
        %v3757 = vadd.f32 %v3728, %v3756
        %v3758 = vrot.slane %v3757, 2
        %v3759 = vadd.f32 %v3757, %v3758
        %v3760 = vrot.slane %v3759, 1
        %v3761 = vadd.f32 %v3759, %v3760
        %v3762 = vrot.slane %v3729, 4
        %v3763 = vadd.f32 %v3729, %v3762
        %v3764 = vrot.slane %v3763, 2
        %v3765 = vadd.f32 %v3763, %v3764
        %v3766 = vrot.slane %v3765, 1
        %v3767 = vadd.f32 %v3765, %v3766
        %v3768 = vrot.slane %v3730, 4
        %v3769 = vadd.f32 %v3730, %v3768
        %v3770 = vrot.slane %v3769, 2
        %v3771 = vadd.f32 %v3769, %v3770
        %v3772 = vrot.slane %v3771, 1
        %v3773 = vadd.f32 %v3771, %v3772
        %v3774 = vrot.slane %v3731, 4
        %v3775 = vadd.f32 %v3731, %v3774
        %v3776 = vrot.slane %v3775, 2
        %v3777 = vadd.f32 %v3775, %v3776
        %v3778 = vrot.slane %v3777, 1
        %v3779 = vadd.f32 %v3777, %v3778
        %v3780 = vmul.f32 %v3737, %v961
        %v3781 = vmul.f32 %v3743, %v961
        %v3782 = vmul.f32 %v3749, %v961
        %v3783 = vmul.f32 %v3755, %v961
        %v3784 = vmul.f32 %v3761, %v961
        %v3785 = vmul.f32 %v3767, %v961
        %v3786 = vmul.f32 %v3773, %v961
        %v3787 = vmul.f32 %v3779, %v961
        %v3788 = vld [vmem:[%s13] sm:$0xff]
        %v3789 = vadd.f32 %v3780, 0.8
        %v3790 = vadd.f32 %v3781, 0.8
        %v3791 = vadd.f32 %v3782, 0.8
        %v3792 = vadd.f32 %v3783, 0.8
        %v3793 = vadd.f32 %v3784, 0.8
        %v3794 = vadd.f32 %v3785, 0.8
        %v3795 = vadd.f32 %v3786, 0.8
        %v3796 = vadd.f32 %v3787, 0.8
        %v3797 = vrsqrt.pop %v3789
        %v3798 = vrsqrt.pop %v3790
        %v3799 = vrsqrt.pop %v3791
        %v3800 = vrsqrt.pop %v3792
        %v3801 = vrsqrt.pop %v3793
        %v3802 = vrsqrt.pop %v3794
        %v3803 = vrsqrt.pop %v3795
        %v3804 = vrsqrt.pop %v3796
        %v3813 = vcombine.low %v3797, %v3798
        %v3814 = vcombine.low %v3799, %v3800
        %v3815 = vcombine.low %v3801, %v3802
        %v3816 = vcombine.low %v3803, %v3804
        %v3818 = vunpack.c.l.s4 1966171168
        %v3819 = vunpack.c.0.s8 %v3818
        %v3820 = vlaneseq
        %v3821 = vshrl.u32 %v3820, 7
        %v3822 = vsub.s32 %v3819, %v3821
        %v3823 = vrot.slane %v3813, %v3822
        %v3825 = vunpack.c.l.s4 1966171168
        %v3826 = vunpack.c.0.s8 %v3825
        %v3827 = vlaneseq
        %v3828 = vshrl.u32 %v3827, 7
        %v3829 = vsub.s32 %v3826, %v3828
        %v3830 = vrot.slane %v3814, %v3829
        %v3832 = vunpack.c.l.s4 1966171168
        %v3833 = vunpack.c.0.s8 %v3832
        %v3834 = vlaneseq
        %v3835 = vshrl.u32 %v3834, 7
        %v3836 = vsub.s32 %v3833, %v3835
        %v3837 = vrot.slane %v3815, %v3836
        %v3839 = vunpack.c.l.s4 1966171168
        %v3840 = vunpack.c.0.s8 %v3839
        %v3841 = vlaneseq
        %v3842 = vshrl.u32 %v3841, 7
        %v3843 = vsub.s32 %v3840, %v3842
        %v3844 = vrot.slane %v3816, %v3843
        %v3845 = vcombine.low %v3823, %v3830
        %v3846 = vcombine.low %v3837, %v3844
        %v3848 = vunpack.c.l.s4 1966171168
        %v3849 = vunpack.c.0.s8 %v3848
        %v3850 = vlaneseq
        %v3851 = vshrl.u32 %v3850, 7
        %v3852 = vsub.s32 %v3849, %v3851
        %v3853 = vrot.slane %v3845, %v3852
        %v3855 = vunpack.c.l.s4 1966171168
        %v3856 = vunpack.c.0.s8 %v3855
        %v3857 = vlaneseq
        %v3858 = vshrl.u32 %v3857, 7
        %v3859 = vsub.s32 %v3856, %v3858
        %v3860 = vrot.slane %v3846, %v3859
        %v3861 = vcombine.low %v3853, %v3860
        %v3863 = vmul.f32 %v3788, %v3861
        %v3864 = vld [vmem:[#allocation16] sm:$0xff]
        %v3866 = vlaneseq
        %v3867 = vshrl.u32 %v3866, 7
        %v3868 = vsub.s32 0, %v3867
        %v3869 = vrot.slane %v3863, %v3868
        %v3870 = vlaneseq
        %v3871 = vshrl.u32 %v3870, 7
        %v3872 = vsub.s32 1, %v3871
        %v3873 = vrot.slane %v3863, %v3872
        %v3874 = vlaneseq
        %v3875 = vshrl.u32 %v3874, 7
        %v3876 = vsub.s32 2, %v3875
        %v3877 = vrot.slane %v3863, %v3876
        %v3878 = vlaneseq
        %v3879 = vshrl.u32 %v3878, 7
        %v3880 = vsub.s32 3, %v3879
        %v3881 = vrot.slane %v3863, %v3880
        %v3882 = vlaneseq
        %v3883 = vshrl.u32 %v3882, 7
        %v3884 = vsub.s32 4, %v3883
        %v3885 = vrot.slane %v3863, %v3884
        %v3886 = vlaneseq
        %v3887 = vshrl.u32 %v3886, 7
        %v3888 = vsub.s32 5, %v3887
        %v3889 = vrot.slane %v3863, %v3888
        %v3890 = vlaneseq
        %v3891 = vshrl.u32 %v3890, 7
        %v3892 = vsub.s32 6, %v3891
        %v3893 = vrot.slane %v3863, %v3892
        %v3894 = vlaneseq
        %v3895 = vshrl.u32 %v3894, 7
        %v3896 = vsub.s32 7, %v3895
        %v3897 = vrot.slane %v3863, %v3896
        %v3906 = vmul.f32 %v3708, %v3869
        %v3907 = vmul.f32 %v3709, %v3873
        %v3908 = vmul.f32 %v3710, %v3877
        %v3909 = vmul.f32 %v3711, %v3881
        %v3910 = vmul.f32 %v3712, %v3885
        %v3911 = vmul.f32 %v3713, %v3889
        %v3912 = vmul.f32 %v3714, %v3893
        %v3913 = vmul.f32 %v3715, %v3897
        %v3922 = vcombine.low %v3906, %v3907
        %v3923 = vcombine.low %v3908, %v3909
        %v3924 = vcombine.low %v3910, %v3911
        %v3925 = vcombine.low %v3912, %v3913
        %v3927 = vunpack.c.l.s4 1966171168
        %v3928 = vunpack.c.0.s8 %v3927
        %v3929 = vlaneseq
        %v3930 = vshrl.u32 %v3929, 7
        %v3931 = vsub.s32 %v3928, %v3930
        %v3932 = vrot.slane %v3922, %v3931
        %v3934 = vunpack.c.l.s4 1966171168
        %v3935 = vunpack.c.0.s8 %v3934
        %v3936 = vlaneseq
        %v3937 = vshrl.u32 %v3936, 7
        %v3938 = vsub.s32 %v3935, %v3937
        %v3939 = vrot.slane %v3923, %v3938
        %v3941 = vunpack.c.l.s4 1966171168
        %v3942 = vunpack.c.0.s8 %v3941
        %v3943 = vlaneseq
        %v3944 = vshrl.u32 %v3943, 7
        %v3945 = vsub.s32 %v3942, %v3944
        %v3946 = vrot.slane %v3924, %v3945
        %v3948 = vunpack.c.l.s4 1966171168
        %v3949 = vunpack.c.0.s8 %v3948
        %v3950 = vlaneseq
        %v3951 = vshrl.u32 %v3950, 7
        %v3952 = vsub.s32 %v3949, %v3951
        %v3953 = vrot.slane %v3925, %v3952
        %v3954 = vcombine.low %v3932, %v3939
        %v3955 = vcombine.low %v3946, %v3953
        %v3957 = vunpack.c.l.s4 1966171168
        %v3958 = vunpack.c.0.s8 %v3957
        %v3959 = vlaneseq
        %v3960 = vshrl.u32 %v3959, 7
        %v3961 = vsub.s32 %v3958, %v3960
        %v3962 = vrot.slane %v3954, %v3961
        %v3964 = vunpack.c.l.s4 1966171168
        %v3965 = vunpack.c.0.s8 %v3964
        %v3966 = vlaneseq
        %v3967 = vshrl.u32 %v3966, 7
        %v3968 = vsub.s32 %v3965, %v3967
        %v3969 = vrot.slane %v3955, %v3968
        %v3970 = vcombine.low %v3962, %v3969
        %v3972 = vsub.f32 %v3864, %v3970
        %v3973 = vmul.f32 %v3408, %v3869
        %v3974 = vmul.f32 %v3410, %v3873
        %v3975 = vmul.f32 %v3490, %v3877
        %v3976 = vmul.f32 %v3492, %v3881
        %v3977 = vmul.f32 %v3572, %v3885
        %v3978 = vmul.f32 %v3574, %v3889
        %v3979 = vmul.f32 %v3654, %v3893
        %v3980 = vmul.f32 %v3656, %v3897
        %v3982 = vlaneseq
        %v3983 = vshrl.u32 %v3982, 7
        %v3984 = vsub.s32 0, %v3983
        %v3985 = vrot.slane %v3972, %v3984
        %v3986 = vlaneseq
        %v3987 = vshrl.u32 %v3986, 7
        %v3988 = vsub.s32 1, %v3987
        %v3989 = vrot.slane %v3972, %v3988
        %v3990 = vlaneseq
        %v3991 = vshrl.u32 %v3990, 7
        %v3992 = vsub.s32 2, %v3991
        %v3993 = vrot.slane %v3972, %v3992
        %v3994 = vlaneseq
        %v3995 = vshrl.u32 %v3994, 7
        %v3996 = vsub.s32 3, %v3995
        %v3997 = vrot.slane %v3972, %v3996
        %v3998 = vlaneseq
        %v3999 = vshrl.u32 %v3998, 7
        %v4000 = vsub.s32 4, %v3999
        %v4001 = vrot.slane %v3972, %v4000
        %v4002 = vlaneseq
        %v4003 = vshrl.u32 %v4002, 7
        %v4004 = vsub.s32 5, %v4003
        %v4005 = vrot.slane %v3972, %v4004
        %v4006 = vlaneseq
        %v4007 = vshrl.u32 %v4006, 7
        %v4008 = vsub.s32 6, %v4007
        %v4009 = vrot.slane %v3972, %v4008
        %v4010 = vlaneseq
        %v4011 = vshrl.u32 %v4010, 7
        %v4012 = vsub.s32 7, %v4011
        %v4013 = vrot.slane %v3972, %v4012
        %v4022 = vadd.f32 %v3973, %v3985
        %v4023 = vadd.f32 %v3974, %v3989
        %v4024 = vadd.f32 %v3975, %v3993
        %v4025 = vadd.f32 %v3976, %v3997
        %v4026 = vadd.f32 %v3977, %v4001
        %v4027 = vadd.f32 %v3978, %v4005
        %v4028 = vadd.f32 %v3979, %v4009
        %v4029 = vadd.f32 %v3980, %v4013
        %vm4030 = vcmp.gt.f32.partialorder %v4022, 0.0
        %vm4031 = vcmp.gt.f32.partialorder %v4023, 0.0
        %vm4032 = vcmp.gt.f32.partialorder %v4024, 0.0
        %vm4033 = vcmp.gt.f32.partialorder %v4025, 0.0
        %vm4034 = vcmp.gt.f32.partialorder %v4026, 0.0
        %vm4035 = vcmp.gt.f32.partialorder %v4027, 0.0
        %vm4036 = vcmp.gt.f32.partialorder %v4028, 0.0
        %vm4037 = vcmp.gt.f32.partialorder %v4029, 0.0
        %v4038 = vmul.f32 %v4022, 0.2
        %v4039 = vmul.f32 %v4023, 0.2
        %v4040 = vmul.f32 %v4024, 0.2
        %v4041 = vmul.f32 %v4025, 0.2
        %v4042 = vmul.f32 %v4026, 0.2
        %v4043 = vmul.f32 %v4027, 0.2
        %v4044 = vmul.f32 %v4028, 0.2
        %v4045 = vmul.f32 %v4029, 0.2
        %v4046 = vsel %vm4030, %v4022, %v4038
        %v4047 = vsel %vm4031, %v4023, %v4039
        %v4048 = vsel %vm4032, %v4024, %v4040
        %v4049 = vsel %vm4033, %v4025, %v4041
        %v4050 = vsel %vm4034, %v4026, %v4042
        %v4051 = vsel %vm4035, %v4027, %v4043
        %v4052 = vsel %vm4036, %v4028, %v4044
        %v4053 = vsel %vm4037, %v4029, %v4045
        %v4054 = vpack.c.bf16 %v4046, %v4046
        %v4055 = vpack.c.bf16 %v4047, %v4047
        %v4056 = vpack.c.bf16 %v4048, %v4048
        %v4057 = vpack.c.bf16 %v4049, %v4049
        %v4058 = vpack.c.bf16 %v4050, %v4050
        %v4059 = vpack.c.bf16 %v4051, %v4051
        %v4060 = vpack.c.bf16 %v4052, %v4052
        %v4061 = vpack.c.bf16 %v4053, %v4053
        %v4062 = vld [vmem:[%s660] sm:$0xf]
        %v4063 = vld [vmem:[%s660 + $0x4] sm:$0xf]
        %v4064 = vld [vmem:[%s660 + $0x8] sm:$0xf]
        %v4065 = vld [vmem:[%s660 + $0xc] sm:$0xf]
        %v4066 = vld [vmem:[%s660 + $0x10] sm:$0xf]
        %v4067 = vld [vmem:[%s660 + $0x14] sm:$0xf]
        %v4068 = vld [vmem:[%s660 + $0x18] sm:$0xf]
        %v4069 = vld [vmem:[%s660 + $0x1c] sm:$0xf]
        %v4070 = vld [vmem:[%s660 + $0x20] sm:$0xf]
        %v4071 = vld [vmem:[%s660 + $0x24] sm:$0xf]
        %v4072 = vld [vmem:[%s660 + $0x28] sm:$0xf]
        %v4073 = vld [vmem:[%s660 + $0x2c] sm:$0xf]
        %v4074 = vld [vmem:[%s660 + $0x30] sm:$0xf]
        %v4075 = vld [vmem:[%s660 + $0x34] sm:$0xf]
        %v4076 = vld [vmem:[%s660 + $0x38] sm:$0xf]
        %v4077 = vld [vmem:[%s660 + $0x3c] sm:$0xf]
        %v4078 = vld [vmem:[%s660 + $0x40] sm:$0xf]
        %v4079 = vld [vmem:[%s660 + $0x44] sm:$0xf]
        %v4080 = vld [vmem:[%s660 + $0x48] sm:$0xf]
        %v4081 = vld [vmem:[%s660 + $0x4c] sm:$0xf]
        %v4082 = vld [vmem:[%s660 + $0x50] sm:$0xf]
        %v4083 = vld [vmem:[%s660 + $0x54] sm:$0xf]
        %v4084 = vld [vmem:[%s660 + $0x58] sm:$0xf]
        %v4085 = vld [vmem:[%s660 + $0x5c] sm:$0xf]
        %v4086 = vld [vmem:[%s660 + $0x60] sm:$0xf]
        %v4087 = vld [vmem:[%s660 + $0x64] sm:$0xf]
        %v4088 = vld [vmem:[%s660 + $0x68] sm:$0xf]
        %v4089 = vld [vmem:[%s660 + $0x6c] sm:$0xf]
        %v4090 = vld [vmem:[%s660 + $0x70] sm:$0xf]
        %v4091 = vld [vmem:[%s660 + $0x74] sm:$0xf]
        %v4092 = vld [vmem:[%s660 + $0x78] sm:$0xf]
        %v4093 = vld [vmem:[%s660 + $0x7c] sm:$0xf]
        %v4094 = vld [vmem:[%s660 + $0x80] sm:$0xf]
        %v4095 = vld [vmem:[%s660 + $0x84] sm:$0xf]
        %v4096 = vld [vmem:[%s660 + $0x88] sm:$0xf]
        %v4097 = vld [vmem:[%s660 + $0x8c] sm:$0xf]
        %v4098 = vld [vmem:[%s660 + $0x90] sm:$0xf]
        %v4099 = vld [vmem:[%s660 + $0x94] sm:$0xf]
        %v4100 = vld [vmem:[%s660 + $0x98] sm:$0xf]
        %v4101 = vld [vmem:[%s660 + $0x9c] sm:$0xf]
        %v4102 = vld [vmem:[%s660 + $0xa0] sm:$0xf]
        %v4103 = vld [vmem:[%s660 + $0xa4] sm:$0xf]
        %v4104 = vld [vmem:[%s660 + $0xa8] sm:$0xf]
        %v4105 = vld [vmem:[%s660 + $0xac] sm:$0xf]
        %v4106 = vld [vmem:[%s660 + $0xb0] sm:$0xf]
        %v4107 = vld [vmem:[%s660 + $0xb4] sm:$0xf]
        %v4108 = vld [vmem:[%s660 + $0xb8] sm:$0xf]
        %v4109 = vld [vmem:[%s660 + $0xbc] sm:$0xf]
        %v4110 = vld [vmem:[%s660 + $0xc0] sm:$0xf]
        %v4111 = vld [vmem:[%s660 + $0xc4] sm:$0xf]
        %v4112 = vld [vmem:[%s660 + $0xc8] sm:$0xf]
        %v4113 = vld [vmem:[%s660 + $0xcc] sm:$0xf]
        %v4114 = vld [vmem:[%s660 + $0xd0] sm:$0xf]
        %v4115 = vld [vmem:[%s660 + $0xd4] sm:$0xf]
        %v4116 = vld [vmem:[%s660 + $0xd8] sm:$0xf]
        %v4117 = vld [vmem:[%s660 + $0xdc] sm:$0xf]
        %v4118 = vld [vmem:[%s660 + $0xe0] sm:$0xf]
        %v4119 = vld [vmem:[%s660 + $0xe4] sm:$0xf]
        %v4120 = vld [vmem:[%s660 + $0xe8] sm:$0xf]
        %v4121 = vld [vmem:[%s660 + $0xec] sm:$0xf]
        %v4122 = vld [vmem:[%s660 + $0xf0] sm:$0xf]
        %v4123 = vld [vmem:[%s660 + $0xf4] sm:$0xf]
        %v4124 = vld [vmem:[%s660 + $0xf8] sm:$0xf]
        %v4125 = vld [vmem:[%s660 + $0xfc] sm:$0xf]
        %v4126 = vld [vmem:[%s660 + $0x100] sm:$0xf]
        %v4127 = vld [vmem:[%s660 + $0x104] sm:$0xf]
        %v4128 = vld [vmem:[%s660 + $0x108] sm:$0xf]
        %v4129 = vld [vmem:[%s660 + $0x10c] sm:$0xf]
        %v4130 = vld [vmem:[%s660 + $0x110] sm:$0xf]
        %v4131 = vld [vmem:[%s660 + $0x114] sm:$0xf]
        %v4132 = vld [vmem:[%s660 + $0x118] sm:$0xf]
        %v4133 = vld [vmem:[%s660 + $0x11c] sm:$0xf]
        %v4134 = vld [vmem:[%s660 + $0x120] sm:$0xf]
        %v4135 = vld [vmem:[%s660 + $0x124] sm:$0xf]
        %v4136 = vld [vmem:[%s660 + $0x128] sm:$0xf]
        %v4137 = vld [vmem:[%s660 + $0x12c] sm:$0xf]
        %v4138 = vld [vmem:[%s660 + $0x130] sm:$0xf]
        %v4139 = vld [vmem:[%s660 + $0x134] sm:$0xf]
        %v4140 = vld [vmem:[%s660 + $0x138] sm:$0xf]
        %v4141 = vld [vmem:[%s660 + $0x13c] sm:$0xf]
        %v4142 = vld [vmem:[%s660 + $0x140] sm:$0xf]
        %v4143 = vld [vmem:[%s660 + $0x144] sm:$0xf]
        %v4144 = vld [vmem:[%s660 + $0x148] sm:$0xf]
        %v4145 = vld [vmem:[%s660 + $0x14c] sm:$0xf]
        %v4146 = vld [vmem:[%s660 + $0x150] sm:$0xf]
        %v4147 = vld [vmem:[%s660 + $0x154] sm:$0xf]
        %v4148 = vld [vmem:[%s660 + $0x158] sm:$0xf]
        %v4149 = vld [vmem:[%s660 + $0x15c] sm:$0xf]
        %v4150 = vld [vmem:[%s660 + $0x160] sm:$0xf]
        %v4151 = vld [vmem:[%s660 + $0x164] sm:$0xf]
        %v4152 = vld [vmem:[%s660 + $0x168] sm:$0xf]
        %v4153 = vld [vmem:[%s660 + $0x16c] sm:$0xf]
        %v4154 = vld [vmem:[%s660 + $0x170] sm:$0xf]
        %v4155 = vld [vmem:[%s660 + $0x174] sm:$0xf]
        %v4156 = vld [vmem:[%s660 + $0x178] sm:$0xf]
        %v4157 = vld [vmem:[%s660 + $0x17c] sm:$0xf]
        %v4158 = vld [vmem:[%s660 + $0x180] sm:$0xf]
        %v4159 = vld [vmem:[%s660 + $0x184] sm:$0xf]
        %v4160 = vld [vmem:[%s660 + $0x188] sm:$0xf]
        %v4161 = vld [vmem:[%s660 + $0x18c] sm:$0xf]
        %v4162 = vld [vmem:[%s660 + $0x190] sm:$0xf]
        %v4163 = vld [vmem:[%s660 + $0x194] sm:$0xf]
        %v4164 = vld [vmem:[%s660 + $0x198] sm:$0xf]
        %v4165 = vld [vmem:[%s660 + $0x19c] sm:$0xf]
        %v4166 = vld [vmem:[%s660 + $0x1a0] sm:$0xf]
        %v4167 = vld [vmem:[%s660 + $0x1a4] sm:$0xf]
        %v4168 = vld [vmem:[%s660 + $0x1a8] sm:$0xf]
        %v4169 = vld [vmem:[%s660 + $0x1ac] sm:$0xf]
        %v4170 = vld [vmem:[%s660 + $0x1b0] sm:$0xf]
        %v4171 = vld [vmem:[%s660 + $0x1b4] sm:$0xf]
        %v4172 = vld [vmem:[%s660 + $0x1b8] sm:$0xf]
        %v4173 = vld [vmem:[%s660 + $0x1bc] sm:$0xf]
        %v4174 = vld [vmem:[%s660 + $0x1c0] sm:$0xf]
        %v4175 = vld [vmem:[%s660 + $0x1c4] sm:$0xf]
        %v4176 = vld [vmem:[%s660 + $0x1c8] sm:$0xf]
        %v4177 = vld [vmem:[%s660 + $0x1cc] sm:$0xf]
        %v4178 = vld [vmem:[%s660 + $0x1d0] sm:$0xf]
        %v4179 = vld [vmem:[%s660 + $0x1d4] sm:$0xf]
        %v4180 = vld [vmem:[%s660 + $0x1d8] sm:$0xf]
        %v4181 = vld [vmem:[%s660 + $0x1dc] sm:$0xf]
        %v4182 = vld [vmem:[%s660 + $0x1e0] sm:$0xf]
        %v4183 = vld [vmem:[%s660 + $0x1e4] sm:$0xf]
        %v4184 = vld [vmem:[%s660 + $0x1e8] sm:$0xf]
        %v4185 = vld [vmem:[%s660 + $0x1ec] sm:$0xf]
        %v4186 = vld [vmem:[%s660 + $0x1f0] sm:$0xf]
        %v4187 = vld [vmem:[%s660 + $0x1f4] sm:$0xf]
        %v4188 = vld [vmem:[%s660 + $0x1f8] sm:$0xf]
        %v4189 = vld [vmem:[%s660 + $0x1fc] sm:$0xf]
        %v4190 = vld [vmem:[%s668] sm:$0x1]
        %v4192 = vlaneseq
        %v4193 = vshrl.u32 %v4192, 7
        %v4194 = vsub.s32 0, %v4193
        %v4195 = vrot.slane %v4190, %v4194
        %v4325 = vunpack.c.l.b16 %v4062
        %v4326 = vunpack.c.l.b16 %v4063
        %v4327 = vunpack.c.l.b16 %v4064
        %v4328 = vunpack.c.l.b16 %v4065
        %v4329 = vunpack.c.l.b16 %v4066
        %v4330 = vunpack.c.l.b16 %v4067
        %v4331 = vunpack.c.l.b16 %v4068
        %v4332 = vunpack.c.l.b16 %v4069
        %v4333 = vunpack.c.l.b16 %v4070
        %v4334 = vunpack.c.l.b16 %v4071
        %v4335 = vunpack.c.l.b16 %v4072
        %v4336 = vunpack.c.l.b16 %v4073
        %v4337 = vunpack.c.l.b16 %v4074
        %v4338 = vunpack.c.l.b16 %v4075
        %v4339 = vunpack.c.l.b16 %v4076
        %v4340 = vunpack.c.l.b16 %v4077
        %v4341 = vunpack.c.l.b16 %v4078
        %v4342 = vunpack.c.l.b16 %v4079
        %v4343 = vunpack.c.l.b16 %v4080
        %v4344 = vunpack.c.l.b16 %v4081
        %v4345 = vunpack.c.l.b16 %v4082
        %v4346 = vunpack.c.l.b16 %v4083
        %v4347 = vunpack.c.l.b16 %v4084
        %v4348 = vunpack.c.l.b16 %v4085
        %v4349 = vunpack.c.l.b16 %v4086
        %v4350 = vunpack.c.l.b16 %v4087
        %v4351 = vunpack.c.l.b16 %v4088
        %v4352 = vunpack.c.l.b16 %v4089
        %v4353 = vunpack.c.l.b16 %v4090
        %v4354 = vunpack.c.l.b16 %v4091
        %v4355 = vunpack.c.l.b16 %v4092
        %v4356 = vunpack.c.l.b16 %v4093
        %v4357 = vunpack.c.l.b16 %v4094
        %v4358 = vunpack.c.l.b16 %v4095
        %v4359 = vunpack.c.l.b16 %v4096
        %v4360 = vunpack.c.l.b16 %v4097
        %v4361 = vunpack.c.l.b16 %v4098
        %v4362 = vunpack.c.l.b16 %v4099
        %v4363 = vunpack.c.l.b16 %v4100
        %v4364 = vunpack.c.l.b16 %v4101
        %v4365 = vunpack.c.l.b16 %v4102
        %v4366 = vunpack.c.l.b16 %v4103
        %v4367 = vunpack.c.l.b16 %v4104
        %v4368 = vunpack.c.l.b16 %v4105
        %v4369 = vunpack.c.l.b16 %v4106
        %v4370 = vunpack.c.l.b16 %v4107
        %v4371 = vunpack.c.l.b16 %v4108
        %v4372 = vunpack.c.l.b16 %v4109
        %v4373 = vunpack.c.l.b16 %v4110
        %v4374 = vunpack.c.l.b16 %v4111
        %v4375 = vunpack.c.l.b16 %v4112
        %v4376 = vunpack.c.l.b16 %v4113
        %v4377 = vunpack.c.l.b16 %v4114
        %v4378 = vunpack.c.l.b16 %v4115
        %v4379 = vunpack.c.l.b16 %v4116
        %v4380 = vunpack.c.l.b16 %v4117
        %v4381 = vunpack.c.l.b16 %v4118
        %v4382 = vunpack.c.l.b16 %v4119
        %v4383 = vunpack.c.l.b16 %v4120
        %v4384 = vunpack.c.l.b16 %v4121
        %v4385 = vunpack.c.l.b16 %v4122
        %v4386 = vunpack.c.l.b16 %v4123
        %v4387 = vunpack.c.l.b16 %v4124
        %v4388 = vunpack.c.l.b16 %v4125
        %v4389 = vunpack.c.l.b16 %v4126
        %v4390 = vunpack.c.l.b16 %v4127
        %v4391 = vunpack.c.l.b16 %v4128
        %v4392 = vunpack.c.l.b16 %v4129
        %v4393 = vunpack.c.l.b16 %v4130
        %v4394 = vunpack.c.l.b16 %v4131
        %v4395 = vunpack.c.l.b16 %v4132
        %v4396 = vunpack.c.l.b16 %v4133
        %v4397 = vunpack.c.l.b16 %v4134
        %v4398 = vunpack.c.l.b16 %v4135
        %v4399 = vunpack.c.l.b16 %v4136
        %v4400 = vunpack.c.l.b16 %v4137
        %v4401 = vunpack.c.l.b16 %v4138
        %v4402 = vunpack.c.l.b16 %v4139
        %v4403 = vunpack.c.l.b16 %v4140
        %v4404 = vunpack.c.l.b16 %v4141
        %v4405 = vunpack.c.l.b16 %v4142
        %v4406 = vunpack.c.l.b16 %v4143
        %v4407 = vunpack.c.l.b16 %v4144
        %v4408 = vunpack.c.l.b16 %v4145
        %v4409 = vunpack.c.l.b16 %v4146
        %v4410 = vunpack.c.l.b16 %v4147
        %v4411 = vunpack.c.l.b16 %v4148
        %v4412 = vunpack.c.l.b16 %v4149
        %v4413 = vunpack.c.l.b16 %v4150
        %v4414 = vunpack.c.l.b16 %v4151
        %v4415 = vunpack.c.l.b16 %v4152
        %v4416 = vunpack.c.l.b16 %v4153
        %v4417 = vunpack.c.l.b16 %v4154
        %v4418 = vunpack.c.l.b16 %v4155
        %v4419 = vunpack.c.l.b16 %v4156
        %v4420 = vunpack.c.l.b16 %v4157
        %v4421 = vunpack.c.l.b16 %v4158
        %v4422 = vunpack.c.l.b16 %v4159
        %v4423 = vunpack.c.l.b16 %v4160
        %v4424 = vunpack.c.l.b16 %v4161
        %v4425 = vunpack.c.l.b16 %v4162
        %v4426 = vunpack.c.l.b16 %v4163
        %v4427 = vunpack.c.l.b16 %v4164
        %v4428 = vunpack.c.l.b16 %v4165
        %v4429 = vunpack.c.l.b16 %v4166
        %v4430 = vunpack.c.l.b16 %v4167
        %v4431 = vunpack.c.l.b16 %v4168
        %v4432 = vunpack.c.l.b16 %v4169
        %v4433 = vunpack.c.l.b16 %v4170
        %v4434 = vunpack.c.l.b16 %v4171
        %v4435 = vunpack.c.l.b16 %v4172
        %v4436 = vunpack.c.l.b16 %v4173
        %v4437 = vunpack.c.l.b16 %v4174
        %v4438 = vunpack.c.l.b16 %v4175
        %v4439 = vunpack.c.l.b16 %v4176
        %v4440 = vunpack.c.l.b16 %v4177
        %v4441 = vunpack.c.l.b16 %v4178
        %v4442 = vunpack.c.l.b16 %v4179
        %v4443 = vunpack.c.l.b16 %v4180
        %v4444 = vunpack.c.l.b16 %v4181
        %v4445 = vunpack.c.l.b16 %v4182
        %v4446 = vunpack.c.l.b16 %v4183
        %v4447 = vunpack.c.l.b16 %v4184
        %v4448 = vunpack.c.l.b16 %v4185
        %v4449 = vunpack.c.l.b16 %v4186
        %v4450 = vunpack.c.l.b16 %v4187
        %v4451 = vunpack.c.l.b16 %v4188
        %v4452 = vunpack.c.l.b16 %v4189
        %v4453 = vpack.c.b16 %v4326, %v4325
        %v4454 = vpack.c.b16 %v4328, %v4327
        %v4455 = vpack.c.b16 %v4330, %v4329
        %v4456 = vpack.c.b16 %v4332, %v4331
        %v4457 = vpack.c.b16 %v4334, %v4333
        %v4458 = vpack.c.b16 %v4336, %v4335
        %v4459 = vpack.c.b16 %v4338, %v4337
        %v4460 = vpack.c.b16 %v4340, %v4339
        %v4461 = vpack.c.b16 %v4342, %v4341
        %v4462 = vpack.c.b16 %v4344, %v4343
        %v4463 = vpack.c.b16 %v4346, %v4345
        %v4464 = vpack.c.b16 %v4348, %v4347
        %v4465 = vpack.c.b16 %v4350, %v4349
        %v4466 = vpack.c.b16 %v4352, %v4351
        %v4467 = vpack.c.b16 %v4354, %v4353
        %v4468 = vpack.c.b16 %v4356, %v4355
        %v4469 = vpack.c.b16 %v4358, %v4357
        %v4470 = vpack.c.b16 %v4360, %v4359
        %v4471 = vpack.c.b16 %v4362, %v4361
        %v4472 = vpack.c.b16 %v4364, %v4363
        %v4473 = vpack.c.b16 %v4366, %v4365
        %v4474 = vpack.c.b16 %v4368, %v4367
        %v4475 = vpack.c.b16 %v4370, %v4369
        %v4476 = vpack.c.b16 %v4372, %v4371
        %v4477 = vpack.c.b16 %v4374, %v4373
        %v4478 = vpack.c.b16 %v4376, %v4375
        %v4479 = vpack.c.b16 %v4378, %v4377
        %v4480 = vpack.c.b16 %v4380, %v4379
        %v4481 = vpack.c.b16 %v4382, %v4381
        %v4482 = vpack.c.b16 %v4384, %v4383
        %v4483 = vpack.c.b16 %v4386, %v4385
        %v4484 = vpack.c.b16 %v4388, %v4387
        %v4485 = vpack.c.b16 %v4390, %v4389
        %v4486 = vpack.c.b16 %v4392, %v4391
        %v4487 = vpack.c.b16 %v4394, %v4393
        %v4488 = vpack.c.b16 %v4396, %v4395
        %v4489 = vpack.c.b16 %v4398, %v4397
        %v4490 = vpack.c.b16 %v4400, %v4399
        %v4491 = vpack.c.b16 %v4402, %v4401
        %v4492 = vpack.c.b16 %v4404, %v4403
        %v4493 = vpack.c.b16 %v4406, %v4405
        %v4494 = vpack.c.b16 %v4408, %v4407
        %v4495 = vpack.c.b16 %v4410, %v4409
        %v4496 = vpack.c.b16 %v4412, %v4411
        %v4497 = vpack.c.b16 %v4414, %v4413
        %v4498 = vpack.c.b16 %v4416, %v4415
        %v4499 = vpack.c.b16 %v4418, %v4417
        %v4500 = vpack.c.b16 %v4420, %v4419
        %v4501 = vpack.c.b16 %v4422, %v4421
        %v4502 = vpack.c.b16 %v4424, %v4423
        %v4503 = vpack.c.b16 %v4426, %v4425
        %v4504 = vpack.c.b16 %v4428, %v4427
        %v4505 = vpack.c.b16 %v4430, %v4429
        %v4506 = vpack.c.b16 %v4432, %v4431
        %v4507 = vpack.c.b16 %v4434, %v4433
        %v4508 = vpack.c.b16 %v4436, %v4435
        %v4509 = vpack.c.b16 %v4438, %v4437
        %v4510 = vpack.c.b16 %v4440, %v4439
        %v4511 = vpack.c.b16 %v4442, %v4441
        %v4512 = vpack.c.b16 %v4444, %v4443
        %v4513 = vpack.c.b16 %v4446, %v4445
        %v4514 = vpack.c.b16 %v4448, %v4447
        %v4515 = vpack.c.b16 %v4450, %v4449
        %v4516 = vpack.c.b16 %v4452, %v4451
        %4581 = vmatprep.subr.bf16.mxu0 0
        %4582 = vmatpush1.bf16.msra.mxu0 %v4453
        %4583 = vmatprep.subr.bf16.mxu0 0
        %4584 = vmatpush1.bf16.msra.mxu0 %v4454
        %4585 = vmatprep.subr.bf16.mxu0 0
        %4586 = vmatpush1.bf16.msra.mxu0 %v4455
        %4587 = vmatprep.subr.bf16.mxu0 0
        %4588 = vmatpush1.bf16.msra.mxu0 %v4456
        %4589 = vmatprep.subr.bf16.mxu0 0
        %4590 = vmatpush1.bf16.msra.mxu0 %v4457
        %4591 = vmatprep.subr.bf16.mxu0 0
        %4592 = vmatpush1.bf16.msra.mxu0 %v4458
        %4593 = vmatprep.subr.bf16.mxu0 0
        %4594 = vmatpush1.bf16.msra.mxu0 %v4459
        %4595 = vmatprep.subr.bf16.mxu0 0
        %4596 = vmatpush1.bf16.msra.mxu0 %v4460
        %4597 = vmatprep.subr.bf16.mxu0 0
        %4598 = vmatpush1.bf16.msra.mxu0 %v4461
        %4599 = vmatprep.subr.bf16.mxu0 0
        %4600 = vmatpush1.bf16.msra.mxu0 %v4462
        %4601 = vmatprep.subr.bf16.mxu0 0
        %4602 = vmatpush1.bf16.msra.mxu0 %v4463
        %4603 = vmatprep.subr.bf16.mxu0 0
        %4604 = vmatpush1.bf16.msra.mxu0 %v4464
        %4605 = vmatprep.subr.bf16.mxu0 0
        %4606 = vmatpush1.bf16.msra.mxu0 %v4465
        %4607 = vmatprep.subr.bf16.mxu0 0
        %4608 = vmatpush1.bf16.msra.mxu0 %v4466
        %4609 = vmatprep.subr.bf16.mxu0 0
        %4610 = vmatpush1.bf16.msra.mxu0 %v4467
        %4611 = vmatprep.subr.bf16.mxu0 0
        %4612 = vmatpush1.bf16.msra.mxu0 %v4468
        %4613 = vmatprep.mubr.bf16.mxu0 %v4055
        %4614 = vmatmul.mubr.bf16.gmra.mrb[0].mxu0 %v4054
        %v4615 = vpop.f32.mrb[0].mxu0
        %v4616 = vadd.f32 %v4195, %v4615
        %v4617 = vpop.f32.mrb[0].mxu0
        %v4618 = vpop.f32.mrb[0].mxu0
        %v4619 = vpop.f32.mrb[0].mxu0
        %4620 = vdwg.mxu0
        %4621 = vmatprep.subr.bf16.mxu0 0
        %4622 = vmatpush1.bf16.msra.mxu0 %v4469
        %4623 = vmatprep.subr.bf16.mxu0 0
        %4624 = vmatpush1.bf16.msra.mxu0 %v4470
        %4625 = vmatprep.subr.bf16.mxu0 0
        %4626 = vmatpush1.bf16.msra.mxu0 %v4471
        %4627 = vmatprep.subr.bf16.mxu0 0
        %4628 = vmatpush1.bf16.msra.mxu0 %v4472
        %4629 = vmatprep.subr.bf16.mxu0 0
        %4630 = vmatpush1.bf16.msra.mxu0 %v4473
        %4631 = vmatprep.subr.bf16.mxu0 0
        %4632 = vmatpush1.bf16.msra.mxu0 %v4474
        %4633 = vmatprep.subr.bf16.mxu0 0
        %4634 = vmatpush1.bf16.msra.mxu0 %v4475
        %4635 = vmatprep.subr.bf16.mxu0 0
        %4636 = vmatpush1.bf16.msra.mxu0 %v4476
        %4637 = vmatprep.subr.bf16.mxu0 0
        %4638 = vmatpush1.bf16.msra.mxu0 %v4477
        %4639 = vmatprep.subr.bf16.mxu0 0
        %4640 = vmatpush1.bf16.msra.mxu0 %v4478
        %4641 = vmatprep.subr.bf16.mxu0 0
        %4642 = vmatpush1.bf16.msra.mxu0 %v4479
        %4643 = vmatprep.subr.bf16.mxu0 0
        %4644 = vmatpush1.bf16.msra.mxu0 %v4480
        %4645 = vmatprep.subr.bf16.mxu0 0
        %4646 = vmatpush1.bf16.msra.mxu0 %v4481
        %4647 = vmatprep.subr.bf16.mxu0 0
        %4648 = vmatpush1.bf16.msra.mxu0 %v4482
        %4649 = vmatprep.subr.bf16.mxu0 0
        %4650 = vmatpush1.bf16.msra.mxu0 %v4483
        %4651 = vmatprep.subr.bf16.mxu0 0
        %4652 = vmatpush1.bf16.msra.mxu0 %v4484
        %4653 = vmatprep.mubr.bf16.mxu0 %v4057
        %4654 = vmatmul.mubr.bf16.gmra.mrb[0].mxu0 %v4056
        %v4655 = vpop.f32.mrb[0].mxu0
        %v4656 = vadd.f32 %v4616, %v4655
        %v4657 = vpop.f32.mrb[0].mxu0
        %v4658 = vpop.f32.mrb[0].mxu0
        %v4659 = vpop.f32.mrb[0].mxu0
        %4660 = vdwg.mxu0
        %4661 = vmatprep.subr.bf16.mxu0 0
        %4662 = vmatpush1.bf16.msra.mxu0 %v4485
        %4663 = vmatprep.subr.bf16.mxu0 0
        %4664 = vmatpush1.bf16.msra.mxu0 %v4486
        %4665 = vmatprep.subr.bf16.mxu0 0
        %4666 = vmatpush1.bf16.msra.mxu0 %v4487
        %4667 = vmatprep.subr.bf16.mxu0 0
        %4668 = vmatpush1.bf16.msra.mxu0 %v4488
        %4669 = vmatprep.subr.bf16.mxu0 0
        %4670 = vmatpush1.bf16.msra.mxu0 %v4489
        %4671 = vmatprep.subr.bf16.mxu0 0
        %4672 = vmatpush1.bf16.msra.mxu0 %v4490
        %4673 = vmatprep.subr.bf16.mxu0 0
        %4674 = vmatpush1.bf16.msra.mxu0 %v4491
        %4675 = vmatprep.subr.bf16.mxu0 0
        %4676 = vmatpush1.bf16.msra.mxu0 %v4492
        %4677 = vmatprep.subr.bf16.mxu0 0
        %4678 = vmatpush1.bf16.msra.mxu0 %v4493
        %4679 = vmatprep.subr.bf16.mxu0 0
        %4680 = vmatpush1.bf16.msra.mxu0 %v4494
        %4681 = vmatprep.subr.bf16.mxu0 0
        %4682 = vmatpush1.bf16.msra.mxu0 %v4495
        %4683 = vmatprep.subr.bf16.mxu0 0
        %4684 = vmatpush1.bf16.msra.mxu0 %v4496
        %4685 = vmatprep.subr.bf16.mxu0 0
        %4686 = vmatpush1.bf16.msra.mxu0 %v4497
        %4687 = vmatprep.subr.bf16.mxu0 0
        %4688 = vmatpush1.bf16.msra.mxu0 %v4498
        %4689 = vmatprep.subr.bf16.mxu0 0
        %4690 = vmatpush1.bf16.msra.mxu0 %v4499
        %4691 = vmatprep.subr.bf16.mxu0 0
        %4692 = vmatpush1.bf16.msra.mxu0 %v4500
        %4693 = vmatprep.mubr.bf16.mxu0 %v4059
        %4694 = vmatmul.mubr.bf16.gmra.mrb[0].mxu0 %v4058
        %v4695 = vpop.f32.mrb[0].mxu0
        %v4696 = vadd.f32 %v4656, %v4695
        %v4697 = vpop.f32.mrb[0].mxu0
        %v4698 = vpop.f32.mrb[0].mxu0
        %v4699 = vpop.f32.mrb[0].mxu0
        %4700 = vdwg.mxu0
        %4701 = vmatprep.subr.bf16.mxu0 0
        %4702 = vmatpush1.bf16.msra.mxu0 %v4501
        %4703 = vmatprep.subr.bf16.mxu0 0
        %4704 = vmatpush1.bf16.msra.mxu0 %v4502
        %4705 = vmatprep.subr.bf16.mxu0 0
        %4706 = vmatpush1.bf16.msra.mxu0 %v4503
        %4707 = vmatprep.subr.bf16.mxu0 0
        %4708 = vmatpush1.bf16.msra.mxu0 %v4504
        %4709 = vmatprep.subr.bf16.mxu0 0
        %4710 = vmatpush1.bf16.msra.mxu0 %v4505
        %4711 = vmatprep.subr.bf16.mxu0 0
        %4712 = vmatpush1.bf16.msra.mxu0 %v4506
        %4713 = vmatprep.subr.bf16.mxu0 0
        %4714 = vmatpush1.bf16.msra.mxu0 %v4507
        %4715 = vmatprep.subr.bf16.mxu0 0
        %4716 = vmatpush1.bf16.msra.mxu0 %v4508
        %4717 = vmatprep.subr.bf16.mxu0 0
        %4718 = vmatpush1.bf16.msra.mxu0 %v4509
        %4719 = vmatprep.subr.bf16.mxu0 0
        %4720 = vmatpush1.bf16.msra.mxu0 %v4510
        %4721 = vmatprep.subr.bf16.mxu0 0
        %4722 = vmatpush1.bf16.msra.mxu0 %v4511
        %4723 = vmatprep.subr.bf16.mxu0 0
        %4724 = vmatpush1.bf16.msra.mxu0 %v4512
        %4725 = vmatprep.subr.bf16.mxu0 0
        %4726 = vmatpush1.bf16.msra.mxu0 %v4513
        %4727 = vmatprep.subr.bf16.mxu0 0
        %4728 = vmatpush1.bf16.msra.mxu0 %v4514
        %4729 = vmatprep.subr.bf16.mxu0 0
        %4730 = vmatpush1.bf16.msra.mxu0 %v4515
        %4731 = vmatprep.subr.bf16.mxu0 0
        %4732 = vmatpush1.bf16.msra.mxu0 %v4516
        %4733 = vmatprep.mubr.bf16.mxu0 %v4061
        %4734 = vmatmul.mubr.bf16.gmra.mrb[0].mxu0 %v4060
        %v4735 = vpop.f32.mrb[0].mxu0
        %v4736 = vadd.f32 %v4696, %v4735
        %v4737 = vpop.f32.mrb[0].mxu0
        %v4738 = vpop.f32.mrb[0].mxu0
        %v4739 = vpop.f32.mrb[0].mxu0
        %4740 = vdwg.mxu0
        %v4741 = vtanh.pop %v4736
        %4742 = vst [vmem:[%s725] sm:$0xff] %v4741
        %p4743 = scmp.lt.s32.totalorder %s34, 1
        %s4744 = scalar_select %p4743, %s34, 1
        %s4745 = smul.addr %s4744, 8
        %s4746 = scalar_lea.vmem %s17, %s4745
        // Predicated region
        $region137: #{_lambda_.1} parent=87 // pred_check
          %p4747 = pneg %p419
        $region138: #{_lambda_.1} parent=87 // pred_check_branch
          %4749 = sbr.rel (%p4747) target = $region140
        $region139: #{_lambda_.1} parent=87 // pred_region
          _
        $region140: #{_lambda_.1} parent=87 // pred_fallthru
          _
      $region88: #{_lambda_.1} parent=5 // pred_fallthru
        _
      %p4750 = scmp.le.s32.totalorder 2, %s29
      // Predicated region
      $region141: #{_lambda_.1} parent=5 // pred_check
        %p4751 = pneg %p4750
      $region142: #{_lambda_.1} parent=5 // pred_check_branch
        %4753 = sbr.rel (%p4751) target = $region144
      $region143: #{_lambda_.1} parent=5 // pred_region
        %s4754 = ssub.s32 %s29, 2
        // Predicated region
        $region145: #{_lambda_.1} parent=143 // pred_check
          %p4755 = pneg %p425
        $region146: #{_lambda_.1} parent=143 // pred_check_branch
          %4757 = sbr.rel (%p4755) target = $region148
        $region147: #{_lambda_.1} parent=143 // pred_region
          %p4758 = scmp.lt.s32.totalorder %s35, 1
          %s4759 = scalar_select %p4758, %s35, 1
          %s4760 = smul.addr %s4759, 8
          %s4761 = scalar_lea.vmem %s17, %s4760
        $region148: #{_lambda_.1} parent=143 // pred_fallthru
          _
      $region144: #{_lambda_.1} parent=5 // pred_fallthru
        _
    $region6: #{_lambda_.1} parent=1 // loop_footer
      %s33 = sadd.s32 1, %s29
    $region7: #{_lambda_.1} parent=1 // loop_footer_branch
      %28 = sbr.rel target = $region3
    $region8: #{_lambda_.1} parent=1 // loop_exit
      _
    %4762 = vsyncpa [#allocation3], 1
    %s4763 = scalar_lea.sflag [#allocation3], 1
    %4764 = vsyncpa %s4763, 1
    %4765 = vsyncpa [#allocation5], 1
    %4766 = vsyncpa [#allocation8], 1
    %4767 = vsyncpa [#allocation11], 1
    %4768 = vsyncpa [#allocation14], 1
    %4769 = vsyncpa [#allocation17], 1

</llo_original>
